<compile_context>
chip_gen: v7x
topology: tpu7x:2x2x1
jax: 0.10.0
libtpu: 0.0.40
codegen_flags: <defaults>
</compile_context>

<pallas_src>
import math

import numpy as np
import jax
import jax.numpy as jnp
from jax.experimental import pallas as pl
from jax.experimental.pallas import tpu as pltpu

# ---- Small-but-consistent configuration (module defaults scaled down) ----
D_MODEL = 32          # d_model
D_FFN = 64            # d_ffn
N_HEAD = 4            # n_head
HEAD_DIM = D_MODEL // N_HEAD
N_LAYERS = 2          # n_layers
NUM_CLASSES = 1       # num_classes
PROJ_IDXS = (2, 3, 4)
LN_EPS = 1e-5


def _layernorm(x, gamma, beta):
    """LayerNorm over the last axis (pure-JAX reference)."""
    mean = jnp.mean(x, axis=-1, keepdims=True)
    var = jnp.mean((x - mean) ** 2, axis=-1, keepdims=True)
    return (x - mean) * jax.lax.rsqrt(var + LN_EPS) * gamma + beta


def _layernorm_cols(xT, gammaT, betaT):
    """LayerNorm over axis 0 (feature axis) of a (D, B) column-major tile."""
    mean = jnp.mean(xT, axis=0, keepdims=True)
    var = jnp.mean((xT - mean) ** 2, axis=0, keepdims=True)
    return (xT - mean) * jax.lax.rsqrt(var + LN_EPS) * gammaT + betaT


def _ca_head_kernel(feat_ref, consts_ref, wkvb_ref, wblob_ref, w2_ref, dvecs_ref,
                    out_ref, kv_ref):
    """CA transformer stack + head; everything kept feature-on-sublane."""
    B, D, L = feat_ref.shape
    F = D_FFN
    TWO_D = 2 * D

    consts = consts_ref[...]                       # (D, D+3)
    G = consts[:, :D]                              # scaled block-diag head grouping
    q0T = consts[:, D:D + 1]                       # (D, 1) class query column
    whT = consts[:, D + 1:D + 2]                   # (D, 1) fused head weight
    bh = consts[0:1, D + 2:D + 3]                  # (1, 1) fused head bias

    wkvT = wkvb_ref[:, :D]                         # (NL*2D, D) fused K|V weights (all layers)
    bkvT = wkvb_ref[:, D:D + 1]                    # (NL*2D, 1) fused K|V bias

    # ---- fused K|V projection for ALL layers, hoisted out of the layer loop ----
    # feat arrives as (B, D, L): plain (NL*2D, D) @ (D, L) matmul per batch element,
    # no transposes anywhere.  Result lives in a VMEM scratch, sliced per layer.
    for b in range(B):
        kv_ref[b] = (jnp.dot(wkvT, feat_ref[b], preferred_element_type=jnp.float32)
                     + bkvT)

    # query state in transposed layout: (D, B), features on sublanes.
    qT = jnp.broadcast_to(q0T, (D, B))

    for l in range(N_LAYERS):                      # static unroll over layers
        wl = wblob_ref[l]                          # (2D+F, D): [wqT; woT; w1T]
        wqT = wl[:D]
        woT = wl[D:TWO_D]
        w1T = wl[TWO_D:TWO_D + F]
        w2T = w2_ref[l]                            # (D, F)

        dv = dvecs_ref[l]                          # (F, 8) bias / LayerNorm columns
        bqT, boT = dv[:D, 0:1], dv[:D, 1:2]
        g1T, bt1T = dv[:D, 2:3], dv[:D, 3:4]
        bf2T = dv[:D, 4:5]
        g2T, bt2T = dv[:D, 5:6], dv[:D, 6:7]
        bf1T = dv[:, 7:8]                          # (F, 1)

        QT = jnp.dot(wqT, qT, preferred_element_type=jnp.float32) + bqT   # (D, B)

        # ---- cross-attention (num_classes == 1 fast path), per batch element ----
        # scores/softmax/p*V all reduce over the lane axis (keys); heads live on
        # sublanes and come out already concatenated.
        cols = []
        for b in range(B):
            KT = kv_ref[b, l * TWO_D:l * TWO_D + D, :]                    # (D, L)
            VT = kv_ref[b, l * TWO_D + D:(l + 1) * TWO_D, :]              # (D, L)
            sT = KT * QT[:, b:b + 1]                                      # (D, L)
            hsT = jnp.dot(G, sT, preferred_element_type=jnp.float32)      # per-head scores
            m = jnp.max(hsT, axis=1, keepdims=True)                       # lane reduce
            p = jnp.exp(hsT - m)
            p = p * pl.reciprocal(jnp.sum(p, axis=1, keepdims=True), approx=True)
            cols.append(jnp.sum(p * VT, axis=1, keepdims=True))           # (D, 1)
        attnT = jnp.concatenate(cols, axis=1)                             # (D, B)

        attnT = jnp.dot(woT, attnT, preferred_element_type=jnp.float32) + boT

        # residual + LayerNorm (dropout = identity in eval mode)
        qT = _layernorm_cols(qT + attnT, g1T, bt1T)

        # ---- FFN ----
        h = jnp.dot(w1T, qT, preferred_element_type=jnp.float32) + bf1T   # (F, B)
        h = jnp.maximum(h, 0.0)
        h = jnp.dot(w2T, h, preferred_element_type=jnp.float32) + bf2T    # (D, B)
        qT = _layernorm_cols(qT + h, g2T, bt2T)

    # ---- head: the two Linears are fused at pack time into (whT, bh) ----
    # flip qT -> (B, D) with a tiny identity matmul (transpose-rhs contraction),
    # then one (B, D) @ (D, 1) projection.
    r = jax.lax.broadcasted_iota(jnp.int32, (B, B), 0)
    c = jax.lax.broadcasted_iota(jnp.int32, (B, B), 1)
    eyeB = jnp.where(r == c, 1.0, 0.0).astype(jnp.float32)
    q_bt = jax.lax.dot_general(eyeB, qT, (((1,), (1,)), ((), ())),
                               preferred_element_type=jnp.float32)        # (B, D)
    out_ref[...] = jnp.dot(q_bt, whT, preferred_element_type=jnp.float32) + bh


def pack_params(params):
    """One-time packing of the 22 module parameters into 5 kernel blobs."""
    D, F, NL, C = D_MODEL, D_FFN, N_LAYERS, NUM_CLASSES
    t = lambda w: jnp.transpose(w, (0, 2, 1))      # (NL, in, out) -> (NL, out, in)

    # fused K|V weights for all layers, rows = output features: [wkT_0; wvT_0; wkT_1; wvT_1]
    wk_t, wv_t = t(params["wk"]), t(params["wv"])
    wkvT = jnp.concatenate([jnp.concatenate([wk_t[l], wv_t[l]], axis=0)
                            for l in range(NL)], axis=0)                  # (NL*2D, D)
    bcols = []
    for l in range(NL):
        bcols.append(params["bk"][l].reshape(D, 1))
        bcols.append(params["bv"][l].reshape(D, 1))
    bkvT = jnp.concatenate(bcols, axis=0)                                 # (NL*2D, 1)
    wkvbT = jnp.concatenate([wkvT, bkvT], axis=1)                         # (NL*2D, D+1)

    # per-layer q-side weights, transposed and stacked on rows: [wqT; woT; w1T]
    wblobT = jnp.concatenate([t(params["wq"]), t(params["wo"]), t(params["w1"])],
                             axis=1)                                      # (NL, 2D+F, D)
    w2T = t(params["w2"])                                                 # (NL, D, F)

    # per-layer bias / LayerNorm vectors as columns, padded to F rows
    def col(v):                                   # (NL, 1, n) -> (NL, F, 1)
        vt = jnp.transpose(v, (0, 2, 1))
        return jnp.pad(vt, ((0, 0), (0, F - vt.shape[1]), (0, 0)))
    dvecsT = jnp.concatenate(
        [col(params[k]) for k in ("bq", "bo", "g1", "bt1", "bf2", "g2", "bt2")]
        + [col(params["bf1"])], axis=2)                                   # (NL, F, 8)

    # constants: block-diagonal head grouping (1/sqrt(head_dim) folded in),
    # class-query column, fused head weight column and fused head bias.
    G = jnp.asarray(np.kron(np.eye(N_HEAD), np.ones((HEAD_DIM, HEAD_DIM)))
                    / math.sqrt(HEAD_DIM), jnp.float32)                   # (D, D)
    q0T = params["q0"].reshape(C * D, 1)                                  # (D, 1), C == 1
    whT = params["wh1"] @ params["wh2"]                                   # (D, 1)
    bh = params["bh1"] @ params["wh2"] + params["bh2"]                    # (1, 1)
    consts = jnp.concatenate([G, q0T, whT, jnp.broadcast_to(bh, (D, 1))], axis=1)

    return {"consts": consts, "wkvbT": wkvbT, "wblobT": wblobT,
            "w2T": w2T, "dvecsT": dvecsT}


def mctrans_aux_head_pallas(inputs, packed):
    """inputs: list of NCHW feature maps; selected maps carry d_model channels."""
    assert NUM_CLASSES == 1, "fast-path kernel assumes the module default num_classes=1"

    # flatten(2) + concat along spatial only -- NO transpose; feat stays (B, D, L).
    feats = [inputs[idx].reshape(inputs[idx].shape[0], D_MODEL, -1) for idx in PROJ_IDXS]
    feat = jnp.concatenate(feats, axis=2)                                 # (B, D, L)
    B, _, L = feat.shape

    # No grid, no index_maps, no dimension_semantics: default specs map every
    # full array straight into VMEM (whole problem is tens of KB), so the
    # single invocation pays no pipelining/double-buffering overhead.
    return pl.pallas_call(
        _ca_head_kernel,
        out_shape=jax.ShapeDtypeStruct((B, NUM_CLASSES), jnp.float32),
        scratch_shapes=[pltpu.VMEM((B, N_LAYERS * 2 * D_MODEL, L), jnp.float32)],
    )(feat, packed["consts"], packed["wkvbT"], packed["wblobT"],
      packed["w2T"], packed["dvecsT"])


def mctrans_aux_head_reference(inputs, params):
    """Pure-JAX reference for correctness checking."""
    feats = []
    for idx in PROJ_IDXS:
        x = inputs[idx]
        B, D, H, W = x.shape
        feats.append(jnp.transpose(x.reshape(B, D, H * W), (0, 2, 1)))
    feat = jnp.concatenate(feats, axis=1)                 # (B, L, D)
    B, L, D = feat.shape

    q = jnp.broadcast_to(params["q0"], (B, NUM_CLASSES, D))
    for l in range(N_LAYERS):
        Q = q @ params["wq"][l] + params["bq"][l]
        K = feat @ params["wk"][l] + params["bk"][l]
        V = feat @ params["wv"][l] + params["bv"][l]
        Qh = Q.reshape(B, NUM_CLASSES, N_HEAD, HEAD_DIM)
        Kh = K.reshape(B, L, N_HEAD, HEAD_DIM)
        Vh = V.reshape(B, L, N_HEAD, HEAD_DIM)
        s = jnp.einsum("bqhd,bkhd->bhqk", Qh, Kh) / math.sqrt(HEAD_DIM)
        p = jax.nn.softmax(s, axis=-1)
        a = jnp.einsum("bhqk,bkhd->bqhd", p, Vh).reshape(B, NUM_CLASSES, D)
        a = a @ params["wo"][l] + params["bo"][l]
        q = _layernorm(q + a, params["g1"][l], params["bt1"][l])
        h = jax.nn.relu(q @ params["w1"][l] + params["bf1"][l])
        h = h @ params["w2"][l] + params["bf2"][l]
        q = _layernorm(q + h, params["g2"][l], params["bt2"][l])
    y = q.reshape(B, NUM_CLASSES * D) @ params["wh1"] + params["bh1"]
    return y @ params["wh2"] + params["bh2"]


def init_params(key):
    ks = jax.random.split(key, 16)

    def nrm(k, shape, std=0.05):
        return (std * jax.random.normal(k, shape)).astype(jnp.float32)

    D, F, C, NL = D_MODEL, D_FFN, NUM_CLASSES, N_LAYERS
    return {
        "q0":  nrm(ks[0], (C, D)),
        # attention projections (pre-transposed to (in, out))
        "wq":  nrm(ks[1], (NL, D, D)),
        "bq":  nrm(ks[2], (NL, 1, D), 0.01),
        "wk":  nrm(ks[3], (NL, D, D)),
        "bk":  nrm(ks[4], (NL, 1, D), 0.01),
        "wv":  nrm(ks[5], (NL, D, D)),
        "bv":  nrm(ks[6], (NL, 1, D), 0.01),
        "wo":  nrm(ks[7], (NL, D, D)),
        "bo":  nrm(ks[8], (NL, 1, D), 0.01),
        # LayerNorms
        "g1":  jnp.ones((NL, 1, D), jnp.float32),
        "bt1": jnp.zeros((NL, 1, D), jnp.float32),
        "g2":  jnp.ones((NL, 1, D), jnp.float32),
        "bt2": jnp.zeros((NL, 1, D), jnp.float32),
        # FFN
        "w1":  nrm(ks[9], (NL, D, F)),
        "bf1": nrm(ks[10], (NL, 1, F), 0.01),
        "w2":  nrm(ks[11], (NL, F, D)),
        "bf2": nrm(ks[12], (NL, 1, D), 0.01),
        # head: Linear(C*D, D), Linear(D, C)   (normal_init mean=0 std=0.01)
        "wh1": nrm(ks[13], (C * D, D), 0.01),
        "bh1": jnp.zeros((1, D), jnp.float32),
        "wh2": nrm(ks[14], (D, C), 0.01),
        "bh2": jnp.zeros((1, C), jnp.float32),
    }


if __name__ == "__main__":
    key = jax.random.PRNGKey(0)
    k_in, k_par = jax.random.split(key)
    kf = jax.random.split(k_in, 5)
    B = 2
    # 5 input feature maps (NCHW); only PROJ_IDXS=(2,3,4) are used, and those
    # carry d_model channels (as produced by the MCTrans encoder).
    inputs = [
        jax.random.normal(kf[0], (B, 16, 32, 32), jnp.float32),   # unused
        jax.random.normal(kf[1], (B, 16, 16, 16), jnp.float32),   # unused
        jax.random.normal(kf[2], (B, D_MODEL, 8, 8), jnp.float32),
        jax.random.normal(kf[3], (B, D_MODEL, 4, 4), jnp.float32),
        jax.random.normal(kf[4], (B, D_MODEL, 2, 2), jnp.float32),
    ]
    params = init_params(k_par)
    packed = pack_params(params)      # one-time packing, NOT in the per-call path

    logits = jax.block_until_ready(mctrans_aux_head_pallas(inputs, packed))
    ref = jax.block_until_ready(mctrans_aux_head_reference(inputs, params))

    assert logits.shape == (B, NUM_CLASSES), logits.shape
    # tolerance covers the approx EUP reciprocal in the softmax plus the fused
    # head / reordered-accumulation fp differences.
    assert jnp.allclose(logits, ref, atol=3e-4, rtol=3e-4), (logits, ref)

    print("KERNEL_OK")
</pallas_src>

<mosaic_0001>
module attributes {stable_mosaic.version = 11 : i64} {
  func.func @_ca_head_kernel(%arg0: memref<2x32x84xf32, #tpu.memory_space<vmem>>, %arg1: memref<32x35xf32, #tpu.memory_space<vmem>>, %arg2: memref<128x33xf32, #tpu.memory_space<vmem>>, %arg3: memref<2x128x32xf32, #tpu.memory_space<vmem>>, %arg4: memref<2x32x64xf32, #tpu.memory_space<vmem>>, %arg5: memref<2x64x8xf32, #tpu.memory_space<vmem>>, %arg6: memref<2x1xf32, #tpu.memory_space<vmem>>, %arg7: memref<2x128x84xf32, #tpu.memory_space<vmem>>) attributes {dimension_semantics = [], scalar_prefetch = 0 : i64, scratch_operands = 1 : i64, tpu.core_type = #tpu.core_type<tc>} {
    %c0 = arith.constant 0 : index
    %c0_0 = arith.constant 0 : index
    %0 = vector.load %arg1[%c0, %c0_0] : memref<32x35xf32, #tpu.memory_space<vmem>>, vector<32x35xf32>
    %1 = vector.extract_strided_slice %0 {offsets = [0, 0], sizes = [32, 32], strides = [1, 1]} : vector<32x35xf32> to vector<32x32xf32>
    %2 = vector.extract_strided_slice %0 {offsets = [0, 32], sizes = [32, 1], strides = [1, 1]} : vector<32x35xf32> to vector<32x1xf32>
    %3 = vector.extract_strided_slice %0 {offsets = [0, 33], sizes = [32, 1], strides = [1, 1]} : vector<32x35xf32> to vector<32x1xf32>
    %4 = vector.extract_strided_slice %0 {offsets = [0, 34], sizes = [1, 1], strides = [1, 1]} : vector<32x35xf32> to vector<1x1xf32>
    %c0_1 = arith.constant 0 : index
    %c0_2 = arith.constant 0 : index
    %5 = vector.load %arg2[%c0_1, %c0_2] : memref<128x33xf32, #tpu.memory_space<vmem>>, vector<128x32xf32>
    %c0_3 = arith.constant 0 : index
    %c32 = arith.constant 32 : index
    %6 = vector.load %arg2[%c0_3, %c32] : memref<128x33xf32, #tpu.memory_space<vmem>>, vector<128x1xf32>
    %c0_4 = arith.constant 0 : index
    %c0_5 = arith.constant 0 : index
    %c0_6 = arith.constant 0 : index
    %7 = vector.load %arg0[%c0_4, %c0_5, %c0_6] : memref<2x32x84xf32, #tpu.memory_space<vmem>>, vector<1x32x84xf32>
    %8 = vector.shape_cast %7 : vector<1x32x84xf32> to vector<32x84xf32>
    %cst = arith.constant dense<0.000000e+00> : vector<128x84xf32>
    %9 = tpu.matmul %5, %8, %cst {dimension_numbers = #tpu.dot_dimension_numbers<[1], [0], [0], [1], [0, 0, 1, 1], [], []>} : vector<128x32xf32>, vector<32x84xf32>, vector<128x84xf32> -> vector<128x84xf32>
    %10 = vector.broadcast %6 : vector<128x1xf32> to vector<128x84xf32>
    %11 = arith.addf %9, %10 : vector<128x84xf32>
    %c0_7 = arith.constant 0 : index
    %c0_8 = arith.constant 0 : index
    %c0_9 = arith.constant 0 : index
    %12 = vector.load %arg7[%c0_7, %c0_8, %c0_9] : memref<2x128x84xf32, #tpu.memory_space<vmem>>, vector<1x128x84xf32>
    %13 = vector.shape_cast %12 : vector<1x128x84xf32> to vector<128x84xf32>
    %14 = vector.shape_cast %11 : vector<128x84xf32> to vector<1x128x84xf32>
    tpu.vector_store %arg7[%c0_7, %c0_8, %c0_9], %14 {strides = array<i32>} : memref<2x128x84xf32, #tpu.memory_space<vmem>>, vector<1x128x84xf32>,
    %c1 = arith.constant 1 : index
    %c0_10 = arith.constant 0 : index
    %c0_11 = arith.constant 0 : index
    %15 = vector.load %arg0[%c1, %c0_10, %c0_11] : memref<2x32x84xf32, #tpu.memory_space<vmem>>, vector<1x32x84xf32>
    %16 = vector.shape_cast %15 : vector<1x32x84xf32> to vector<32x84xf32>
    %cst_12 = arith.constant dense<0.000000e+00> : vector<128x84xf32>
    %17 = tpu.matmul %5, %16, %cst_12 {dimension_numbers = #tpu.dot_dimension_numbers<[1], [0], [0], [1], [0, 0, 1, 1], [], []>} : vector<128x32xf32>, vector<32x84xf32>, vector<128x84xf32> -> vector<128x84xf32>
    %18 = vector.broadcast %6 : vector<128x1xf32> to vector<128x84xf32>
    %19 = arith.addf %17, %18 : vector<128x84xf32>
    %c1_13 = arith.constant 1 : index
    %c0_14 = arith.constant 0 : index
    %c0_15 = arith.constant 0 : index
    %20 = vector.load %arg7[%c1_13, %c0_14, %c0_15] : memref<2x128x84xf32, #tpu.memory_space<vmem>>, vector<1x128x84xf32>
    %21 = vector.shape_cast %20 : vector<1x128x84xf32> to vector<128x84xf32>
    %22 = vector.shape_cast %19 : vector<128x84xf32> to vector<1x128x84xf32>
    tpu.vector_store %arg7[%c1_13, %c0_14, %c0_15], %22 {strides = array<i32>} : memref<2x128x84xf32, #tpu.memory_space<vmem>>, vector<1x128x84xf32>,
    %23 = vector.shape_cast %2 : vector<32x1xf32> to vector<32x1xf32>
    %24 = vector.broadcast %23 : vector<32x1xf32> to vector<32x2xf32>
    %c0_16 = arith.constant 0 : index
    %c0_17 = arith.constant 0 : index
    %c0_18 = arith.constant 0 : index
    %25 = vector.load %arg3[%c0_16, %c0_17, %c0_18] : memref<2x128x32xf32, #tpu.memory_space<vmem>>, vector<1x128x32xf32>
    %26 = vector.shape_cast %25 : vector<1x128x32xf32> to vector<128x32xf32>
    %27 = vector.extract_strided_slice %26 {offsets = [0, 0], sizes = [32, 32], strides = [1, 1]} : vector<128x32xf32> to vector<32x32xf32>
    %28 = vector.extract_strided_slice %26 {offsets = [32, 0], sizes = [32, 32], strides = [1, 1]} : vector<128x32xf32> to vector<32x32xf32>
    %29 = vector.extract_strided_slice %26 {offsets = [64, 0], sizes = [64, 32], strides = [1, 1]} : vector<128x32xf32> to vector<64x32xf32>
    %c0_19 = arith.constant 0 : index
    %c0_20 = arith.constant 0 : index
    %c0_21 = arith.constant 0 : index
    %30 = vector.load %arg4[%c0_19, %c0_20, %c0_21] : memref<2x32x64xf32, #tpu.memory_space<vmem>>, vector<1x32x64xf32>
    %31 = vector.shape_cast %30 : vector<1x32x64xf32> to vector<32x64xf32>
    %c0_22 = arith.constant 0 : index
    %c0_23 = arith.constant 0 : index
    %c0_24 = arith.constant 0 : index
    %32 = vector.load %arg5[%c0_22, %c0_23, %c0_24] : memref<2x64x8xf32, #tpu.memory_space<vmem>>, vector<1x64x8xf32>
    %33 = vector.shape_cast %32 : vector<1x64x8xf32> to vector<64x8xf32>
    %34 = vector.extract_strided_slice %33 {offsets = [0, 0], sizes = [32, 1], strides = [1, 1]} : vector<64x8xf32> to vector<32x1xf32>
    %35 = vector.extract_strided_slice %33 {offsets = [0, 1], sizes = [32, 1], strides = [1, 1]} : vector<64x8xf32> to vector<32x1xf32>
    %36 = vector.extract_strided_slice %33 {offsets = [0, 2], sizes = [32, 1], strides = [1, 1]} : vector<64x8xf32> to vector<32x1xf32>
    %37 = vector.extract_strided_slice %33 {offsets = [0, 3], sizes = [32, 1], strides = [1, 1]} : vector<64x8xf32> to vector<32x1xf32>
    %38 = vector.extract_strided_slice %33 {offsets = [0, 4], sizes = [32, 1], strides = [1, 1]} : vector<64x8xf32> to vector<32x1xf32>
    %39 = vector.extract_strided_slice %33 {offsets = [0, 5], sizes = [32, 1], strides = [1, 1]} : vector<64x8xf32> to vector<32x1xf32>
    %40 = vector.extract_strided_slice %33 {offsets = [0, 6], sizes = [32, 1], strides = [1, 1]} : vector<64x8xf32> to vector<32x1xf32>
    %41 = vector.extract_strided_slice %33 {offsets = [0, 7], sizes = [64, 1], strides = [1, 1]} : vector<64x8xf32> to vector<64x1xf32>
    %cst_25 = arith.constant dense<0.000000e+00> : vector<32x2xf32>
    %42 = tpu.matmul %27, %24, %cst_25 {dimension_numbers = #tpu.dot_dimension_numbers<[1], [0], [0], [1], [0, 0, 1, 1], [], []>} : vector<32x32xf32>, vector<32x2xf32>, vector<32x2xf32> -> vector<32x2xf32>
    %43 = vector.broadcast %34 : vector<32x1xf32> to vector<32x2xf32>
    %44 = arith.addf %42, %43 : vector<32x2xf32>
    %c0_26 = arith.constant 0 : index
    %c0_27 = arith.constant 0 : index
    %c0_28 = arith.constant 0 : index
    %45 = vector.load %arg7[%c0_26, %c0_27, %c0_28] : memref<2x128x84xf32, #tpu.memory_space<vmem>>, vector<1x32x84xf32>
    %46 = vector.shape_cast %45 : vector<1x32x84xf32> to vector<32x84xf32>
    %c0_29 = arith.constant 0 : index
    %c32_30 = arith.constant 32 : index
    %c0_31 = arith.constant 0 : index
    %47 = vector.load %arg7[%c0_29, %c32_30, %c0_31] : memref<2x128x84xf32, #tpu.memory_space<vmem>>, vector<1x32x84xf32>
    %48 = vector.shape_cast %47 : vector<1x32x84xf32> to vector<32x84xf32>
    %49 = vector.extract_strided_slice %44 {offsets = [0, 0], sizes = [32, 1], strides = [1, 1]} : vector<32x2xf32> to vector<32x1xf32>
    %50 = vector.broadcast %49 : vector<32x1xf32> to vector<32x84xf32>
    %51 = arith.mulf %46, %50 : vector<32x84xf32>
    %cst_32 = arith.constant dense<0.000000e+00> : vector<32x84xf32>
    %52 = tpu.matmul %1, %51, %cst_32 {dimension_numbers = #tpu.dot_dimension_numbers<[1], [0], [0], [1], [0, 0, 1, 1], [], []>} : vector<32x32xf32>, vector<32x84xf32>, vector<32x84xf32> -> vector<32x84xf32>
    %cst_33 = arith.constant dense<0xFF800000> : vector<32xf32>
    %53 = vector.multi_reduction <maximumf>, %52, %cst_33 [1] : vector<32x84xf32> to vector<32xf32>
    %54 = vector.shape_cast %53 : vector<32xf32> to vector<32x1xf32>
    %55 = vector.broadcast %54 : vector<32x1xf32> to vector<32x84xf32>
    %56 = arith.subf %52, %55 : vector<32x84xf32>
    %57 = math.exp %56 : vector<32x84xf32>
    %cst_34 = arith.constant dense<0.000000e+00> : vector<32xf32>
    %58 = vector.multi_reduction <add>, %57, %cst_34 [1] : vector<32x84xf32> to vector<32xf32>
    %59 = vector.shape_cast %58 : vector<32xf32> to vector<32x1xf32>
    %60 = tpu.reciprocal %59 {approx = true} : vector<32x1xf32> -> vector<32x1xf32>
    %61 = vector.broadcast %60 : vector<32x1xf32> to vector<32x84xf32>
    %62 = arith.mulf %57, %61 : vector<32x84xf32>
    %63 = arith.mulf %62, %48 : vector<32x84xf32>
    %cst_35 = arith.constant dense<0.000000e+00> : vector<32xf32>
    %64 = vector.multi_reduction <add>, %63, %cst_35 [1] : vector<32x84xf32> to vector<32xf32>
    %65 = vector.shape_cast %64 : vector<32xf32> to vector<32x1xf32>
    %c1_36 = arith.constant 1 : index
    %c0_37 = arith.constant 0 : index
    %c0_38 = arith.constant 0 : index
    %66 = vector.load %arg7[%c1_36, %c0_37, %c0_38] : memref<2x128x84xf32, #tpu.memory_space<vmem>>, vector<1x32x84xf32>
    %67 = vector.shape_cast %66 : vector<1x32x84xf32> to vector<32x84xf32>
    %c1_39 = arith.constant 1 : index
    %c32_40 = arith.constant 32 : index
    %c0_41 = arith.constant 0 : index
    %68 = vector.load %arg7[%c1_39, %c32_40, %c0_41] : memref<2x128x84xf32, #tpu.memory_space<vmem>>, vector<1x32x84xf32>
    %69 = vector.shape_cast %68 : vector<1x32x84xf32> to vector<32x84xf32>
    %70 = vector.extract_strided_slice %44 {offsets = [0, 1], sizes = [32, 1], strides = [1, 1]} : vector<32x2xf32> to vector<32x1xf32>
    %71 = vector.broadcast %70 : vector<32x1xf32> to vector<32x84xf32>
    %72 = arith.mulf %67, %71 : vector<32x84xf32>
    %cst_42 = arith.constant dense<0.000000e+00> : vector<32x84xf32>
    %73 = tpu.matmul %1, %72, %cst_42 {dimension_numbers = #tpu.dot_dimension_numbers<[1], [0], [0], [1], [0, 0, 1, 1], [], []>} : vector<32x32xf32>, vector<32x84xf32>, vector<32x84xf32> -> vector<32x84xf32>
    %cst_43 = arith.constant dense<0xFF800000> : vector<32xf32>
    %74 = vector.multi_reduction <maximumf>, %73, %cst_43 [1] : vector<32x84xf32> to vector<32xf32>
    %75 = vector.shape_cast %74 : vector<32xf32> to vector<32x1xf32>
    %76 = vector.broadcast %75 : vector<32x1xf32> to vector<32x84xf32>
    %77 = arith.subf %73, %76 : vector<32x84xf32>
    %78 = math.exp %77 : vector<32x84xf32>
    %cst_44 = arith.constant dense<0.000000e+00> : vector<32xf32>
    %79 = vector.multi_reduction <add>, %78, %cst_44 [1] : vector<32x84xf32> to vector<32xf32>
    %80 = vector.shape_cast %79 : vector<32xf32> to vector<32x1xf32>
    %81 = tpu.reciprocal %80 {approx = true} : vector<32x1xf32> -> vector<32x1xf32>
    %82 = vector.broadcast %81 : vector<32x1xf32> to vector<32x84xf32>
    %83 = arith.mulf %78, %82 : vector<32x84xf32>
    %84 = arith.mulf %83, %69 : vector<32x84xf32>
    %cst_45 = arith.constant dense<0.000000e+00> : vector<32xf32>
    %85 = vector.multi_reduction <add>, %84, %cst_45 [1] : vector<32x84xf32> to vector<32xf32>
    %86 = vector.shape_cast %85 : vector<32xf32> to vector<32x1xf32>
    %87 = tpu.concatenate %65, %86 in 1 : vector<32x1xf32>, vector<32x1xf32> -> vector<32x2xf32>
    %cst_46 = arith.constant dense<0.000000e+00> : vector<32x2xf32>
    %88 = tpu.matmul %28, %87, %cst_46 {dimension_numbers = #tpu.dot_dimension_numbers<[1], [0], [0], [1], [0, 0, 1, 1], [], []>} : vector<32x32xf32>, vector<32x2xf32>, vector<32x2xf32> -> vector<32x2xf32>
    %89 = vector.broadcast %35 : vector<32x1xf32> to vector<32x2xf32>
    %90 = arith.addf %88, %89 : vector<32x2xf32>
    %91 = arith.addf %24, %90 : vector<32x2xf32>
    %cst_47 = arith.constant dense<0.000000e+00> : vector<2xf32>
    %92 = vector.multi_reduction <add>, %91, %cst_47 [0] : vector<32x2xf32> to vector<2xf32>
    %93 = vector.shape_cast %92 : vector<2xf32> to vector<1x2xf32>
    %cst_48 = arith.constant 3.200000e+01 : f32
    %94 = vector.broadcast %cst_48 : f32 to vector<1x2xf32>
    %95 = arith.divf %93, %94 : vector<1x2xf32>
    %96 = vector.broadcast %95 : vector<1x2xf32> to vector<32x2xf32>
    %97 = arith.subf %91, %96 : vector<32x2xf32>
    %98 = arith.mulf %97, %97 : vector<32x2xf32>
    %cst_49 = arith.constant dense<0.000000e+00> : vector<2xf32>
    %99 = vector.multi_reduction <add>, %98, %cst_49 [0] : vector<32x2xf32> to vector<2xf32>
    %100 = vector.shape_cast %99 : vector<2xf32> to vector<1x2xf32>
    %cst_50 = arith.constant 3.200000e+01 : f32
    %101 = vector.broadcast %cst_50 : f32 to vector<1x2xf32>
    %102 = arith.divf %100, %101 : vector<1x2xf32>
    %103 = vector.broadcast %95 : vector<1x2xf32> to vector<32x2xf32>
    %104 = arith.subf %91, %103 : vector<32x2xf32>
    %cst_51 = arith.constant 9.99999974E-6 : f32
    %105 = vector.broadcast %cst_51 : f32 to vector<1x2xf32>
    %106 = arith.addf %102, %105 : vector<1x2xf32>
    %107 = math.rsqrt %106 : vector<1x2xf32>
    %108 = vector.broadcast %107 : vector<1x2xf32> to vector<32x2xf32>
    %109 = arith.mulf %104, %108 : vector<32x2xf32>
    %110 = vector.broadcast %36 : vector<32x1xf32> to vector<32x2xf32>
    %111 = arith.mulf %109, %110 : vector<32x2xf32>
    %112 = vector.broadcast %37 : vector<32x1xf32> to vector<32x2xf32>
    %113 = arith.addf %111, %112 : vector<32x2xf32>
    %cst_52 = arith.constant dense<0.000000e+00> : vector<64x2xf32>
    %114 = tpu.matmul %29, %113, %cst_52 {dimension_numbers = #tpu.dot_dimension_numbers<[1], [0], [0], [1], [0, 0, 1, 1], [], []>} : vector<64x32xf32>, vector<32x2xf32>, vector<64x2xf32> -> vector<64x2xf32>
    %115 = vector.broadcast %41 : vector<64x1xf32> to vector<64x2xf32>
    %116 = arith.addf %114, %115 : vector<64x2xf32>
    %cst_53 = arith.constant 0.000000e+00 : f32
    %117 = vector.broadcast %cst_53 : f32 to vector<64x2xf32>
    %118 = arith.maximumf %116, %117 : vector<64x2xf32>
    %cst_54 = arith.constant dense<0.000000e+00> : vector<32x2xf32>
    %119 = tpu.matmul %31, %118, %cst_54 {dimension_numbers = #tpu.dot_dimension_numbers<[1], [0], [0], [1], [0, 0, 1, 1], [], []>} : vector<32x64xf32>, vector<64x2xf32>, vector<32x2xf32> -> vector<32x2xf32>
    %120 = vector.broadcast %38 : vector<32x1xf32> to vector<32x2xf32>
    %121 = arith.addf %119, %120 : vector<32x2xf32>
    %122 = arith.addf %113, %121 : vector<32x2xf32>
    %cst_55 = arith.constant dense<0.000000e+00> : vector<2xf32>
    %123 = vector.multi_reduction <add>, %122, %cst_55 [0] : vector<32x2xf32> to vector<2xf32>
    %124 = vector.shape_cast %123 : vector<2xf32> to vector<1x2xf32>
    %cst_56 = arith.constant 3.200000e+01 : f32
    %125 = vector.broadcast %cst_56 : f32 to vector<1x2xf32>
    %126 = arith.divf %124, %125 : vector<1x2xf32>
    %127 = vector.broadcast %126 : vector<1x2xf32> to vector<32x2xf32>
    %128 = arith.subf %122, %127 : vector<32x2xf32>
    %129 = arith.mulf %128, %128 : vector<32x2xf32>
    %cst_57 = arith.constant dense<0.000000e+00> : vector<2xf32>
    %130 = vector.multi_reduction <add>, %129, %cst_57 [0] : vector<32x2xf32> to vector<2xf32>
    %131 = vector.shape_cast %130 : vector<2xf32> to vector<1x2xf32>
    %cst_58 = arith.constant 3.200000e+01 : f32
    %132 = vector.broadcast %cst_58 : f32 to vector<1x2xf32>
    %133 = arith.divf %131, %132 : vector<1x2xf32>
    %134 = vector.broadcast %126 : vector<1x2xf32> to vector<32x2xf32>
    %135 = arith.subf %122, %134 : vector<32x2xf32>
    %cst_59 = arith.constant 9.99999974E-6 : f32
    %136 = vector.broadcast %cst_59 : f32 to vector<1x2xf32>
    %137 = arith.addf %133, %136 : vector<1x2xf32>
    %138 = math.rsqrt %137 : vector<1x2xf32>
    %139 = vector.broadcast %138 : vector<1x2xf32> to vector<32x2xf32>
    %140 = arith.mulf %135, %139 : vector<32x2xf32>
    %141 = vector.broadcast %39 : vector<32x1xf32> to vector<32x2xf32>
    %142 = arith.mulf %140, %141 : vector<32x2xf32>
    %143 = vector.broadcast %40 : vector<32x1xf32> to vector<32x2xf32>
    %144 = arith.addf %142, %143 : vector<32x2xf32>
    %c1_60 = arith.constant 1 : index
    %c0_61 = arith.constant 0 : index
    %c0_62 = arith.constant 0 : index
    %145 = vector.load %arg3[%c1_60, %c0_61, %c0_62] : memref<2x128x32xf32, #tpu.memory_space<vmem>>, vector<1x128x32xf32>
    %146 = vector.shape_cast %145 : vector<1x128x32xf32> to vector<128x32xf32>
    %147 = vector.extract_strided_slice %146 {offsets = [0, 0], sizes = [32, 32], strides = [1, 1]} : vector<128x32xf32> to vector<32x32xf32>
    %148 = vector.extract_strided_slice %146 {offsets = [32, 0], sizes = [32, 32], strides = [1, 1]} : vector<128x32xf32> to vector<32x32xf32>
    %149 = vector.extract_strided_slice %146 {offsets = [64, 0], sizes = [64, 32], strides = [1, 1]} : vector<128x32xf32> to vector<64x32xf32>
    %c1_63 = arith.constant 1 : index
    %c0_64 = arith.constant 0 : index
    %c0_65 = arith.constant 0 : index
    %150 = vector.load %arg4[%c1_63, %c0_64, %c0_65] : memref<2x32x64xf32, #tpu.memory_space<vmem>>, vector<1x32x64xf32>
    %151 = vector.shape_cast %150 : vector<1x32x64xf32> to vector<32x64xf32>
    %c1_66 = arith.constant 1 : index
    %c0_67 = arith.constant 0 : index
    %c0_68 = arith.constant 0 : index
    %152 = vector.load %arg5[%c1_66, %c0_67, %c0_68] : memref<2x64x8xf32, #tpu.memory_space<vmem>>, vector<1x64x8xf32>
    %153 = vector.shape_cast %152 : vector<1x64x8xf32> to vector<64x8xf32>
    %154 = vector.extract_strided_slice %153 {offsets = [0, 0], sizes = [32, 1], strides = [1, 1]} : vector<64x8xf32> to vector<32x1xf32>
    %155 = vector.extract_strided_slice %153 {offsets = [0, 1], sizes = [32, 1], strides = [1, 1]} : vector<64x8xf32> to vector<32x1xf32>
    %156 = vector.extract_strided_slice %153 {offsets = [0, 2], sizes = [32, 1], strides = [1, 1]} : vector<64x8xf32> to vector<32x1xf32>
    %157 = vector.extract_strided_slice %153 {offsets = [0, 3], sizes = [32, 1], strides = [1, 1]} : vector<64x8xf32> to vector<32x1xf32>
    %158 = vector.extract_strided_slice %153 {offsets = [0, 4], sizes = [32, 1], strides = [1, 1]} : vector<64x8xf32> to vector<32x1xf32>
    %159 = vector.extract_strided_slice %153 {offsets = [0, 5], sizes = [32, 1], strides = [1, 1]} : vector<64x8xf32> to vector<32x1xf32>
    %160 = vector.extract_strided_slice %153 {offsets = [0, 6], sizes = [32, 1], strides = [1, 1]} : vector<64x8xf32> to vector<32x1xf32>
    %161 = vector.extract_strided_slice %153 {offsets = [0, 7], sizes = [64, 1], strides = [1, 1]} : vector<64x8xf32> to vector<64x1xf32>
    %cst_69 = arith.constant dense<0.000000e+00> : vector<32x2xf32>
    %162 = tpu.matmul %147, %144, %cst_69 {dimension_numbers = #tpu.dot_dimension_numbers<[1], [0], [0], [1], [0, 0, 1, 1], [], []>} : vector<32x32xf32>, vector<32x2xf32>, vector<32x2xf32> -> vector<32x2xf32>
    %163 = vector.broadcast %154 : vector<32x1xf32> to vector<32x2xf32>
    %164 = arith.addf %162, %163 : vector<32x2xf32>
    %c0_70 = arith.constant 0 : index
    %c64 = arith.constant 64 : index
    %c0_71 = arith.constant 0 : index
    %165 = vector.load %arg7[%c0_70, %c64, %c0_71] : memref<2x128x84xf32, #tpu.memory_space<vmem>>, vector<1x32x84xf32>
    %166 = vector.shape_cast %165 : vector<1x32x84xf32> to vector<32x84xf32>
    %c0_72 = arith.constant 0 : index
    %c96 = arith.constant 96 : index
    %c0_73 = arith.constant 0 : index
    %167 = vector.load %arg7[%c0_72, %c96, %c0_73] : memref<2x128x84xf32, #tpu.memory_space<vmem>>, vector<1x32x84xf32>
    %168 = vector.shape_cast %167 : vector<1x32x84xf32> to vector<32x84xf32>
    %169 = vector.extract_strided_slice %164 {offsets = [0, 0], sizes = [32, 1], strides = [1, 1]} : vector<32x2xf32> to vector<32x1xf32>
    %170 = vector.broadcast %169 : vector<32x1xf32> to vector<32x84xf32>
    %171 = arith.mulf %166, %170 : vector<32x84xf32>
    %cst_74 = arith.constant dense<0.000000e+00> : vector<32x84xf32>
    %172 = tpu.matmul %1, %171, %cst_74 {dimension_numbers = #tpu.dot_dimension_numbers<[1], [0], [0], [1], [0, 0, 1, 1], [], []>} : vector<32x32xf32>, vector<32x84xf32>, vector<32x84xf32> -> vector<32x84xf32>
    %cst_75 = arith.constant dense<0xFF800000> : vector<32xf32>
    %173 = vector.multi_reduction <maximumf>, %172, %cst_75 [1] : vector<32x84xf32> to vector<32xf32>
    %174 = vector.shape_cast %173 : vector<32xf32> to vector<32x1xf32>
    %175 = vector.broadcast %174 : vector<32x1xf32> to vector<32x84xf32>
    %176 = arith.subf %172, %175 : vector<32x84xf32>
    %177 = math.exp %176 : vector<32x84xf32>
    %cst_76 = arith.constant dense<0.000000e+00> : vector<32xf32>
    %178 = vector.multi_reduction <add>, %177, %cst_76 [1] : vector<32x84xf32> to vector<32xf32>
    %179 = vector.shape_cast %178 : vector<32xf32> to vector<32x1xf32>
    %180 = tpu.reciprocal %179 {approx = true} : vector<32x1xf32> -> vector<32x1xf32>
    %181 = vector.broadcast %180 : vector<32x1xf32> to vector<32x84xf32>
    %182 = arith.mulf %177, %181 : vector<32x84xf32>
    %183 = arith.mulf %182, %168 : vector<32x84xf32>
    %cst_77 = arith.constant dense<0.000000e+00> : vector<32xf32>
    %184 = vector.multi_reduction <add>, %183, %cst_77 [1] : vector<32x84xf32> to vector<32xf32>
    %185 = vector.shape_cast %184 : vector<32xf32> to vector<32x1xf32>
    %c1_78 = arith.constant 1 : index
    %c64_79 = arith.constant 64 : index
    %c0_80 = arith.constant 0 : index
    %186 = vector.load %arg7[%c1_78, %c64_79, %c0_80] : memref<2x128x84xf32, #tpu.memory_space<vmem>>, vector<1x32x84xf32>
    %187 = vector.shape_cast %186 : vector<1x32x84xf32> to vector<32x84xf32>
    %c1_81 = arith.constant 1 : index
    %c96_82 = arith.constant 96 : index
    %c0_83 = arith.constant 0 : index
    %188 = vector.load %arg7[%c1_81, %c96_82, %c0_83] : memref<2x128x84xf32, #tpu.memory_space<vmem>>, vector<1x32x84xf32>
    %189 = vector.shape_cast %188 : vector<1x32x84xf32> to vector<32x84xf32>
    %190 = vector.extract_strided_slice %164 {offsets = [0, 1], sizes = [32, 1], strides = [1, 1]} : vector<32x2xf32> to vector<32x1xf32>
    %191 = vector.broadcast %190 : vector<32x1xf32> to vector<32x84xf32>
    %192 = arith.mulf %187, %191 : vector<32x84xf32>
    %cst_84 = arith.constant dense<0.000000e+00> : vector<32x84xf32>
    %193 = tpu.matmul %1, %192, %cst_84 {dimension_numbers = #tpu.dot_dimension_numbers<[1], [0], [0], [1], [0, 0, 1, 1], [], []>} : vector<32x32xf32>, vector<32x84xf32>, vector<32x84xf32> -> vector<32x84xf32>
    %cst_85 = arith.constant dense<0xFF800000> : vector<32xf32>
    %194 = vector.multi_reduction <maximumf>, %193, %cst_85 [1] : vector<32x84xf32> to vector<32xf32>
    %195 = vector.shape_cast %194 : vector<32xf32> to vector<32x1xf32>
    %196 = vector.broadcast %195 : vector<32x1xf32> to vector<32x84xf32>
    %197 = arith.subf %193, %196 : vector<32x84xf32>
    %198 = math.exp %197 : vector<32x84xf32>
    %cst_86 = arith.constant dense<0.000000e+00> : vector<32xf32>
    %199 = vector.multi_reduction <add>, %198, %cst_86 [1] : vector<32x84xf32> to vector<32xf32>
    %200 = vector.shape_cast %199 : vector<32xf32> to vector<32x1xf32>
    %201 = tpu.reciprocal %200 {approx = true} : vector<32x1xf32> -> vector<32x1xf32>
    %202 = vector.broadcast %201 : vector<32x1xf32> to vector<32x84xf32>
    %203 = arith.mulf %198, %202 : vector<32x84xf32>
    %204 = arith.mulf %203, %189 : vector<32x84xf32>
    %cst_87 = arith.constant dense<0.000000e+00> : vector<32xf32>
    %205 = vector.multi_reduction <add>, %204, %cst_87 [1] : vector<32x84xf32> to vector<32xf32>
    %206 = vector.shape_cast %205 : vector<32xf32> to vector<32x1xf32>
    %207 = tpu.concatenate %185, %206 in 1 : vector<32x1xf32>, vector<32x1xf32> -> vector<32x2xf32>
    %cst_88 = arith.constant dense<0.000000e+00> : vector<32x2xf32>
    %208 = tpu.matmul %148, %207, %cst_88 {dimension_numbers = #tpu.dot_dimension_numbers<[1], [0], [0], [1], [0, 0, 1, 1], [], []>} : vector<32x32xf32>, vector<32x2xf32>, vector<32x2xf32> -> vector<32x2xf32>
    %209 = vector.broadcast %155 : vector<32x1xf32> to vector<32x2xf32>
    %210 = arith.addf %208, %209 : vector<32x2xf32>
    %211 = arith.addf %144, %210 : vector<32x2xf32>
    %cst_89 = arith.constant dense<0.000000e+00> : vector<2xf32>
    %212 = vector.multi_reduction <add>, %211, %cst_89 [0] : vector<32x2xf32> to vector<2xf32>
    %213 = vector.shape_cast %212 : vector<2xf32> to vector<1x2xf32>
    %cst_90 = arith.constant 3.200000e+01 : f32
    %214 = vector.broadcast %cst_90 : f32 to vector<1x2xf32>
    %215 = arith.divf %213, %214 : vector<1x2xf32>
    %216 = vector.broadcast %215 : vector<1x2xf32> to vector<32x2xf32>
    %217 = arith.subf %211, %216 : vector<32x2xf32>
    %218 = arith.mulf %217, %217 : vector<32x2xf32>
    %cst_91 = arith.constant dense<0.000000e+00> : vector<2xf32>
    %219 = vector.multi_reduction <add>, %218, %cst_91 [0] : vector<32x2xf32> to vector<2xf32>
    %220 = vector.shape_cast %219 : vector<2xf32> to vector<1x2xf32>
    %cst_92 = arith.constant 3.200000e+01 : f32
    %221 = vector.broadcast %cst_92 : f32 to vector<1x2xf32>
    %222 = arith.divf %220, %221 : vector<1x2xf32>
    %223 = vector.broadcast %215 : vector<1x2xf32> to vector<32x2xf32>
    %224 = arith.subf %211, %223 : vector<32x2xf32>
    %cst_93 = arith.constant 9.99999974E-6 : f32
    %225 = vector.broadcast %cst_93 : f32 to vector<1x2xf32>
    %226 = arith.addf %222, %225 : vector<1x2xf32>
    %227 = math.rsqrt %226 : vector<1x2xf32>
    %228 = vector.broadcast %227 : vector<1x2xf32> to vector<32x2xf32>
    %229 = arith.mulf %224, %228 : vector<32x2xf32>
    %230 = vector.broadcast %156 : vector<32x1xf32> to vector<32x2xf32>
    %231 = arith.mulf %229, %230 : vector<32x2xf32>
    %232 = vector.broadcast %157 : vector<32x1xf32> to vector<32x2xf32>
    %233 = arith.addf %231, %232 : vector<32x2xf32>
    %cst_94 = arith.constant dense<0.000000e+00> : vector<64x2xf32>
    %234 = tpu.matmul %149, %233, %cst_94 {dimension_numbers = #tpu.dot_dimension_numbers<[1], [0], [0], [1], [0, 0, 1, 1], [], []>} : vector<64x32xf32>, vector<32x2xf32>, vector<64x2xf32> -> vector<64x2xf32>
    %235 = vector.broadcast %161 : vector<64x1xf32> to vector<64x2xf32>
    %236 = arith.addf %234, %235 : vector<64x2xf32>
    %cst_95 = arith.constant 0.000000e+00 : f32
    %237 = vector.broadcast %cst_95 : f32 to vector<64x2xf32>
    %238 = arith.maximumf %236, %237 : vector<64x2xf32>
    %cst_96 = arith.constant dense<0.000000e+00> : vector<32x2xf32>
    %239 = tpu.matmul %151, %238, %cst_96 {dimension_numbers = #tpu.dot_dimension_numbers<[1], [0], [0], [1], [0, 0, 1, 1], [], []>} : vector<32x64xf32>, vector<64x2xf32>, vector<32x2xf32> -> vector<32x2xf32>
    %240 = vector.broadcast %158 : vector<32x1xf32> to vector<32x2xf32>
    %241 = arith.addf %239, %240 : vector<32x2xf32>
    %242 = arith.addf %233, %241 : vector<32x2xf32>
    %cst_97 = arith.constant dense<0.000000e+00> : vector<2xf32>
    %243 = vector.multi_reduction <add>, %242, %cst_97 [0] : vector<32x2xf32> to vector<2xf32>
    %244 = vector.shape_cast %243 : vector<2xf32> to vector<1x2xf32>
    %cst_98 = arith.constant 3.200000e+01 : f32
    %245 = vector.broadcast %cst_98 : f32 to vector<1x2xf32>
    %246 = arith.divf %244, %245 : vector<1x2xf32>
    %247 = vector.broadcast %246 : vector<1x2xf32> to vector<32x2xf32>
    %248 = arith.subf %242, %247 : vector<32x2xf32>
    %249 = arith.mulf %248, %248 : vector<32x2xf32>
    %cst_99 = arith.constant dense<0.000000e+00> : vector<2xf32>
    %250 = vector.multi_reduction <add>, %249, %cst_99 [0] : vector<32x2xf32> to vector<2xf32>
    %251 = vector.shape_cast %250 : vector<2xf32> to vector<1x2xf32>
    %cst_100 = arith.constant 3.200000e+01 : f32
    %252 = vector.broadcast %cst_100 : f32 to vector<1x2xf32>
    %253 = arith.divf %251, %252 : vector<1x2xf32>
    %254 = vector.broadcast %246 : vector<1x2xf32> to vector<32x2xf32>
    %255 = arith.subf %242, %254 : vector<32x2xf32>
    %cst_101 = arith.constant 9.99999974E-6 : f32
    %256 = vector.broadcast %cst_101 : f32 to vector<1x2xf32>
    %257 = arith.addf %253, %256 : vector<1x2xf32>
    %258 = math.rsqrt %257 : vector<1x2xf32>
    %259 = vector.broadcast %258 : vector<1x2xf32> to vector<32x2xf32>
    %260 = arith.mulf %255, %259 : vector<32x2xf32>
    %261 = vector.broadcast %159 : vector<32x1xf32> to vector<32x2xf32>
    %262 = arith.mulf %260, %261 : vector<32x2xf32>
    %263 = vector.broadcast %160 : vector<32x1xf32> to vector<32x2xf32>
    %264 = arith.addf %262, %263 : vector<32x2xf32>
    %265 = tpu.iota {dimensions = array<i32: 0>} : vector<2x2xi32>
    %266 = tpu.iota {dimensions = array<i32: 1>} : vector<2x2xi32>
    %267 = arith.cmpi eq, %265, %266 : vector<2x2xi32>
    %cst_102 = arith.constant 1.000000e+00 : f32
    %cst_103 = arith.constant 0.000000e+00 : f32
    %268 = vector.broadcast %cst_102 : f32 to vector<2x2xf32>
    %269 = vector.broadcast %cst_103 : f32 to vector<2x2xf32>
    %270 = arith.select %267, %268, %269 : vector<2x2xi1>, vector<2x2xf32>
    %cst_104 = arith.constant dense<0.000000e+00> : vector<2x32xf32>
    %271 = tpu.matmul %270, %264, %cst_104 {dimension_numbers = #tpu.dot_dimension_numbers<[1], [1], [0], [0], [0, 0, 1, 0], [], []>} : vector<2x2xf32>, vector<32x2xf32>, vector<2x32xf32> -> vector<2x32xf32>
    %cst_105 = arith.constant dense<0.000000e+00> : vector<2x1xf32>
    %272 = tpu.matmul %271, %3, %cst_105 {dimension_numbers = #tpu.dot_dimension_numbers<[1], [0], [0], [1], [0, 0, 1, 1], [], []>} : vector<2x32xf32>, vector<32x1xf32>, vector<2x1xf32> -> vector<2x1xf32>
    %273 = vector.broadcast %4 : vector<1x1xf32> to vector<2x1xf32>
    %274 = arith.addf %272, %273 : vector<2x1xf32>
    %c0_106 = arith.constant 0 : index
    %c0_107 = arith.constant 0 : index
    %275 = vector.load %arg6[%c0_106, %c0_107] : memref<2x1xf32, #tpu.memory_space<vmem>>, vector<2x1xf32>
    tpu.vector_store %arg6[%c0_106, %c0_107], %274 {strides = array<i32>} : memref<2x1xf32, #tpu.memory_space<vmem>>, vector<2x1xf32>,
    return
  }
}

</mosaic_0001>

<llo_original>
// kernel: tpu_custom_call.1
$region0: #{tpu_custom_call.1}
  #allocation0 [shape = 'u32[]', space=smem, size = 0x4, offset = 0x4, fixed_abs, tag = 'smem constant byte address 0x4 - core index']
  #allocation1 [shape = 'u32[144,128]{1,0:T(1,128)}', space=vmem, size = 0x12000, scoped, tag = 'internal scratch']
  #allocation2 [shape = 'f32[2,128,84]{2,1,0:T(8,128)}', space=vmem, size = 0x20000, scoped, tag = 'scratch operand']
  %s0 = inlined_call_operand.vmem [shape: f32[2,32,84], index: 0, kind: input, shape index: {}]
  %s1 = inlined_call_operand.vmem [shape: f32[32,35], index: 1, kind: input, shape index: {}]
  %s2 = inlined_call_operand.vmem [shape: f32[128,33], index: 2, kind: input, shape index: {}]
  %s3 = inlined_call_operand.vmem [shape: f32[2,128,32], index: 3, kind: input, shape index: {}]
  %s4 = inlined_call_operand.vmem [shape: f32[2,32,64], index: 4, kind: input, shape index: {}]
  %s5 = inlined_call_operand.vmem [shape: f32[2,64,8], index: 5, kind: input, shape index: {}]
  %s6 = inlined_call_operand.vmem [shape: f32[2,1], index: 6, kind: output, shape index: {}]
  %s7 = sld [smem:[#allocation0]]
  $region34: #{tpu_custom_call.1} parent=0
    _
  %s9 = ssub.s32 1, %s7
  %s10 = scalar_select 0, %s9, %s7
  // Predicated region
  $region2: #{tpu_custom_call.1} parent=0 // pred_check
    _
  $region3: #{tpu_custom_call.1} parent=0 // pred_check_branch
    %12 = sbr.rel (0) target = $region5
  $region4: #{tpu_custom_call.1} parent=0 // pred_region
    _
  $region5: #{tpu_custom_call.1} parent=0 // pred_fallthru
    _
  // Predicated region
  $region6: #{tpu_custom_call.1} parent=0 // pred_check
    _
  $region7: #{tpu_custom_call.1} parent=0 // pred_check_branch
    %14 = sbr.rel (0) target = $region9
  $region8: #{tpu_custom_call.1} parent=0 // pred_region
    _
  $region9: #{tpu_custom_call.1} parent=0 // pred_fallthru
    _
  // Predicated region
  $region10: #{tpu_custom_call.1} parent=0 // pred_check
    _
  $region11: #{tpu_custom_call.1} parent=0 // pred_check_branch
    %16 = sbr.rel (0) target = $region13
  $region12: #{tpu_custom_call.1} parent=0 // pred_region
    _
  $region13: #{tpu_custom_call.1} parent=0 // pred_fallthru
    _
  // Predicated region
  $region14: #{tpu_custom_call.1} parent=0 // pred_check
    _
  $region15: #{tpu_custom_call.1} parent=0 // pred_check_branch
    %18 = sbr.rel (0) target = $region17
  $region16: #{tpu_custom_call.1} parent=0 // pred_region
    _
  $region17: #{tpu_custom_call.1} parent=0 // pred_fallthru
    _
  // Predicated region
  $region18: #{tpu_custom_call.1} parent=0 // pred_check
    _
  $region19: #{tpu_custom_call.1} parent=0 // pred_check_branch
    %20 = sbr.rel (0) target = $region21
  $region20: #{tpu_custom_call.1} parent=0 // pred_region
    _
  $region21: #{tpu_custom_call.1} parent=0 // pred_fallthru
    _
  // Predicated region
  $region22: #{tpu_custom_call.1} parent=0 // pred_check
    _
  $region23: #{tpu_custom_call.1} parent=0 // pred_check_branch
    %22 = sbr.rel (0) target = $region25
  $region24: #{tpu_custom_call.1} parent=0 // pred_region
    _
  $region25: #{tpu_custom_call.1} parent=0 // pred_fallthru
    _
  %v23 = vld [vmem:[%s1] sm:$0xff]
  %v24 = vld [vmem:[%s1 + $0x8] sm:$0xff]
  %v25 = vld [vmem:[%s1 + $0x10] sm:$0xff]
  %v26 = vld [vmem:[%s1 + $0x18] sm:$0xff]
  %v27 = vld [vmem:[%s2] sm:$0xff]
  %v28 = vld [vmem:[%s2 + $0x8] sm:$0xff]
  %v29 = vld [vmem:[%s2 + $0x10] sm:$0xff]
  %v30 = vld [vmem:[%s2 + $0x18] sm:$0xff]
  %v31 = vld [vmem:[%s2 + $0x20] sm:$0xff]
  %v32 = vld [vmem:[%s2 + $0x28] sm:$0xff]
  %v33 = vld [vmem:[%s2 + $0x30] sm:$0xff]
  %v34 = vld [vmem:[%s2 + $0x38] sm:$0xff]
  %v35 = vld [vmem:[%s2 + $0x40] sm:$0xff]
  %v36 = vld [vmem:[%s2 + $0x48] sm:$0xff]
  %v37 = vld [vmem:[%s2 + $0x50] sm:$0xff]
  %v38 = vld [vmem:[%s2 + $0x58] sm:$0xff]
  %v39 = vld [vmem:[%s2 + $0x60] sm:$0xff]
  %v40 = vld [vmem:[%s2 + $0x68] sm:$0xff]
  %v41 = vld [vmem:[%s2 + $0x70] sm:$0xff]
  %v42 = vld [vmem:[%s2 + $0x78] sm:$0xff]
  %v43 = vld [vmem:[%s0] sm:$0xff]
  %v44 = vld [vmem:[%s0 + $0x8] sm:$0xff]
  %v45 = vld [vmem:[%s0 + $0x10] sm:$0xff]
  %v46 = vld [vmem:[%s0 + $0x18] sm:$0xff]
  %48 = vset.pattern.permute.xlu0 32
  %49 = vperm.xlu0 %48, %v27
  %v50 = vpop.permute.xlu0 %49
  %53 = vset.pattern.permute.xlu0 32
  %54 = vperm.xlu0 %53, %v28
  %v55 = vpop.permute.xlu0 %54
  %58 = vset.pattern.permute.xlu0 32
  %59 = vperm.xlu0 %58, %v29
  %v60 = vpop.permute.xlu0 %59
  %63 = vset.pattern.permute.xlu0 32
  %64 = vperm.xlu0 %63, %v30
  %v65 = vpop.permute.xlu0 %64
  %68 = vset.pattern.permute.xlu0 32
  %69 = vperm.xlu0 %68, %v31
  %v70 = vpop.permute.xlu0 %69
  %73 = vset.pattern.permute.xlu0 32
  %74 = vperm.xlu0 %73, %v32
  %v75 = vpop.permute.xlu0 %74
  %78 = vset.pattern.permute.xlu0 32
  %79 = vperm.xlu0 %78, %v33
  %v80 = vpop.permute.xlu0 %79
  %83 = vset.pattern.permute.xlu0 32
  %84 = vperm.xlu0 %83, %v34
  %v85 = vpop.permute.xlu0 %84
  %88 = vset.pattern.permute.xlu0 32
  %89 = vperm.xlu0 %88, %v35
  %v90 = vpop.permute.xlu0 %89
  %93 = vset.pattern.permute.xlu0 32
  %94 = vperm.xlu0 %93, %v36
  %v95 = vpop.permute.xlu0 %94
  %98 = vset.pattern.permute.xlu0 32
  %99 = vperm.xlu0 %98, %v37
  %v100 = vpop.permute.xlu0 %99
  %103 = vset.pattern.permute.xlu0 32
  %104 = vperm.xlu0 %103, %v38
  %v105 = vpop.permute.xlu0 %104
  %108 = vset.pattern.permute.xlu0 32
  %109 = vperm.xlu0 %108, %v39
  %v110 = vpop.permute.xlu0 %109
  %113 = vset.pattern.permute.xlu0 32
  %114 = vperm.xlu0 %113, %v40
  %v115 = vpop.permute.xlu0 %114
  %118 = vset.pattern.permute.xlu0 32
  %119 = vperm.xlu0 %118, %v41
  %v120 = vpop.permute.xlu0 %119
  %123 = vset.pattern.permute.xlu0 32
  %124 = vperm.xlu0 %123, %v42
  %v125 = vpop.permute.xlu0 %124
  %vm127 = vcmask 261120
  %v128 = vsel %vm127, %v27, 0
  %v130 = vsel %vm127, %v28, 0
  %v132 = vsel %vm127, %v29, 0
  %v134 = vsel %vm127, %v30, 0
  %v136 = vsel %vm127, %v31, 0
  %v138 = vsel %vm127, %v32, 0
  %v140 = vsel %vm127, %v33, 0
  %v142 = vsel %vm127, %v34, 0
  %v144 = vsel %vm127, %v35, 0
  %v146 = vsel %vm127, %v36, 0
  %v148 = vsel %vm127, %v37, 0
  %v150 = vsel %vm127, %v38, 0
  %v152 = vsel %vm127, %v39, 0
  %v154 = vsel %vm127, %v40, 0
  %v156 = vsel %vm127, %v41, 0
  %v158 = vsel %vm127, %v42, 0
  %160 = vmatprep.subr.mxu0 0.0
  %161 = vmatpush1.msra.mxu0 %v43
  %162 = vmatprep.subr.mxu0 0.0
  %163 = vmatpush1.msra.mxu0 %v44
  %164 = vmatprep.subr.mxu0 0.0
  %165 = vmatpush1.msra.mxu0 %v45
  %166 = vmatprep.subr.mxu0 0.0
  %167 = vmatpush1.msra.mxu0 %v46
  %168 = vmatprep.subr.mxu0 0.0
  %169 = vmatpush1.msra.mxu0 0.0
  %170 = vmatprep.subr.mxu0 0.0
  %171 = vmatpush1.msra.mxu0 0.0
  %172 = vmatprep.subr.mxu0 0.0
  %173 = vmatpush1.msra.mxu0 0.0
  %174 = vmatprep.subr.mxu0 0.0
  %175 = vmatpush1.msra.mxu0 0.0
  %176 = vmatprep.subr.mxu0 0.0
  %177 = vmatpush1.msra.mxu0 0.0
  %178 = vmatprep.subr.mxu0 0.0
  %179 = vmatpush1.msra.mxu0 0.0
  %180 = vmatprep.subr.mxu0 0.0
  %181 = vmatpush1.msra.mxu0 0.0
  %182 = vmatprep.subr.mxu0 0.0
  %183 = vmatpush1.msra.mxu0 0.0
  %184 = vmatprep.subr.mxu0 0.0
  %185 = vmatpush1.msra.mxu0 0.0
  %186 = vmatprep.subr.mxu0 0.0
  %187 = vmatpush1.msra.mxu0 0.0
  %188 = vmatprep.subr.mxu0 0.0
  %189 = vmatpush1.msra.mxu0 0.0
  %190 = vmatprep.subr.mxu0 0.0
  %191 = vmatpush1.msra.mxu0 0.0
  %192 = vmatprep.subr.mxu0 0.0
  %193 = vmatpush1.msra.mxu0 0.0
  %194 = vmatprep.subr.mxu0 0.0
  %195 = vmatpush1.msra.mxu0 0.0
  %196 = vmatprep.subr.mxu0 0.0
  %197 = vmatpush1.msra.mxu0 0.0
  %198 = vmatprep.subr.mxu0 0.0
  %199 = vmatpush1.msra.mxu0 0.0
  %200 = vmatprep.subr.mxu0 0.0
  %201 = vmatpush1.msra.mxu0 0.0
  %202 = vmatprep.subr.mxu0 0.0
  %203 = vmatpush1.msra.mxu0 0.0
  %204 = vmatprep.subr.mxu0 0.0
  %205 = vmatpush1.msra.mxu0 0.0
  %206 = vmatprep.subr.mxu0 0.0
  %207 = vmatpush1.msra.mxu0 0.0
  %208 = vmatprep.subr.mxu0 0.0
  %209 = vmatpush1.msra.mxu0 0.0
  %210 = vmatprep.subr.mxu0 0.0
  %211 = vmatpush1.msra.mxu0 0.0
  %212 = vmatprep.subr.mxu0 0.0
  %213 = vmatpush1.msra.mxu0 0.0
  %214 = vmatprep.subr.mxu0 0.0
  %215 = vmatpush1.msra.mxu0 0.0
  %216 = vmatprep.subr.mxu0 0.0
  %217 = vmatpush1.msra.mxu0 0.0
  %218 = vmatprep.subr.mxu0 0.0
  %219 = vmatpush1.msra.mxu0 0.0
  %220 = vmatprep.subr.mxu0 0.0
  %221 = vmatpush1.msra.mxu0 0.0
  %222 = vmatprep.subr.mxu0 0.0
  %223 = vmatpush1.msra.mxu0 0.0
  %224 = vmatprep.mubr.f32.mxu0 0.0
  %225 = vmatmul.mubr.f32.gmra.mrb[0].mxu0 %v128
  %v226 = vpop.f32.mrb[0].mxu0
  %v227 = vadd.f32 %v50, %v226
  %v228 = vpop.f32.mrb[0].mxu0
  %229 = vmatprep.mubr.f32.mxu0 0.0
  %230 = vmatmul.mubr.f32.gmra.mrb[0].mxu0 %v130
  %v231 = vpop.f32.mrb[0].mxu0
  %v232 = vadd.f32 %v55, %v231
  %v233 = vpop.f32.mrb[0].mxu0
  %234 = vmatprep.mubr.f32.mxu0 0.0
  %235 = vmatmul.mubr.f32.gmra.mrb[0].mxu0 %v132
  %v236 = vpop.f32.mrb[0].mxu0
  %v237 = vadd.f32 %v60, %v236
  %v238 = vpop.f32.mrb[0].mxu0
  %239 = vmatprep.mubr.f32.mxu0 0.0
  %240 = vmatmul.mubr.f32.gmra.mrb[0].mxu0 %v134
  %v241 = vpop.f32.mrb[0].mxu0
  %v242 = vadd.f32 %v65, %v241
  %v243 = vpop.f32.mrb[0].mxu0
  %244 = vmatprep.mubr.f32.mxu0 0.0
  %245 = vmatmul.mubr.f32.gmra.mrb[0].mxu0 %v136
  %v246 = vpop.f32.mrb[0].mxu0
  %v247 = vadd.f32 %v70, %v246
  %v248 = vpop.f32.mrb[0].mxu0
  %249 = vmatprep.mubr.f32.mxu0 0.0
  %250 = vmatmul.mubr.f32.gmra.mrb[0].mxu0 %v138
  %v251 = vpop.f32.mrb[0].mxu0
  %v252 = vadd.f32 %v75, %v251
  %v253 = vpop.f32.mrb[0].mxu0
  %254 = vmatprep.mubr.f32.mxu0 0.0
  %255 = vmatmul.mubr.f32.gmra.mrb[0].mxu0 %v140
  %v256 = vpop.f32.mrb[0].mxu0
  %v257 = vadd.f32 %v80, %v256
  %v258 = vpop.f32.mrb[0].mxu0
  %259 = vmatprep.mubr.f32.mxu0 0.0
  %260 = vmatmul.mubr.f32.gmra.mrb[0].mxu0 %v142
  %v261 = vpop.f32.mrb[0].mxu0
  %v262 = vadd.f32 %v85, %v261
  %v263 = vpop.f32.mrb[0].mxu0
  %264 = vmatprep.mubr.f32.mxu0 0.0
  %265 = vmatmul.mubr.f32.gmra.mrb[0].mxu0 %v144
  %v266 = vpop.f32.mrb[0].mxu0
  %v267 = vadd.f32 %v90, %v266
  %v268 = vpop.f32.mrb[0].mxu0
  %269 = vmatprep.mubr.f32.mxu0 0.0
  %270 = vmatmul.mubr.f32.gmra.mrb[0].mxu0 %v146
  %v271 = vpop.f32.mrb[0].mxu0
  %v272 = vadd.f32 %v95, %v271
  %v273 = vpop.f32.mrb[0].mxu0
  %274 = vmatprep.mubr.f32.mxu0 0.0
  %275 = vmatmul.mubr.f32.gmra.mrb[0].mxu0 %v148
  %v276 = vpop.f32.mrb[0].mxu0
  %v277 = vadd.f32 %v100, %v276
  %v278 = vpop.f32.mrb[0].mxu0
  %279 = vmatprep.mubr.f32.mxu0 0.0
  %280 = vmatmul.mubr.f32.gmra.mrb[0].mxu0 %v150
  %v281 = vpop.f32.mrb[0].mxu0
  %v282 = vadd.f32 %v105, %v281
  %v283 = vpop.f32.mrb[0].mxu0
  %284 = vmatprep.mubr.f32.mxu0 0.0
  %285 = vmatmul.mubr.f32.gmra.mrb[0].mxu0 %v152
  %v286 = vpop.f32.mrb[0].mxu0
  %v287 = vadd.f32 %v110, %v286
  %v288 = vpop.f32.mrb[0].mxu0
  %289 = vmatprep.mubr.f32.mxu0 0.0
  %290 = vmatmul.mubr.f32.gmra.mrb[0].mxu0 %v154
  %v291 = vpop.f32.mrb[0].mxu0
  %v292 = vadd.f32 %v115, %v291
  %v293 = vpop.f32.mrb[0].mxu0
  %294 = vmatprep.mubr.f32.mxu0 0.0
  %295 = vmatmul.mubr.f32.gmra.mrb[0].mxu0 %v156
  %v296 = vpop.f32.mrb[0].mxu0
  %v297 = vadd.f32 %v120, %v296
  %v298 = vpop.f32.mrb[0].mxu0
  %299 = vmatprep.mubr.f32.mxu0 0.0
  %300 = vmatmul.mubr.f32.gmra.mrb[0].mxu0 %v158
  %v301 = vpop.f32.mrb[0].mxu0
  %v302 = vadd.f32 %v125, %v301
  %v303 = vpop.f32.mrb[0].mxu0
  %304 = vdwg.mxu0
  %vm305 = vcmask 687104
  %306 = vst.msk [vmem:[#allocation2] sm:$0xff] %vm305, %v227
  %307 = vst.msk [vmem:[#allocation2 + $0x8] sm:$0xff] %vm305, %v232
  %308 = vst.msk [vmem:[#allocation2 + $0x10] sm:$0xff] %vm305, %v237
  %309 = vst.msk [vmem:[#allocation2 + $0x18] sm:$0xff] %vm305, %v242
  %310 = vst.msk [vmem:[#allocation2 + $0x20] sm:$0xff] %vm305, %v247
  %311 = vst.msk [vmem:[#allocation2 + $0x28] sm:$0xff] %vm305, %v252
  %312 = vst.msk [vmem:[#allocation2 + $0x30] sm:$0xff] %vm305, %v257
  %313 = vst.msk [vmem:[#allocation2 + $0x38] sm:$0xff] %vm305, %v262
  %314 = vst.msk [vmem:[#allocation2 + $0x40] sm:$0xff] %vm305, %v267
  %315 = vst.msk [vmem:[#allocation2 + $0x48] sm:$0xff] %vm305, %v272
  %316 = vst.msk [vmem:[#allocation2 + $0x50] sm:$0xff] %vm305, %v277
  %317 = vst.msk [vmem:[#allocation2 + $0x58] sm:$0xff] %vm305, %v282
  %318 = vst.msk [vmem:[#allocation2 + $0x60] sm:$0xff] %vm305, %v287
  %319 = vst.msk [vmem:[#allocation2 + $0x68] sm:$0xff] %vm305, %v292
  %320 = vst.msk [vmem:[#allocation2 + $0x70] sm:$0xff] %vm305, %v297
  %321 = vst.msk [vmem:[#allocation2 + $0x78] sm:$0xff] %vm305, %v302
  %s322 = scalar_lea.vmem %s0, 32
  %v323 = vld [vmem:[%s322] sm:$0xff]
  %v324 = vld [vmem:[%s322 + $0x8] sm:$0xff]
  %v325 = vld [vmem:[%s322 + $0x10] sm:$0xff]
  %v326 = vld [vmem:[%s322 + $0x18] sm:$0xff]
  %327 = vmatprep.subr.mxu0 0.0
  %328 = vmatpush1.msra.mxu0 %v323
  %329 = vmatprep.subr.mxu0 0.0
  %330 = vmatpush1.msra.mxu0 %v324
  %331 = vmatprep.subr.mxu0 0.0
  %332 = vmatpush1.msra.mxu0 %v325
  %333 = vmatprep.subr.mxu0 0.0
  %334 = vmatpush1.msra.mxu0 %v326
  %335 = vmatprep.subr.mxu0 0.0
  %336 = vmatpush1.msra.mxu0 0.0
  %337 = vmatprep.subr.mxu0 0.0
  %338 = vmatpush1.msra.mxu0 0.0
  %339 = vmatprep.subr.mxu0 0.0
  %340 = vmatpush1.msra.mxu0 0.0
  %341 = vmatprep.subr.mxu0 0.0
  %342 = vmatpush1.msra.mxu0 0.0
  %343 = vmatprep.subr.mxu0 0.0
  %344 = vmatpush1.msra.mxu0 0.0
  %345 = vmatprep.subr.mxu0 0.0
  %346 = vmatpush1.msra.mxu0 0.0
  %347 = vmatprep.subr.mxu0 0.0
  %348 = vmatpush1.msra.mxu0 0.0
  %349 = vmatprep.subr.mxu0 0.0
  %350 = vmatpush1.msra.mxu0 0.0
  %351 = vmatprep.subr.mxu0 0.0
  %352 = vmatpush1.msra.mxu0 0.0
  %353 = vmatprep.subr.mxu0 0.0
  %354 = vmatpush1.msra.mxu0 0.0
  %355 = vmatprep.subr.mxu0 0.0
  %356 = vmatpush1.msra.mxu0 0.0
  %357 = vmatprep.subr.mxu0 0.0
  %358 = vmatpush1.msra.mxu0 0.0
  %359 = vmatprep.subr.mxu0 0.0
  %360 = vmatpush1.msra.mxu0 0.0
  %361 = vmatprep.subr.mxu0 0.0
  %362 = vmatpush1.msra.mxu0 0.0
  %363 = vmatprep.subr.mxu0 0.0
  %364 = vmatpush1.msra.mxu0 0.0
  %365 = vmatprep.subr.mxu0 0.0
  %366 = vmatpush1.msra.mxu0 0.0
  %367 = vmatprep.subr.mxu0 0.0
  %368 = vmatpush1.msra.mxu0 0.0
  %369 = vmatprep.subr.mxu0 0.0
  %370 = vmatpush1.msra.mxu0 0.0
  %371 = vmatprep.subr.mxu0 0.0
  %372 = vmatpush1.msra.mxu0 0.0
  %373 = vmatprep.subr.mxu0 0.0
  %374 = vmatpush1.msra.mxu0 0.0
  %375 = vmatprep.subr.mxu0 0.0
  %376 = vmatpush1.msra.mxu0 0.0
  %377 = vmatprep.subr.mxu0 0.0
  %378 = vmatpush1.msra.mxu0 0.0
  %379 = vmatprep.subr.mxu0 0.0
  %380 = vmatpush1.msra.mxu0 0.0
  %381 = vmatprep.subr.mxu0 0.0
  %382 = vmatpush1.msra.mxu0 0.0
  %383 = vmatprep.subr.mxu0 0.0
  %384 = vmatpush1.msra.mxu0 0.0
  %385 = vmatprep.subr.mxu0 0.0
  %386 = vmatpush1.msra.mxu0 0.0
  %387 = vmatprep.subr.mxu0 0.0
  %388 = vmatpush1.msra.mxu0 0.0
  %389 = vmatprep.subr.mxu0 0.0
  %390 = vmatpush1.msra.mxu0 0.0
  %391 = vmatprep.mubr.f32.mxu0 0.0
  %392 = vmatmul.mubr.f32.gmra.mrb[0].mxu0 %v128
  %v393 = vpop.f32.mrb[0].mxu0
  %v394 = vadd.f32 %v50, %v393
  %v395 = vpop.f32.mrb[0].mxu0
  %396 = vmatprep.mubr.f32.mxu0 0.0
  %397 = vmatmul.mubr.f32.gmra.mrb[0].mxu0 %v130
  %v398 = vpop.f32.mrb[0].mxu0
  %v399 = vadd.f32 %v55, %v398
  %v400 = vpop.f32.mrb[0].mxu0
  %401 = vmatprep.mubr.f32.mxu0 0.0
  %402 = vmatmul.mubr.f32.gmra.mrb[0].mxu0 %v132
  %v403 = vpop.f32.mrb[0].mxu0
  %v404 = vadd.f32 %v60, %v403
  %v405 = vpop.f32.mrb[0].mxu0
  %406 = vmatprep.mubr.f32.mxu0 0.0
  %407 = vmatmul.mubr.f32.gmra.mrb[0].mxu0 %v134
  %v408 = vpop.f32.mrb[0].mxu0
  %v409 = vadd.f32 %v65, %v408
  %v410 = vpop.f32.mrb[0].mxu0
  %411 = vmatprep.mubr.f32.mxu0 0.0
  %412 = vmatmul.mubr.f32.gmra.mrb[0].mxu0 %v136
  %v413 = vpop.f32.mrb[0].mxu0
  %v414 = vadd.f32 %v70, %v413
  %v415 = vpop.f32.mrb[0].mxu0
  %416 = vmatprep.mubr.f32.mxu0 0.0
  %417 = vmatmul.mubr.f32.gmra.mrb[0].mxu0 %v138
  %v418 = vpop.f32.mrb[0].mxu0
  %v419 = vadd.f32 %v75, %v418
  %v420 = vpop.f32.mrb[0].mxu0
  %421 = vmatprep.mubr.f32.mxu0 0.0
  %422 = vmatmul.mubr.f32.gmra.mrb[0].mxu0 %v140
  %v423 = vpop.f32.mrb[0].mxu0
  %v424 = vadd.f32 %v80, %v423
  %v425 = vpop.f32.mrb[0].mxu0
  %426 = vmatprep.mubr.f32.mxu0 0.0
  %427 = vmatmul.mubr.f32.gmra.mrb[0].mxu0 %v142
  %v428 = vpop.f32.mrb[0].mxu0
  %v429 = vadd.f32 %v85, %v428
  %v430 = vpop.f32.mrb[0].mxu0
  %431 = vmatprep.mubr.f32.mxu0 0.0
  %432 = vmatmul.mubr.f32.gmra.mrb[0].mxu0 %v144
  %v433 = vpop.f32.mrb[0].mxu0
  %v434 = vadd.f32 %v90, %v433
  %v435 = vpop.f32.mrb[0].mxu0
  %436 = vmatprep.mubr.f32.mxu0 0.0
  %437 = vmatmul.mubr.f32.gmra.mrb[0].mxu0 %v146
  %v438 = vpop.f32.mrb[0].mxu0
  %v439 = vadd.f32 %v95, %v438
  %v440 = vpop.f32.mrb[0].mxu0
  %441 = vmatprep.mubr.f32.mxu0 0.0
  %442 = vmatmul.mubr.f32.gmra.mrb[0].mxu0 %v148
  %v443 = vpop.f32.mrb[0].mxu0
  %v444 = vadd.f32 %v100, %v443
  %v445 = vpop.f32.mrb[0].mxu0
  %446 = vmatprep.mubr.f32.mxu0 0.0
  %447 = vmatmul.mubr.f32.gmra.mrb[0].mxu0 %v150
  %v448 = vpop.f32.mrb[0].mxu0
  %v449 = vadd.f32 %v105, %v448
  %v450 = vpop.f32.mrb[0].mxu0
  %451 = vmatprep.mubr.f32.mxu0 0.0
  %452 = vmatmul.mubr.f32.gmra.mrb[0].mxu0 %v152
  %v453 = vpop.f32.mrb[0].mxu0
  %v454 = vadd.f32 %v110, %v453
  %v455 = vpop.f32.mrb[0].mxu0
  %456 = vmatprep.mubr.f32.mxu0 0.0
  %457 = vmatmul.mubr.f32.gmra.mrb[0].mxu0 %v154
  %v458 = vpop.f32.mrb[0].mxu0
  %v459 = vadd.f32 %v115, %v458
  %v460 = vpop.f32.mrb[0].mxu0
  %461 = vmatprep.mubr.f32.mxu0 0.0
  %462 = vmatmul.mubr.f32.gmra.mrb[0].mxu0 %v156
  %v463 = vpop.f32.mrb[0].mxu0
  %v464 = vadd.f32 %v120, %v463
  %v465 = vpop.f32.mrb[0].mxu0
  %466 = vmatprep.mubr.f32.mxu0 0.0
  %467 = vmatmul.mubr.f32.gmra.mrb[0].mxu0 %v158
  %v468 = vpop.f32.mrb[0].mxu0
  %v469 = vadd.f32 %v125, %v468
  %v470 = vpop.f32.mrb[0].mxu0
  %471 = vdwg.mxu0
  %s472 = scalar_lea.vmem [#allocation2], 128
  %473 = vst.msk [vmem:[%s472] sm:$0xff] %vm305, %v394
  %474 = vst.msk [vmem:[%s472 + $0x8] sm:$0xff] %vm305, %v399
  %475 = vst.msk [vmem:[%s472 + $0x10] sm:$0xff] %vm305, %v404
  %476 = vst.msk [vmem:[%s472 + $0x18] sm:$0xff] %vm305, %v409
  %477 = vst.msk [vmem:[%s472 + $0x20] sm:$0xff] %vm305, %v414
  %478 = vst.msk [vmem:[%s472 + $0x28] sm:$0xff] %vm305, %v419
  %479 = vst.msk [vmem:[%s472 + $0x30] sm:$0xff] %vm305, %v424
  %480 = vst.msk [vmem:[%s472 + $0x38] sm:$0xff] %vm305, %v429
  %481 = vst.msk [vmem:[%s472 + $0x40] sm:$0xff] %vm305, %v434
  %482 = vst.msk [vmem:[%s472 + $0x48] sm:$0xff] %vm305, %v439
  %483 = vst.msk [vmem:[%s472 + $0x50] sm:$0xff] %vm305, %v444
  %484 = vst.msk [vmem:[%s472 + $0x58] sm:$0xff] %vm305, %v449
  %485 = vst.msk [vmem:[%s472 + $0x60] sm:$0xff] %vm305, %v454
  %486 = vst.msk [vmem:[%s472 + $0x68] sm:$0xff] %vm305, %v459
  %487 = vst.msk [vmem:[%s472 + $0x70] sm:$0xff] %vm305, %v464
  %488 = vst.msk [vmem:[%s472 + $0x78] sm:$0xff] %vm305, %v469
  %490 = vset.pattern.permute.xlu0 32
  %491 = vperm.xlu0 %490, %v23
  %v492 = vpop.permute.xlu0 %491
  %495 = vset.pattern.permute.xlu0 32
  %496 = vperm.xlu0 %495, %v24
  %v497 = vpop.permute.xlu0 %496
  %500 = vset.pattern.permute.xlu0 32
  %501 = vperm.xlu0 %500, %v25
  %v502 = vpop.permute.xlu0 %501
  %505 = vset.pattern.permute.xlu0 32
  %506 = vperm.xlu0 %505, %v26
  %v507 = vpop.permute.xlu0 %506
  %v509 = vld [vmem:[%s3] sm:$0xff]
  %v510 = vld [vmem:[%s3 + $0x8] sm:$0xff]
  %v511 = vld [vmem:[%s3 + $0x10] sm:$0xff]
  %v512 = vld [vmem:[%s3 + $0x18] sm:$0xff]
  %v513 = vld [vmem:[%s3 + $0x20] sm:$0xff]
  %v514 = vld [vmem:[%s3 + $0x28] sm:$0xff]
  %v515 = vld [vmem:[%s3 + $0x30] sm:$0xff]
  %v516 = vld [vmem:[%s3 + $0x38] sm:$0xff]
  %v517 = vld [vmem:[%s3 + $0x40] sm:$0xff]
  %v518 = vld [vmem:[%s3 + $0x48] sm:$0xff]
  %v519 = vld [vmem:[%s3 + $0x50] sm:$0xff]
  %v520 = vld [vmem:[%s3 + $0x58] sm:$0xff]
  %v521 = vld [vmem:[%s3 + $0x60] sm:$0xff]
  %v522 = vld [vmem:[%s3 + $0x68] sm:$0xff]
  %v523 = vld [vmem:[%s3 + $0x70] sm:$0xff]
  %v524 = vld [vmem:[%s3 + $0x78] sm:$0xff]
  %v525 = vld [vmem:[%s4] sm:$0xff]
  %v526 = vld [vmem:[%s4 + $0x8] sm:$0xff]
  %v527 = vld [vmem:[%s4 + $0x10] sm:$0xff]
  %v528 = vld [vmem:[%s4 + $0x18] sm:$0xff]
  %v529 = vld [vmem:[%s5] sm:$0xff]
  %v530 = vld [vmem:[%s5 + $0x8] sm:$0xff]
  %v531 = vld [vmem:[%s5 + $0x10] sm:$0xff]
  %v532 = vld [vmem:[%s5 + $0x18] sm:$0xff]
  %v533 = vld [vmem:[%s5 + $0x20] sm:$0xff]
  %v534 = vld [vmem:[%s5 + $0x28] sm:$0xff]
  %v535 = vld [vmem:[%s5 + $0x30] sm:$0xff]
  %v536 = vld [vmem:[%s5 + $0x38] sm:$0xff]
  %538 = vset.pattern.permute.xlu0 0
  %539 = vperm.xlu0 %538, %v529
  %v540 = vpop.permute.xlu0 %539
  %543 = vset.pattern.permute.xlu0 0
  %544 = vperm.xlu0 %543, %v530
  %v545 = vpop.permute.xlu0 %544
  %548 = vset.pattern.permute.xlu0 0
  %549 = vperm.xlu0 %548, %v531
  %v550 = vpop.permute.xlu0 %549
  %553 = vset.pattern.permute.xlu0 0
  %554 = vperm.xlu0 %553, %v532
  %v555 = vpop.permute.xlu0 %554
  %v558 = vsel %vm127, %v509, 0
  %v561 = vsel %vm127, %v510, 0
  %v564 = vsel %vm127, %v511, 0
  %v567 = vsel %vm127, %v512, 0
  %569 = vmatprep.subr.mxu0 0.0
  %570 = vmatpush1.msra.mxu0 %v492
  %571 = vmatprep.subr.mxu0 0.0
  %572 = vmatpush1.msra.mxu0 %v497
  %573 = vmatprep.subr.mxu0 0.0
  %574 = vmatpush1.msra.mxu0 %v502
  %575 = vmatprep.subr.mxu0 0.0
  %576 = vmatpush1.msra.mxu0 %v507
  %577 = vmatprep.subr.mxu0 0.0
  %578 = vmatpush1.msra.mxu0 0.0
  %579 = vmatprep.subr.mxu0 0.0
  %580 = vmatpush1.msra.mxu0 0.0
  %581 = vmatprep.subr.mxu0 0.0
  %582 = vmatpush1.msra.mxu0 0.0
  %583 = vmatprep.subr.mxu0 0.0
  %584 = vmatpush1.msra.mxu0 0.0
  %585 = vmatprep.subr.mxu0 0.0
  %586 = vmatpush1.msra.mxu0 0.0
  %587 = vmatprep.subr.mxu0 0.0
  %588 = vmatpush1.msra.mxu0 0.0
  %589 = vmatprep.subr.mxu0 0.0
  %590 = vmatpush1.msra.mxu0 0.0
  %591 = vmatprep.subr.mxu0 0.0
  %592 = vmatpush1.msra.mxu0 0.0
  %593 = vmatprep.subr.mxu0 0.0
  %594 = vmatpush1.msra.mxu0 0.0
  %595 = vmatprep.subr.mxu0 0.0
  %596 = vmatpush1.msra.mxu0 0.0
  %597 = vmatprep.subr.mxu0 0.0
  %598 = vmatpush1.msra.mxu0 0.0
  %599 = vmatprep.subr.mxu0 0.0
  %600 = vmatpush1.msra.mxu0 0.0
  %601 = vmatprep.subr.mxu0 0.0
  %602 = vmatpush1.msra.mxu0 0.0
  %603 = vmatprep.subr.mxu0 0.0
  %604 = vmatpush1.msra.mxu0 0.0
  %605 = vmatprep.subr.mxu0 0.0
  %606 = vmatpush1.msra.mxu0 0.0
  %607 = vmatprep.subr.mxu0 0.0
  %608 = vmatpush1.msra.mxu0 0.0
  %609 = vmatprep.subr.mxu0 0.0
  %610 = vmatpush1.msra.mxu0 0.0
  %611 = vmatprep.subr.mxu0 0.0
  %612 = vmatpush1.msra.mxu0 0.0
  %613 = vmatprep.subr.mxu0 0.0
  %614 = vmatpush1.msra.mxu0 0.0
  %615 = vmatprep.subr.mxu0 0.0
  %616 = vmatpush1.msra.mxu0 0.0
  %617 = vmatprep.subr.mxu0 0.0
  %618 = vmatpush1.msra.mxu0 0.0
  %619 = vmatprep.subr.mxu0 0.0
  %620 = vmatpush1.msra.mxu0 0.0
  %621 = vmatprep.subr.mxu0 0.0
  %622 = vmatpush1.msra.mxu0 0.0
  %623 = vmatprep.subr.mxu0 0.0
  %624 = vmatpush1.msra.mxu0 0.0
  %625 = vmatprep.subr.mxu0 0.0
  %626 = vmatpush1.msra.mxu0 0.0
  %627 = vmatprep.subr.mxu0 0.0
  %628 = vmatpush1.msra.mxu0 0.0
  %629 = vmatprep.subr.mxu0 0.0
  %630 = vmatpush1.msra.mxu0 0.0
  %631 = vmatprep.subr.mxu0 0.0
  %632 = vmatpush1.msra.mxu0 0.0
  %633 = vmatprep.mubr.f32.mxu0 0.0
  %634 = vmatmul.mubr.f32.gmra.mrb[0].mxu0 %v558
  %v635 = vpop.f32.mrb[0].mxu0
  %v636 = vadd.f32 %v540, %v635
  %v637 = vpop.f32.mrb[0].mxu0
  %638 = vmatprep.mubr.f32.mxu0 0.0
  %639 = vmatmul.mubr.f32.gmra.mrb[0].mxu0 %v561
  %v640 = vpop.f32.mrb[0].mxu0
  %v641 = vadd.f32 %v545, %v640
  %v642 = vpop.f32.mrb[0].mxu0
  %643 = vmatprep.mubr.f32.mxu0 0.0
  %644 = vmatmul.mubr.f32.gmra.mrb[0].mxu0 %v564
  %v645 = vpop.f32.mrb[0].mxu0
  %v646 = vadd.f32 %v550, %v645
  %v647 = vpop.f32.mrb[0].mxu0
  %648 = vmatprep.mubr.f32.mxu0 0.0
  %649 = vmatmul.mubr.f32.gmra.mrb[0].mxu0 %v567
  %v650 = vpop.f32.mrb[0].mxu0
  %v651 = vadd.f32 %v555, %v650
  %v652 = vpop.f32.mrb[0].mxu0
  %653 = vdwg.mxu0
  %v654 = vld [vmem:[#allocation2] sm:$0xff]
  %v655 = vld [vmem:[#allocation2 + $0x8] sm:$0xff]
  %v656 = vld [vmem:[#allocation2 + $0x10] sm:$0xff]
  %v657 = vld [vmem:[#allocation2 + $0x18] sm:$0xff]
  %v658 = vld [vmem:[#allocation2 + $0x20] sm:$0xff]
  %v659 = vld [vmem:[#allocation2 + $0x28] sm:$0xff]
  %v660 = vld [vmem:[#allocation2 + $0x30] sm:$0xff]
  %v661 = vld [vmem:[#allocation2 + $0x38] sm:$0xff]
  %663 = vset.pattern.permute.xlu0 0
  %664 = vperm.xlu0 %663, %v636
  %v665 = vpop.permute.xlu0 %664
  %668 = vset.pattern.permute.xlu0 0
  %669 = vperm.xlu0 %668, %v641
  %v670 = vpop.permute.xlu0 %669
  %673 = vset.pattern.permute.xlu0 0
  %674 = vperm.xlu0 %673, %v646
  %v675 = vpop.permute.xlu0 %674
  %678 = vset.pattern.permute.xlu0 0
  %679 = vperm.xlu0 %678, %v651
  %v680 = vpop.permute.xlu0 %679
  %v682 = vmul.f32 %v654, %v665
  %v683 = vmul.f32 %v655, %v670
  %v684 = vmul.f32 %v656, %v675
  %v685 = vmul.f32 %v657, %v680
  %v686 = vsel %vm127, %v23, 0
  %v688 = vsel %vm127, %v24, 0
  %v690 = vsel %vm127, %v25, 0
  %v692 = vsel %vm127, %v26, 0
  %694 = vmatprep.subr.mxu0 0.0
  %695 = vmatpush1.msra.mxu0 %v682
  %696 = vmatprep.subr.mxu0 0.0
  %697 = vmatpush1.msra.mxu0 %v683
  %698 = vmatprep.subr.mxu0 0.0
  %699 = vmatpush1.msra.mxu0 %v684
  %700 = vmatprep.subr.mxu0 0.0
  %701 = vmatpush1.msra.mxu0 %v685
  %702 = vmatprep.subr.mxu0 0.0
  %703 = vmatpush1.msra.mxu0 0.0
  %704 = vmatprep.subr.mxu0 0.0
  %705 = vmatpush1.msra.mxu0 0.0
  %706 = vmatprep.subr.mxu0 0.0
  %707 = vmatpush1.msra.mxu0 0.0
  %708 = vmatprep.subr.mxu0 0.0
  %709 = vmatpush1.msra.mxu0 0.0
  %710 = vmatprep.subr.mxu0 0.0
  %711 = vmatpush1.msra.mxu0 0.0
  %712 = vmatprep.subr.mxu0 0.0
  %713 = vmatpush1.msra.mxu0 0.0
  %714 = vmatprep.subr.mxu0 0.0
  %715 = vmatpush1.msra.mxu0 0.0
  %716 = vmatprep.subr.mxu0 0.0
  %717 = vmatpush1.msra.mxu0 0.0
  %718 = vmatprep.subr.mxu0 0.0
  %719 = vmatpush1.msra.mxu0 0.0
  %720 = vmatprep.subr.mxu0 0.0
  %721 = vmatpush1.msra.mxu0 0.0
  %722 = vmatprep.subr.mxu0 0.0
  %723 = vmatpush1.msra.mxu0 0.0
  %724 = vmatprep.subr.mxu0 0.0
  %725 = vmatpush1.msra.mxu0 0.0
  %726 = vmatprep.subr.mxu0 0.0
  %727 = vmatpush1.msra.mxu0 0.0
  %728 = vmatprep.subr.mxu0 0.0
  %729 = vmatpush1.msra.mxu0 0.0
  %730 = vmatprep.subr.mxu0 0.0
  %731 = vmatpush1.msra.mxu0 0.0
  %732 = vmatprep.subr.mxu0 0.0
  %733 = vmatpush1.msra.mxu0 0.0
  %734 = vmatprep.subr.mxu0 0.0
  %735 = vmatpush1.msra.mxu0 0.0
  %736 = vmatprep.subr.mxu0 0.0
  %737 = vmatpush1.msra.mxu0 0.0
  %738 = vmatprep.subr.mxu0 0.0
  %739 = vmatpush1.msra.mxu0 0.0
  %740 = vmatprep.subr.mxu0 0.0
  %741 = vmatpush1.msra.mxu0 0.0
  %742 = vmatprep.subr.mxu0 0.0
  %743 = vmatpush1.msra.mxu0 0.0
  %744 = vmatprep.subr.mxu0 0.0
  %745 = vmatpush1.msra.mxu0 0.0
  %746 = vmatprep.subr.mxu0 0.0
  %747 = vmatpush1.msra.mxu0 0.0
  %748 = vmatprep.subr.mxu0 0.0
  %749 = vmatpush1.msra.mxu0 0.0
  %750 = vmatprep.subr.mxu0 0.0
  %751 = vmatpush1.msra.mxu0 0.0
  %752 = vmatprep.subr.mxu0 0.0
  %753 = vmatpush1.msra.mxu0 0.0
  %754 = vmatprep.subr.mxu0 0.0
  %755 = vmatpush1.msra.mxu0 0.0
  %756 = vmatprep.subr.mxu0 0.0
  %757 = vmatpush1.msra.mxu0 0.0
  %758 = vmatprep.mubr.f32.mxu0 0.0
  %759 = vmatmul.mubr.f32.gmra.mrb[0].mxu0 %v686
  %v760 = vpop.f32.mrb[0].mxu0
  %v761 = vadd.f32 0.0, %v760
  %v762 = vpop.f32.mrb[0].mxu0
  %763 = vmatprep.mubr.f32.mxu0 0.0
  %764 = vmatmul.mubr.f32.gmra.mrb[0].mxu0 %v688
  %v765 = vpop.f32.mrb[0].mxu0
  %v766 = vadd.f32 0.0, %v765
  %v767 = vpop.f32.mrb[0].mxu0
  %768 = vmatprep.mubr.f32.mxu0 0.0
  %769 = vmatmul.mubr.f32.gmra.mrb[0].mxu0 %v690
  %v770 = vpop.f32.mrb[0].mxu0
  %v771 = vadd.f32 0.0, %v770
  %v772 = vpop.f32.mrb[0].mxu0
  %773 = vmatprep.mubr.f32.mxu0 0.0
  %774 = vmatmul.mubr.f32.gmra.mrb[0].mxu0 %v692
  %v775 = vpop.f32.mrb[0].mxu0
  %v776 = vadd.f32 0.0, %v775
  %v777 = vpop.f32.mrb[0].mxu0
  %778 = vdwg.mxu0
  %v779 = vsel %vm305, %v761, -inf
  %780 = vmax.xlane.f32.xlu0 %v779
  %v781 = vpop.xlane.xlu0 %780
  %v782 = vsel %vm305, %v766, -inf
  %783 = vmax.xlane.f32.xlu0 %v782
  %v784 = vpop.xlane.xlu0 %783
  %v785 = vsel %vm305, %v771, -inf
  %786 = vmax.xlane.f32.xlu0 %v785
  %v787 = vpop.xlane.xlu0 %786
  %v788 = vsel %vm305, %v776, -inf
  %789 = vmax.xlane.f32.xlu0 %v788
  %v790 = vpop.xlane.xlu0 %789
  %v791 = vsub.f32 %v761, %v781
  %v792 = vsub.f32 %v766, %v784
  %v793 = vsub.f32 %v771, %v787
  %v794 = vsub.f32 %v776, %v790
  %v795 = vmul.f32 %v791, 1.442695
  %v796 = vpow.pop %v795
  %v797 = vmul.f32 %v792, 1.442695
  %v798 = vpow.pop %v797
  %v799 = vmul.f32 %v793, 1.442695
  %v800 = vpow.pop %v799
  %v801 = vmul.f32 %v794, 1.442695
  %v802 = vpow.pop %v801
  %v803 = vsel %vm305, %v796, 0.0
  %804 = vadd.xlane.f32.xlu0 %v803
  %v805 = vpop.xlane.xlu0 %804
  %v806 = vsel %vm305, %v798, 0.0
  %807 = vadd.xlane.f32.xlu0 %v806
  %v808 = vpop.xlane.xlu0 %807
  %v809 = vsel %vm305, %v800, 0.0
  %810 = vadd.xlane.f32.xlu0 %v809
  %v811 = vpop.xlane.xlu0 %810
  %v812 = vsel %vm305, %v802, 0.0
  %813 = vadd.xlane.f32.xlu0 %v812
  %v814 = vpop.xlane.xlu0 %813
  %v815 = vrcp.pop %v805
  %v816 = vrcp.pop %v808
  %v817 = vrcp.pop %v811
  %v818 = vrcp.pop %v814
  %v819 = vmul.f32 %v796, %v815
  %v820 = vmul.f32 %v798, %v816
  %v821 = vmul.f32 %v800, %v817
  %v822 = vmul.f32 %v802, %v818
  %v823 = vmul.f32 %v819, %v658
  %v824 = vmul.f32 %v820, %v659
  %v825 = vmul.f32 %v821, %v660
  %v826 = vmul.f32 %v822, %v661
  %v827 = vsel %vm305, %v823, 0.0
  %828 = vadd.xlane.f32.xlu0 %v827
  %v829 = vpop.xlane.xlu0 %828
  %v830 = vsel %vm305, %v824, 0.0
  %831 = vadd.xlane.f32.xlu0 %v830
  %v832 = vpop.xlane.xlu0 %831
  %v833 = vsel %vm305, %v825, 0.0
  %834 = vadd.xlane.f32.xlu0 %v833
  %v835 = vpop.xlane.xlu0 %834
  %v836 = vsel %vm305, %v826, 0.0
  %837 = vadd.xlane.f32.xlu0 %v836
  %v838 = vpop.xlane.xlu0 %837
  %v839 = vld [vmem:[%s472] sm:$0xff]
  %v840 = vld [vmem:[%s472 + $0x8] sm:$0xff]
  %v841 = vld [vmem:[%s472 + $0x10] sm:$0xff]
  %v842 = vld [vmem:[%s472 + $0x18] sm:$0xff]
  %v843 = vld [vmem:[%s472 + $0x20] sm:$0xff]
  %v844 = vld [vmem:[%s472 + $0x28] sm:$0xff]
  %v845 = vld [vmem:[%s472 + $0x30] sm:$0xff]
  %v846 = vld [vmem:[%s472 + $0x38] sm:$0xff]
  %847 = vset.pattern.permute.xlu0 1
  %848 = vperm.xlu0 %847, %v636
  %v849 = vpop.permute.xlu0 %848
  %851 = vset.pattern.permute.xlu0 1
  %852 = vperm.xlu0 %851, %v641
  %v853 = vpop.permute.xlu0 %852
  %855 = vset.pattern.permute.xlu0 1
  %856 = vperm.xlu0 %855, %v646
  %v857 = vpop.permute.xlu0 %856
  %859 = vset.pattern.permute.xlu0 1
  %860 = vperm.xlu0 %859, %v651
  %v861 = vpop.permute.xlu0 %860
  %v863 = vmul.f32 %v839, %v849
  %v864 = vmul.f32 %v840, %v853
  %v865 = vmul.f32 %v841, %v857
  %v866 = vmul.f32 %v842, %v861
  %867 = vmatprep.subr.mxu0 0.0
  %868 = vmatpush1.msra.mxu0 %v863
  %869 = vmatprep.subr.mxu0 0.0
  %870 = vmatpush1.msra.mxu0 %v864
  %871 = vmatprep.subr.mxu0 0.0
  %872 = vmatpush1.msra.mxu0 %v865
  %873 = vmatprep.subr.mxu0 0.0
  %874 = vmatpush1.msra.mxu0 %v866
  %875 = vmatprep.subr.mxu0 0.0
  %876 = vmatpush1.msra.mxu0 0.0
  %877 = vmatprep.subr.mxu0 0.0
  %878 = vmatpush1.msra.mxu0 0.0
  %879 = vmatprep.subr.mxu0 0.0
  %880 = vmatpush1.msra.mxu0 0.0
  %881 = vmatprep.subr.mxu0 0.0
  %882 = vmatpush1.msra.mxu0 0.0
  %883 = vmatprep.subr.mxu0 0.0
  %884 = vmatpush1.msra.mxu0 0.0
  %885 = vmatprep.subr.mxu0 0.0
  %886 = vmatpush1.msra.mxu0 0.0
  %887 = vmatprep.subr.mxu0 0.0
  %888 = vmatpush1.msra.mxu0 0.0
  %889 = vmatprep.subr.mxu0 0.0
  %890 = vmatpush1.msra.mxu0 0.0
  %891 = vmatprep.subr.mxu0 0.0
  %892 = vmatpush1.msra.mxu0 0.0
  %893 = vmatprep.subr.mxu0 0.0
  %894 = vmatpush1.msra.mxu0 0.0
  %895 = vmatprep.subr.mxu0 0.0
  %896 = vmatpush1.msra.mxu0 0.0
  %897 = vmatprep.subr.mxu0 0.0
  %898 = vmatpush1.msra.mxu0 0.0
  %899 = vmatprep.subr.mxu0 0.0
  %900 = vmatpush1.msra.mxu0 0.0
  %901 = vmatprep.subr.mxu0 0.0
  %902 = vmatpush1.msra.mxu0 0.0
  %903 = vmatprep.subr.mxu0 0.0
  %904 = vmatpush1.msra.mxu0 0.0
  %905 = vmatprep.subr.mxu0 0.0
  %906 = vmatpush1.msra.mxu0 0.0
  %907 = vmatprep.subr.mxu0 0.0
  %908 = vmatpush1.msra.mxu0 0.0
  %909 = vmatprep.subr.mxu0 0.0
  %910 = vmatpush1.msra.mxu0 0.0
  %911 = vmatprep.subr.mxu0 0.0
  %912 = vmatpush1.msra.mxu0 0.0
  %913 = vmatprep.subr.mxu0 0.0
  %914 = vmatpush1.msra.mxu0 0.0
  %915 = vmatprep.subr.mxu0 0.0
  %916 = vmatpush1.msra.mxu0 0.0
  %917 = vmatprep.subr.mxu0 0.0
  %918 = vmatpush1.msra.mxu0 0.0
  %919 = vmatprep.subr.mxu0 0.0
  %920 = vmatpush1.msra.mxu0 0.0
  %921 = vmatprep.subr.mxu0 0.0
  %922 = vmatpush1.msra.mxu0 0.0
  %923 = vmatprep.subr.mxu0 0.0
  %924 = vmatpush1.msra.mxu0 0.0
  %925 = vmatprep.subr.mxu0 0.0
  %926 = vmatpush1.msra.mxu0 0.0
  %927 = vmatprep.subr.mxu0 0.0
  %928 = vmatpush1.msra.mxu0 0.0
  %929 = vmatprep.subr.mxu0 0.0
  %930 = vmatpush1.msra.mxu0 0.0
  %931 = vmatprep.mubr.f32.mxu0 0.0
  %932 = vmatmul.mubr.f32.gmra.mrb[0].mxu0 %v686
  %v933 = vpop.f32.mrb[0].mxu0
  %v934 = vadd.f32 0.0, %v933
  %v935 = vpop.f32.mrb[0].mxu0
  %936 = vmatprep.mubr.f32.mxu0 0.0
  %937 = vmatmul.mubr.f32.gmra.mrb[0].mxu0 %v688
  %v938 = vpop.f32.mrb[0].mxu0
  %v939 = vadd.f32 0.0, %v938
  %v940 = vpop.f32.mrb[0].mxu0
  %941 = vmatprep.mubr.f32.mxu0 0.0
  %942 = vmatmul.mubr.f32.gmra.mrb[0].mxu0 %v690
  %v943 = vpop.f32.mrb[0].mxu0
  %v944 = vadd.f32 0.0, %v943
  %v945 = vpop.f32.mrb[0].mxu0
  %946 = vmatprep.mubr.f32.mxu0 0.0
  %947 = vmatmul.mubr.f32.gmra.mrb[0].mxu0 %v692
  %v948 = vpop.f32.mrb[0].mxu0
  %v949 = vadd.f32 0.0, %v948
  %v950 = vpop.f32.mrb[0].mxu0
  %951 = vdwg.mxu0
  %v952 = vsel %vm305, %v934, -inf
  %953 = vmax.xlane.f32.xlu0 %v952
  %v954 = vpop.xlane.xlu0 %953
  %v955 = vsel %vm305, %v939, -inf
  %956 = vmax.xlane.f32.xlu0 %v955
  %v957 = vpop.xlane.xlu0 %956
  %v958 = vsel %vm305, %v944, -inf
  %959 = vmax.xlane.f32.xlu0 %v958
  %v960 = vpop.xlane.xlu0 %959
  %v961 = vsel %vm305, %v949, -inf
  %962 = vmax.xlane.f32.xlu0 %v961
  %v963 = vpop.xlane.xlu0 %962
  %v964 = vsub.f32 %v934, %v954
  %v965 = vsub.f32 %v939, %v957
  %v966 = vsub.f32 %v944, %v960
  %v967 = vsub.f32 %v949, %v963
  %v968 = vmul.f32 %v964, 1.442695
  %v969 = vpow.pop %v968
  %v970 = vmul.f32 %v965, 1.442695
  %v971 = vpow.pop %v970
  %v972 = vmul.f32 %v966, 1.442695
  %v973 = vpow.pop %v972
  %v974 = vmul.f32 %v967, 1.442695
  %v975 = vpow.pop %v974
  %v976 = vsel %vm305, %v969, 0.0
  %977 = vadd.xlane.f32.xlu0 %v976
  %v978 = vpop.xlane.xlu0 %977
  %v979 = vsel %vm305, %v971, 0.0
  %980 = vadd.xlane.f32.xlu0 %v979
  %v981 = vpop.xlane.xlu0 %980
  %v982 = vsel %vm305, %v973, 0.0
  %983 = vadd.xlane.f32.xlu0 %v982
  %v984 = vpop.xlane.xlu0 %983
  %v985 = vsel %vm305, %v975, 0.0
  %986 = vadd.xlane.f32.xlu0 %v985
  %v987 = vpop.xlane.xlu0 %986
  %v988 = vrcp.pop %v978
  %v989 = vrcp.pop %v981
  %v990 = vrcp.pop %v984
  %v991 = vrcp.pop %v987
  %v992 = vmul.f32 %v969, %v988
  %v993 = vmul.f32 %v971, %v989
  %v994 = vmul.f32 %v973, %v990
  %v995 = vmul.f32 %v975, %v991
  %v996 = vmul.f32 %v992, %v843
  %v997 = vmul.f32 %v993, %v844
  %v998 = vmul.f32 %v994, %v845
  %v999 = vmul.f32 %v995, %v846
  %v1000 = vsel %vm305, %v996, 0.0
  %1001 = vadd.xlane.f32.xlu0 %v1000
  %v1002 = vpop.xlane.xlu0 %1001
  %v1003 = vsel %vm305, %v997, 0.0
  %1004 = vadd.xlane.f32.xlu0 %v1003
  %v1005 = vpop.xlane.xlu0 %1004
  %v1006 = vsel %vm305, %v998, 0.0
  %1007 = vadd.xlane.f32.xlu0 %v1006
  %v1008 = vpop.xlane.xlu0 %1007
  %v1009 = vsel %vm305, %v999, 0.0
  %1010 = vadd.xlane.f32.xlu0 %v1009
  %v1011 = vpop.xlane.xlu0 %1010
  %vm1012 = vcmask 7168
  %v1013 = vsel %vm1012, %v829, %v1002
  %v1014 = vsel %vm1012, %v832, %v1005
  %v1015 = vsel %vm1012, %v835, %v1008
  %v1016 = vsel %vm1012, %v838, %v1011
  %1017 = vset.pattern.permute.xlu0 1
  %1018 = vperm.xlu0 %1017, %v529
  %v1019 = vpop.permute.xlu0 %1018
  %1021 = vset.pattern.permute.xlu0 1
  %1022 = vperm.xlu0 %1021, %v530
  %v1023 = vpop.permute.xlu0 %1022
  %1025 = vset.pattern.permute.xlu0 1
  %1026 = vperm.xlu0 %1025, %v531
  %v1027 = vpop.permute.xlu0 %1026
  %1029 = vset.pattern.permute.xlu0 1
  %1030 = vperm.xlu0 %1029, %v532
  %v1031 = vpop.permute.xlu0 %1030
  %v1034 = vsel %vm127, %v513, 0
  %v1037 = vsel %vm127, %v514, 0
  %v1040 = vsel %vm127, %v515, 0
  %v1043 = vsel %vm127, %v516, 0
  %1045 = vmatprep.subr.mxu0 0.0
  %1046 = vmatpush1.msra.mxu0 %v1013
  %1047 = vmatprep.subr.mxu0 0.0
  %1048 = vmatpush1.msra.mxu0 %v1014
  %1049 = vmatprep.subr.mxu0 0.0
  %1050 = vmatpush1.msra.mxu0 %v1015
  %1051 = vmatprep.subr.mxu0 0.0
  %1052 = vmatpush1.msra.mxu0 %v1016
  %1053 = vmatprep.subr.mxu0 0.0
  %1054 = vmatpush1.msra.mxu0 0.0
  %1055 = vmatprep.subr.mxu0 0.0
  %1056 = vmatpush1.msra.mxu0 0.0
  %1057 = vmatprep.subr.mxu0 0.0
  %1058 = vmatpush1.msra.mxu0 0.0
  %1059 = vmatprep.subr.mxu0 0.0
  %1060 = vmatpush1.msra.mxu0 0.0
  %1061 = vmatprep.subr.mxu0 0.0
  %1062 = vmatpush1.msra.mxu0 0.0
  %1063 = vmatprep.subr.mxu0 0.0
  %1064 = vmatpush1.msra.mxu0 0.0
  %1065 = vmatprep.subr.mxu0 0.0
  %1066 = vmatpush1.msra.mxu0 0.0
  %1067 = vmatprep.subr.mxu0 0.0
  %1068 = vmatpush1.msra.mxu0 0.0
  %1069 = vmatprep.subr.mxu0 0.0
  %1070 = vmatpush1.msra.mxu0 0.0
  %1071 = vmatprep.subr.mxu0 0.0
  %1072 = vmatpush1.msra.mxu0 0.0
  %1073 = vmatprep.subr.mxu0 0.0
  %1074 = vmatpush1.msra.mxu0 0.0
  %1075 = vmatprep.subr.mxu0 0.0
  %1076 = vmatpush1.msra.mxu0 0.0
  %1077 = vmatprep.subr.mxu0 0.0
  %1078 = vmatpush1.msra.mxu0 0.0
  %1079 = vmatprep.subr.mxu0 0.0
  %1080 = vmatpush1.msra.mxu0 0.0
  %1081 = vmatprep.subr.mxu0 0.0
  %1082 = vmatpush1.msra.mxu0 0.0
  %1083 = vmatprep.subr.mxu0 0.0
  %1084 = vmatpush1.msra.mxu0 0.0
  %1085 = vmatprep.subr.mxu0 0.0
  %1086 = vmatpush1.msra.mxu0 0.0
  %1087 = vmatprep.subr.mxu0 0.0
  %1088 = vmatpush1.msra.mxu0 0.0
  %1089 = vmatprep.subr.mxu0 0.0
  %1090 = vmatpush1.msra.mxu0 0.0
  %1091 = vmatprep.subr.mxu0 0.0
  %1092 = vmatpush1.msra.mxu0 0.0
  %1093 = vmatprep.subr.mxu0 0.0
  %1094 = vmatpush1.msra.mxu0 0.0
  %1095 = vmatprep.subr.mxu0 0.0
  %1096 = vmatpush1.msra.mxu0 0.0
  %1097 = vmatprep.subr.mxu0 0.0
  %1098 = vmatpush1.msra.mxu0 0.0
  %1099 = vmatprep.subr.mxu0 0.0
  %1100 = vmatpush1.msra.mxu0 0.0
  %1101 = vmatprep.subr.mxu0 0.0
  %1102 = vmatpush1.msra.mxu0 0.0
  %1103 = vmatprep.subr.mxu0 0.0
  %1104 = vmatpush1.msra.mxu0 0.0
  %1105 = vmatprep.subr.mxu0 0.0
  %1106 = vmatpush1.msra.mxu0 0.0
  %1107 = vmatprep.subr.mxu0 0.0
  %1108 = vmatpush1.msra.mxu0 0.0
  %1109 = vmatprep.mubr.f32.mxu0 0.0
  %1110 = vmatmul.mubr.f32.gmra.mrb[0].mxu0 %v1034
  %v1111 = vpop.f32.mrb[0].mxu0
  %v1112 = vadd.f32 %v1019, %v1111
  %v1113 = vpop.f32.mrb[0].mxu0
  %1114 = vmatprep.mubr.f32.mxu0 0.0
  %1115 = vmatmul.mubr.f32.gmra.mrb[0].mxu0 %v1037
  %v1116 = vpop.f32.mrb[0].mxu0
  %v1117 = vadd.f32 %v1023, %v1116
  %v1118 = vpop.f32.mrb[0].mxu0
  %1119 = vmatprep.mubr.f32.mxu0 0.0
  %1120 = vmatmul.mubr.f32.gmra.mrb[0].mxu0 %v1040
  %v1121 = vpop.f32.mrb[0].mxu0
  %v1122 = vadd.f32 %v1027, %v1121
  %v1123 = vpop.f32.mrb[0].mxu0
  %1124 = vmatprep.mubr.f32.mxu0 0.0
  %1125 = vmatmul.mubr.f32.gmra.mrb[0].mxu0 %v1043
  %v1126 = vpop.f32.mrb[0].mxu0
  %v1127 = vadd.f32 %v1031, %v1126
  %v1128 = vpop.f32.mrb[0].mxu0
  %1129 = vdwg.mxu0
  %v1130 = vadd.f32 %v492, %v1112
  %v1131 = vadd.f32 %v497, %v1117
  %v1132 = vadd.f32 %v502, %v1122
  %v1133 = vadd.f32 %v507, %v1127
  %vm1134 = vcmask 15360
  %v1135 = vsel %vm1134, %v1130, 0.0
  %v1136 = vsel %vm1134, %v1131, 0.0
  %v1137 = vadd.f32 %v1135, %v1136
  %v1138 = vsel %vm1134, %v1132, 0.0
  %v1139 = vadd.f32 %v1137, %v1138
  %v1140 = vsel %vm1134, %v1133, 0.0
  %v1141 = vadd.f32 %v1139, %v1140
  %v1142 = vrot.slane %v1141, 4
  %v1143 = vadd.f32 %v1141, %v1142
  %v1144 = vrot.slane %v1143, 2
  %v1145 = vadd.f32 %v1143, %v1144
  %v1146 = vrot.slane %v1145, 1
  %v1147 = vadd.f32 %v1145, %v1146
  %v1148 = vrcp.pop 32.0
  %v1149 = vmul.f32 %v1147, %v1148
  %v1150 = vsub.f32 %v1130, %v1149
  %v1151 = vsub.f32 %v1131, %v1149
  %v1152 = vsub.f32 %v1132, %v1149
  %v1153 = vsub.f32 %v1133, %v1149
  %v1154 = vmul.f32 %v1150, %v1150
  %v1155 = vmul.f32 %v1151, %v1151
  %v1156 = vmul.f32 %v1152, %v1152
  %v1157 = vmul.f32 %v1153, %v1153
  %v1158 = vsel %vm1134, %v1154, 0.0
  %v1159 = vsel %vm1134, %v1155, 0.0
  %v1160 = vadd.f32 %v1158, %v1159
  %v1161 = vsel %vm1134, %v1156, 0.0
  %v1162 = vadd.f32 %v1160, %v1161
  %v1163 = vsel %vm1134, %v1157, 0.0
  %v1164 = vadd.f32 %v1162, %v1163
  %v1165 = vrot.slane %v1164, 4
  %v1166 = vadd.f32 %v1164, %v1165
  %v1167 = vrot.slane %v1166, 2
  %v1168 = vadd.f32 %v1166, %v1167
  %v1169 = vrot.slane %v1168, 1
  %v1170 = vadd.f32 %v1168, %v1169
  %v1171 = vmul.f32 %v1170, %v1148
  %v1172 = vadd.f32 %v1171, 1e-05
  %v1173 = vrsqrt.pop %v1172
  %v1174 = vmul.f32 %v1150, %v1173
  %v1175 = vmul.f32 %v1151, %v1173
  %v1176 = vmul.f32 %v1152, %v1173
  %v1177 = vmul.f32 %v1153, %v1173
  %1178 = vset.pattern.permute.xlu0 2
  %1179 = vperm.xlu0 %1178, %v529
  %v1180 = vpop.permute.xlu0 %1179
  %1182 = vset.pattern.permute.xlu0 2
  %1183 = vperm.xlu0 %1182, %v530
  %v1184 = vpop.permute.xlu0 %1183
  %1186 = vset.pattern.permute.xlu0 2
  %1187 = vperm.xlu0 %1186, %v531
  %v1188 = vpop.permute.xlu0 %1187
  %1190 = vset.pattern.permute.xlu0 2
  %1191 = vperm.xlu0 %1190, %v532
  %v1192 = vpop.permute.xlu0 %1191
  %v1194 = vmul.f32 %v1174, %v1180
  %v1195 = vmul.f32 %v1175, %v1184
  %v1196 = vmul.f32 %v1176, %v1188
  %v1197 = vmul.f32 %v1177, %v1192
  %1198 = vset.pattern.permute.xlu0 3
  %1199 = vperm.xlu0 %1198, %v529
  %v1200 = vpop.permute.xlu0 %1199
  %1202 = vset.pattern.permute.xlu0 3
  %1203 = vperm.xlu0 %1202, %v530
  %v1204 = vpop.permute.xlu0 %1203
  %1206 = vset.pattern.permute.xlu0 3
  %1207 = vperm.xlu0 %1206, %v531
  %v1208 = vpop.permute.xlu0 %1207
  %1210 = vset.pattern.permute.xlu0 3
  %1211 = vperm.xlu0 %1210, %v532
  %v1212 = vpop.permute.xlu0 %1211
  %v1214 = vadd.f32 %v1194, %v1200
  %v1215 = vadd.f32 %v1195, %v1204
  %v1216 = vadd.f32 %v1196, %v1208
  %v1217 = vadd.f32 %v1197, %v1212
  %1218 = vset.pattern.permute.xlu0 7
  %1219 = vperm.xlu0 %1218, %v529
  %v1220 = vpop.permute.xlu0 %1219
  %1222 = vset.pattern.permute.xlu0 7
  %1223 = vperm.xlu0 %1222, %v530
  %v1224 = vpop.permute.xlu0 %1223
  %1226 = vset.pattern.permute.xlu0 7
  %1227 = vperm.xlu0 %1226, %v531
  %v1228 = vpop.permute.xlu0 %1227
  %1230 = vset.pattern.permute.xlu0 7
  %1231 = vperm.xlu0 %1230, %v532
  %v1232 = vpop.permute.xlu0 %1231
  %1235 = vset.pattern.permute.xlu0 7
  %1236 = vperm.xlu0 %1235, %v533
  %v1237 = vpop.permute.xlu0 %1236
  %1240 = vset.pattern.permute.xlu0 7
  %1241 = vperm.xlu0 %1240, %v534
  %v1242 = vpop.permute.xlu0 %1241
  %1245 = vset.pattern.permute.xlu0 7
  %1246 = vperm.xlu0 %1245, %v535
  %v1247 = vpop.permute.xlu0 %1246
  %1250 = vset.pattern.permute.xlu0 7
  %1251 = vperm.xlu0 %1250, %v536
  %v1252 = vpop.permute.xlu0 %1251
  %v1255 = vsel %vm127, %v517, 0
  %v1258 = vsel %vm127, %v518, 0
  %v1261 = vsel %vm127, %v519, 0
  %v1264 = vsel %vm127, %v520, 0
  %v1267 = vsel %vm127, %v521, 0
  %v1270 = vsel %vm127, %v522, 0
  %v1273 = vsel %vm127, %v523, 0
  %v1276 = vsel %vm127, %v524, 0
  %1278 = vmatprep.subr.mxu0 0.0
  %1279 = vmatpush1.msra.mxu0 %v1214
  %1280 = vmatprep.subr.mxu0 0.0
  %1281 = vmatpush1.msra.mxu0 %v1215
  %1282 = vmatprep.subr.mxu0 0.0
  %1283 = vmatpush1.msra.mxu0 %v1216
  %1284 = vmatprep.subr.mxu0 0.0
  %1285 = vmatpush1.msra.mxu0 %v1217
  %1286 = vmatprep.subr.mxu0 0.0
  %1287 = vmatpush1.msra.mxu0 0.0
  %1288 = vmatprep.subr.mxu0 0.0
  %1289 = vmatpush1.msra.mxu0 0.0
  %1290 = vmatprep.subr.mxu0 0.0
  %1291 = vmatpush1.msra.mxu0 0.0
  %1292 = vmatprep.subr.mxu0 0.0
  %1293 = vmatpush1.msra.mxu0 0.0
  %1294 = vmatprep.subr.mxu0 0.0
  %1295 = vmatpush1.msra.mxu0 0.0
  %1296 = vmatprep.subr.mxu0 0.0
  %1297 = vmatpush1.msra.mxu0 0.0
  %1298 = vmatprep.subr.mxu0 0.0
  %1299 = vmatpush1.msra.mxu0 0.0
  %1300 = vmatprep.subr.mxu0 0.0
  %1301 = vmatpush1.msra.mxu0 0.0
  %1302 = vmatprep.subr.mxu0 0.0
  %1303 = vmatpush1.msra.mxu0 0.0
  %1304 = vmatprep.subr.mxu0 0.0
  %1305 = vmatpush1.msra.mxu0 0.0
  %1306 = vmatprep.subr.mxu0 0.0
  %1307 = vmatpush1.msra.mxu0 0.0
  %1308 = vmatprep.subr.mxu0 0.0
  %1309 = vmatpush1.msra.mxu0 0.0
  %1310 = vmatprep.subr.mxu0 0.0
  %1311 = vmatpush1.msra.mxu0 0.0
  %1312 = vmatprep.subr.mxu0 0.0
  %1313 = vmatpush1.msra.mxu0 0.0
  %1314 = vmatprep.subr.mxu0 0.0
  %1315 = vmatpush1.msra.mxu0 0.0
  %1316 = vmatprep.subr.mxu0 0.0
  %1317 = vmatpush1.msra.mxu0 0.0
  %1318 = vmatprep.subr.mxu0 0.0
  %1319 = vmatpush1.msra.mxu0 0.0
  %1320 = vmatprep.subr.mxu0 0.0
  %1321 = vmatpush1.msra.mxu0 0.0
  %1322 = vmatprep.subr.mxu0 0.0
  %1323 = vmatpush1.msra.mxu0 0.0
  %1324 = vmatprep.subr.mxu0 0.0
  %1325 = vmatpush1.msra.mxu0 0.0
  %1326 = vmatprep.subr.mxu0 0.0
  %1327 = vmatpush1.msra.mxu0 0.0
  %1328 = vmatprep.subr.mxu0 0.0
  %1329 = vmatpush1.msra.mxu0 0.0
  %1330 = vmatprep.subr.mxu0 0.0
  %1331 = vmatpush1.msra.mxu0 0.0
  %1332 = vmatprep.subr.mxu0 0.0
  %1333 = vmatpush1.msra.mxu0 0.0
  %1334 = vmatprep.subr.mxu0 0.0
  %1335 = vmatpush1.msra.mxu0 0.0
  %1336 = vmatprep.subr.mxu0 0.0
  %1337 = vmatpush1.msra.mxu0 0.0
  %1338 = vmatprep.subr.mxu0 0.0
  %1339 = vmatpush1.msra.mxu0 0.0
  %1340 = vmatprep.subr.mxu0 0.0
  %1341 = vmatpush1.msra.mxu0 0.0
  %1342 = vmatprep.mubr.f32.mxu0 0.0
  %1343 = vmatmul.mubr.f32.gmra.mrb[0].mxu0 %v1255
  %v1344 = vpop.f32.mrb[0].mxu0
  %v1345 = vadd.f32 %v1220, %v1344
  %v1346 = vpop.f32.mrb[0].mxu0
  %1347 = vmatprep.mubr.f32.mxu0 0.0
  %1348 = vmatmul.mubr.f32.gmra.mrb[0].mxu0 %v1258
  %v1349 = vpop.f32.mrb[0].mxu0
  %v1350 = vadd.f32 %v1224, %v1349
  %v1351 = vpop.f32.mrb[0].mxu0
  %1352 = vmatprep.mubr.f32.mxu0 0.0
  %1353 = vmatmul.mubr.f32.gmra.mrb[0].mxu0 %v1261
  %v1354 = vpop.f32.mrb[0].mxu0
  %v1355 = vadd.f32 %v1228, %v1354
  %v1356 = vpop.f32.mrb[0].mxu0
  %1357 = vmatprep.mubr.f32.mxu0 0.0
  %1358 = vmatmul.mubr.f32.gmra.mrb[0].mxu0 %v1264
  %v1359 = vpop.f32.mrb[0].mxu0
  %v1360 = vadd.f32 %v1232, %v1359
  %v1361 = vpop.f32.mrb[0].mxu0
  %1362 = vmatprep.mubr.f32.mxu0 0.0
  %1363 = vmatmul.mubr.f32.gmra.mrb[0].mxu0 %v1267
  %v1364 = vpop.f32.mrb[0].mxu0
  %v1365 = vadd.f32 %v1237, %v1364
  %v1366 = vpop.f32.mrb[0].mxu0
  %1367 = vmatprep.mubr.f32.mxu0 0.0
  %1368 = vmatmul.mubr.f32.gmra.mrb[0].mxu0 %v1270
  %v1369 = vpop.f32.mrb[0].mxu0
  %v1370 = vadd.f32 %v1242, %v1369
  %v1371 = vpop.f32.mrb[0].mxu0
  %1372 = vmatprep.mubr.f32.mxu0 0.0
  %1373 = vmatmul.mubr.f32.gmra.mrb[0].mxu0 %v1273
  %v1374 = vpop.f32.mrb[0].mxu0
  %v1375 = vadd.f32 %v1247, %v1374
  %v1376 = vpop.f32.mrb[0].mxu0
  %1377 = vmatprep.mubr.f32.mxu0 0.0
  %1378 = vmatmul.mubr.f32.gmra.mrb[0].mxu0 %v1276
  %v1379 = vpop.f32.mrb[0].mxu0
  %v1380 = vadd.f32 %v1252, %v1379
  %v1381 = vpop.f32.mrb[0].mxu0
  %1382 = vdwg.mxu0
  %v1383 = vmax.f32 %v1345, 0.0
  %v1384 = vmax.f32 %v1350, 0.0
  %v1385 = vmax.f32 %v1355, 0.0
  %v1386 = vmax.f32 %v1360, 0.0
  %v1387 = vmax.f32 %v1365, 0.0
  %v1388 = vmax.f32 %v1370, 0.0
  %v1389 = vmax.f32 %v1375, 0.0
  %v1390 = vmax.f32 %v1380, 0.0
  %1391 = vset.pattern.permute.xlu0 4
  %1392 = vperm.xlu0 %1391, %v529
  %v1393 = vpop.permute.xlu0 %1392
  %1395 = vset.pattern.permute.xlu0 4
  %1396 = vperm.xlu0 %1395, %v530
  %v1397 = vpop.permute.xlu0 %1396
  %1399 = vset.pattern.permute.xlu0 4
  %1400 = vperm.xlu0 %1399, %v531
  %v1401 = vpop.permute.xlu0 %1400
  %1403 = vset.pattern.permute.xlu0 4
  %1404 = vperm.xlu0 %1403, %v532
  %v1405 = vpop.permute.xlu0 %1404
  %vm1407 = vcmask 523264
  %v1409 = vsel %vm1407, %v525, 0
  %v1412 = vsel %vm1407, %v526, 0
  %v1415 = vsel %vm1407, %v527, 0
  %v1418 = vsel %vm1407, %v528, 0
  %1420 = vmatprep.subr.mxu0 0.0
  %1421 = vmatpush1.msra.mxu0 %v1383
  %1422 = vmatprep.subr.mxu0 0.0
  %1423 = vmatpush1.msra.mxu0 %v1384
  %1424 = vmatprep.subr.mxu0 0.0
  %1425 = vmatpush1.msra.mxu0 %v1385
  %1426 = vmatprep.subr.mxu0 0.0
  %1427 = vmatpush1.msra.mxu0 %v1386
  %1428 = vmatprep.subr.mxu0 0.0
  %1429 = vmatpush1.msra.mxu0 %v1387
  %1430 = vmatprep.subr.mxu0 0.0
  %1431 = vmatpush1.msra.mxu0 %v1388
  %1432 = vmatprep.subr.mxu0 0.0
  %1433 = vmatpush1.msra.mxu0 %v1389
  %1434 = vmatprep.subr.mxu0 0.0
  %1435 = vmatpush1.msra.mxu0 %v1390
  %1436 = vmatprep.subr.mxu0 0.0
  %1437 = vmatpush1.msra.mxu0 0.0
  %1438 = vmatprep.subr.mxu0 0.0
  %1439 = vmatpush1.msra.mxu0 0.0
  %1440 = vmatprep.subr.mxu0 0.0
  %1441 = vmatpush1.msra.mxu0 0.0
  %1442 = vmatprep.subr.mxu0 0.0
  %1443 = vmatpush1.msra.mxu0 0.0
  %1444 = vmatprep.subr.mxu0 0.0
  %1445 = vmatpush1.msra.mxu0 0.0
  %1446 = vmatprep.subr.mxu0 0.0
  %1447 = vmatpush1.msra.mxu0 0.0
  %1448 = vmatprep.subr.mxu0 0.0
  %1449 = vmatpush1.msra.mxu0 0.0
  %1450 = vmatprep.subr.mxu0 0.0
  %1451 = vmatpush1.msra.mxu0 0.0
  %1452 = vmatprep.subr.mxu0 0.0
  %1453 = vmatpush1.msra.mxu0 0.0
  %1454 = vmatprep.subr.mxu0 0.0
  %1455 = vmatpush1.msra.mxu0 0.0
  %1456 = vmatprep.subr.mxu0 0.0
  %1457 = vmatpush1.msra.mxu0 0.0
  %1458 = vmatprep.subr.mxu0 0.0
  %1459 = vmatpush1.msra.mxu0 0.0
  %1460 = vmatprep.subr.mxu0 0.0
  %1461 = vmatpush1.msra.mxu0 0.0
  %1462 = vmatprep.subr.mxu0 0.0
  %1463 = vmatpush1.msra.mxu0 0.0
  %1464 = vmatprep.subr.mxu0 0.0
  %1465 = vmatpush1.msra.mxu0 0.0
  %1466 = vmatprep.subr.mxu0 0.0
  %1467 = vmatpush1.msra.mxu0 0.0
  %1468 = vmatprep.subr.mxu0 0.0
  %1469 = vmatpush1.msra.mxu0 0.0
  %1470 = vmatprep.subr.mxu0 0.0
  %1471 = vmatpush1.msra.mxu0 0.0
  %1472 = vmatprep.subr.mxu0 0.0
  %1473 = vmatpush1.msra.mxu0 0.0
  %1474 = vmatprep.subr.mxu0 0.0
  %1475 = vmatpush1.msra.mxu0 0.0
  %1476 = vmatprep.subr.mxu0 0.0
  %1477 = vmatpush1.msra.mxu0 0.0
  %1478 = vmatprep.subr.mxu0 0.0
  %1479 = vmatpush1.msra.mxu0 0.0
  %1480 = vmatprep.subr.mxu0 0.0
  %1481 = vmatpush1.msra.mxu0 0.0
  %1482 = vmatprep.subr.mxu0 0.0
  %1483 = vmatpush1.msra.mxu0 0.0
  %1484 = vmatprep.mubr.f32.mxu0 0.0
  %1485 = vmatmul.mubr.f32.gmra.mrb[0].mxu0 %v1409
  %v1486 = vpop.f32.mrb[0].mxu0
  %v1487 = vadd.f32 %v1393, %v1486
  %v1488 = vpop.f32.mrb[0].mxu0
  %1489 = vmatprep.mubr.f32.mxu0 0.0
  %1490 = vmatmul.mubr.f32.gmra.mrb[0].mxu0 %v1412
  %v1491 = vpop.f32.mrb[0].mxu0
  %v1492 = vadd.f32 %v1397, %v1491
  %v1493 = vpop.f32.mrb[0].mxu0
  %1494 = vmatprep.mubr.f32.mxu0 0.0
  %1495 = vmatmul.mubr.f32.gmra.mrb[0].mxu0 %v1415
  %v1496 = vpop.f32.mrb[0].mxu0
  %v1497 = vadd.f32 %v1401, %v1496
  %v1498 = vpop.f32.mrb[0].mxu0
  %1499 = vmatprep.mubr.f32.mxu0 0.0
  %1500 = vmatmul.mubr.f32.gmra.mrb[0].mxu0 %v1418
  %v1501 = vpop.f32.mrb[0].mxu0
  %v1502 = vadd.f32 %v1405, %v1501
  %v1503 = vpop.f32.mrb[0].mxu0
  %1504 = vdwg.mxu0
  %v1505 = vadd.f32 %v1214, %v1487
  %v1506 = vadd.f32 %v1215, %v1492
  %v1507 = vadd.f32 %v1216, %v1497
  %v1508 = vadd.f32 %v1217, %v1502
  %v1509 = vsel %vm1134, %v1505, 0.0
  %v1510 = vsel %vm1134, %v1506, 0.0
  %v1511 = vadd.f32 %v1509, %v1510
  %v1512 = vsel %vm1134, %v1507, 0.0
  %v1513 = vadd.f32 %v1511, %v1512
  %v1514 = vsel %vm1134, %v1508, 0.0
  %v1515 = vadd.f32 %v1513, %v1514
  %v1516 = vrot.slane %v1515, 4
  %v1517 = vadd.f32 %v1515, %v1516
  %v1518 = vrot.slane %v1517, 2
  %v1519 = vadd.f32 %v1517, %v1518
  %v1520 = vrot.slane %v1519, 1
  %v1521 = vadd.f32 %v1519, %v1520
  %v1522 = vmul.f32 %v1521, %v1148
  %v1523 = vsub.f32 %v1505, %v1522
  %v1524 = vsub.f32 %v1506, %v1522
  %v1525 = vsub.f32 %v1507, %v1522
  %v1526 = vsub.f32 %v1508, %v1522
  %v1527 = vmul.f32 %v1523, %v1523
  %v1528 = vmul.f32 %v1524, %v1524
  %v1529 = vmul.f32 %v1525, %v1525
  %v1530 = vmul.f32 %v1526, %v1526
  %v1531 = vsel %vm1134, %v1527, 0.0
  %v1532 = vsel %vm1134, %v1528, 0.0
  %v1533 = vadd.f32 %v1531, %v1532
  %v1534 = vsel %vm1134, %v1529, 0.0
  %v1535 = vadd.f32 %v1533, %v1534
  %v1536 = vsel %vm1134, %v1530, 0.0
  %v1537 = vadd.f32 %v1535, %v1536
  %v1538 = vrot.slane %v1537, 4
  %v1539 = vadd.f32 %v1537, %v1538
  %v1540 = vrot.slane %v1539, 2
  %v1541 = vadd.f32 %v1539, %v1540
  %v1542 = vrot.slane %v1541, 1
  %v1543 = vadd.f32 %v1541, %v1542
  %v1544 = vmul.f32 %v1543, %v1148
  %v1545 = vadd.f32 %v1544, 1e-05
  %v1546 = vrsqrt.pop %v1545
  %v1547 = vmul.f32 %v1523, %v1546
  %v1548 = vmul.f32 %v1524, %v1546
  %v1549 = vmul.f32 %v1525, %v1546
  %v1550 = vmul.f32 %v1526, %v1546
  %1551 = vset.pattern.permute.xlu0 5
  %1552 = vperm.xlu0 %1551, %v529
  %v1553 = vpop.permute.xlu0 %1552
  %1555 = vset.pattern.permute.xlu0 5
  %1556 = vperm.xlu0 %1555, %v530
  %v1557 = vpop.permute.xlu0 %1556
  %1559 = vset.pattern.permute.xlu0 5
  %1560 = vperm.xlu0 %1559, %v531
  %v1561 = vpop.permute.xlu0 %1560
  %1563 = vset.pattern.permute.xlu0 5
  %1564 = vperm.xlu0 %1563, %v532
  %v1565 = vpop.permute.xlu0 %1564
  %v1567 = vmul.f32 %v1547, %v1553
  %v1568 = vmul.f32 %v1548, %v1557
  %v1569 = vmul.f32 %v1549, %v1561
  %v1570 = vmul.f32 %v1550, %v1565
  %1571 = vset.pattern.permute.xlu0 6
  %1572 = vperm.xlu0 %1571, %v529
  %v1573 = vpop.permute.xlu0 %1572
  %1575 = vset.pattern.permute.xlu0 6
  %1576 = vperm.xlu0 %1575, %v530
  %v1577 = vpop.permute.xlu0 %1576
  %1579 = vset.pattern.permute.xlu0 6
  %1580 = vperm.xlu0 %1579, %v531
  %v1581 = vpop.permute.xlu0 %1580
  %1583 = vset.pattern.permute.xlu0 6
  %1584 = vperm.xlu0 %1583, %v532
  %v1585 = vpop.permute.xlu0 %1584
  %v1587 = vadd.f32 %v1567, %v1573
  %v1588 = vadd.f32 %v1568, %v1577
  %v1589 = vadd.f32 %v1569, %v1581
  %v1590 = vadd.f32 %v1570, %v1585
  %s1591 = scalar_lea.vmem %s3, 128
  %v1592 = vld [vmem:[%s1591] sm:$0xff]
  %v1593 = vld [vmem:[%s1591 + $0x8] sm:$0xff]
  %v1594 = vld [vmem:[%s1591 + $0x10] sm:$0xff]
  %v1595 = vld [vmem:[%s1591 + $0x18] sm:$0xff]
  %v1596 = vld [vmem:[%s1591 + $0x20] sm:$0xff]
  %v1597 = vld [vmem:[%s1591 + $0x28] sm:$0xff]
  %v1598 = vld [vmem:[%s1591 + $0x30] sm:$0xff]
  %v1599 = vld [vmem:[%s1591 + $0x38] sm:$0xff]
  %v1600 = vld [vmem:[%s1591 + $0x40] sm:$0xff]
  %v1601 = vld [vmem:[%s1591 + $0x48] sm:$0xff]
  %v1602 = vld [vmem:[%s1591 + $0x50] sm:$0xff]
  %v1603 = vld [vmem:[%s1591 + $0x58] sm:$0xff]
  %v1604 = vld [vmem:[%s1591 + $0x60] sm:$0xff]
  %v1605 = vld [vmem:[%s1591 + $0x68] sm:$0xff]
  %v1606 = vld [vmem:[%s1591 + $0x70] sm:$0xff]
  %v1607 = vld [vmem:[%s1591 + $0x78] sm:$0xff]
  %s1608 = scalar_lea.vmem %s4, 32
  %v1609 = vld [vmem:[%s1608] sm:$0xff]
  %v1610 = vld [vmem:[%s1608 + $0x8] sm:$0xff]
  %v1611 = vld [vmem:[%s1608 + $0x10] sm:$0xff]
  %v1612 = vld [vmem:[%s1608 + $0x18] sm:$0xff]
  %s1613 = scalar_lea.vmem %s5, 64
  %v1614 = vld [vmem:[%s1613] sm:$0xff]
  %v1615 = vld [vmem:[%s1613 + $0x8] sm:$0xff]
  %v1616 = vld [vmem:[%s1613 + $0x10] sm:$0xff]
  %v1617 = vld [vmem:[%s1613 + $0x18] sm:$0xff]
  %v1618 = vld [vmem:[%s1613 + $0x20] sm:$0xff]
  %v1619 = vld [vmem:[%s1613 + $0x28] sm:$0xff]
  %v1620 = vld [vmem:[%s1613 + $0x30] sm:$0xff]
  %v1621 = vld [vmem:[%s1613 + $0x38] sm:$0xff]
  %1623 = vset.pattern.permute.xlu0 0
  %1624 = vperm.xlu0 %1623, %v1614
  %v1625 = vpop.permute.xlu0 %1624
  %1628 = vset.pattern.permute.xlu0 0
  %1629 = vperm.xlu0 %1628, %v1615
  %v1630 = vpop.permute.xlu0 %1629
  %1633 = vset.pattern.permute.xlu0 0
  %1634 = vperm.xlu0 %1633, %v1616
  %v1635 = vpop.permute.xlu0 %1634
  %1638 = vset.pattern.permute.xlu0 0
  %1639 = vperm.xlu0 %1638, %v1617
  %v1640 = vpop.permute.xlu0 %1639
  %v1643 = vsel %vm127, %v1592, 0
  %v1646 = vsel %vm127, %v1593, 0
  %v1649 = vsel %vm127, %v1594, 0
  %v1652 = vsel %vm127, %v1595, 0
  %1654 = vmatprep.subr.mxu0 0.0
  %1655 = vmatpush1.msra.mxu0 %v1587
  %1656 = vmatprep.subr.mxu0 0.0
  %1657 = vmatpush1.msra.mxu0 %v1588
  %1658 = vmatprep.subr.mxu0 0.0
  %1659 = vmatpush1.msra.mxu0 %v1589
  %1660 = vmatprep.subr.mxu0 0.0
  %1661 = vmatpush1.msra.mxu0 %v1590
  %1662 = vmatprep.subr.mxu0 0.0
  %1663 = vmatpush1.msra.mxu0 0.0
  %1664 = vmatprep.subr.mxu0 0.0
  %1665 = vmatpush1.msra.mxu0 0.0
  %1666 = vmatprep.subr.mxu0 0.0
  %1667 = vmatpush1.msra.mxu0 0.0
  %1668 = vmatprep.subr.mxu0 0.0
  %1669 = vmatpush1.msra.mxu0 0.0
  %1670 = vmatprep.subr.mxu0 0.0
  %1671 = vmatpush1.msra.mxu0 0.0
  %1672 = vmatprep.subr.mxu0 0.0
  %1673 = vmatpush1.msra.mxu0 0.0
  %1674 = vmatprep.subr.mxu0 0.0
  %1675 = vmatpush1.msra.mxu0 0.0
  %1676 = vmatprep.subr.mxu0 0.0
  %1677 = vmatpush1.msra.mxu0 0.0
  %1678 = vmatprep.subr.mxu0 0.0
  %1679 = vmatpush1.msra.mxu0 0.0
  %1680 = vmatprep.subr.mxu0 0.0
  %1681 = vmatpush1.msra.mxu0 0.0
  %1682 = vmatprep.subr.mxu0 0.0
  %1683 = vmatpush1.msra.mxu0 0.0
  %1684 = vmatprep.subr.mxu0 0.0
  %1685 = vmatpush1.msra.mxu0 0.0
  %1686 = vmatprep.subr.mxu0 0.0
  %1687 = vmatpush1.msra.mxu0 0.0
  %1688 = vmatprep.subr.mxu0 0.0
  %1689 = vmatpush1.msra.mxu0 0.0
  %1690 = vmatprep.subr.mxu0 0.0
  %1691 = vmatpush1.msra.mxu0 0.0
  %1692 = vmatprep.subr.mxu0 0.0
  %1693 = vmatpush1.msra.mxu0 0.0
  %1694 = vmatprep.subr.mxu0 0.0
  %1695 = vmatpush1.msra.mxu0 0.0
  %1696 = vmatprep.subr.mxu0 0.0
  %1697 = vmatpush1.msra.mxu0 0.0
  %1698 = vmatprep.subr.mxu0 0.0
  %1699 = vmatpush1.msra.mxu0 0.0
  %1700 = vmatprep.subr.mxu0 0.0
  %1701 = vmatpush1.msra.mxu0 0.0
  %1702 = vmatprep.subr.mxu0 0.0
  %1703 = vmatpush1.msra.mxu0 0.0
  %1704 = vmatprep.subr.mxu0 0.0
  %1705 = vmatpush1.msra.mxu0 0.0
  %1706 = vmatprep.subr.mxu0 0.0
  %1707 = vmatpush1.msra.mxu0 0.0
  %1708 = vmatprep.subr.mxu0 0.0
  %1709 = vmatpush1.msra.mxu0 0.0
  %1710 = vmatprep.subr.mxu0 0.0
  %1711 = vmatpush1.msra.mxu0 0.0
  %1712 = vmatprep.subr.mxu0 0.0
  %1713 = vmatpush1.msra.mxu0 0.0
  %1714 = vmatprep.subr.mxu0 0.0
  %1715 = vmatpush1.msra.mxu0 0.0
  %1716 = vmatprep.subr.mxu0 0.0
  %1717 = vmatpush1.msra.mxu0 0.0
  %1718 = vmatprep.mubr.f32.mxu0 0.0
  %1719 = vmatmul.mubr.f32.gmra.mrb[0].mxu0 %v1643
  %v1720 = vpop.f32.mrb[0].mxu0
  %v1721 = vadd.f32 %v1625, %v1720
  %v1722 = vpop.f32.mrb[0].mxu0
  %1723 = vmatprep.mubr.f32.mxu0 0.0
  %1724 = vmatmul.mubr.f32.gmra.mrb[0].mxu0 %v1646
  %v1725 = vpop.f32.mrb[0].mxu0
  %v1726 = vadd.f32 %v1630, %v1725
  %v1727 = vpop.f32.mrb[0].mxu0
  %1728 = vmatprep.mubr.f32.mxu0 0.0
  %1729 = vmatmul.mubr.f32.gmra.mrb[0].mxu0 %v1649
  %v1730 = vpop.f32.mrb[0].mxu0
  %v1731 = vadd.f32 %v1635, %v1730
  %v1732 = vpop.f32.mrb[0].mxu0
  %1733 = vmatprep.mubr.f32.mxu0 0.0
  %1734 = vmatmul.mubr.f32.gmra.mrb[0].mxu0 %v1652
  %v1735 = vpop.f32.mrb[0].mxu0
  %v1736 = vadd.f32 %v1640, %v1735
  %v1737 = vpop.f32.mrb[0].mxu0
  %1738 = vdwg.mxu0
  %v1739 = vld [vmem:[#allocation2 + $0x40] sm:$0xff]
  %v1740 = vld [vmem:[#allocation2 + $0x48] sm:$0xff]
  %v1741 = vld [vmem:[#allocation2 + $0x50] sm:$0xff]
  %v1742 = vld [vmem:[#allocation2 + $0x58] sm:$0xff]
  %v1743 = vld [vmem:[#allocation2 + $0x60] sm:$0xff]
  %v1744 = vld [vmem:[#allocation2 + $0x68] sm:$0xff]
  %v1745 = vld [vmem:[#allocation2 + $0x70] sm:$0xff]
  %v1746 = vld [vmem:[#allocation2 + $0x78] sm:$0xff]
  %1748 = vset.pattern.permute.xlu0 0
  %1749 = vperm.xlu0 %1748, %v1721
  %v1750 = vpop.permute.xlu0 %1749
  %1753 = vset.pattern.permute.xlu0 0
  %1754 = vperm.xlu0 %1753, %v1726
  %v1755 = vpop.permute.xlu0 %1754
  %1758 = vset.pattern.permute.xlu0 0
  %1759 = vperm.xlu0 %1758, %v1731
  %v1760 = vpop.permute.xlu0 %1759
  %1763 = vset.pattern.permute.xlu0 0
  %1764 = vperm.xlu0 %1763, %v1736
  %v1765 = vpop.permute.xlu0 %1764
  %v1767 = vmul.f32 %v1739, %v1750
  %v1768 = vmul.f32 %v1740, %v1755
  %v1769 = vmul.f32 %v1741, %v1760
  %v1770 = vmul.f32 %v1742, %v1765
  %1771 = vmatprep.subr.mxu0 0.0
  %1772 = vmatpush1.msra.mxu0 %v1767
  %1773 = vmatprep.subr.mxu0 0.0
  %1774 = vmatpush1.msra.mxu0 %v1768
  %1775 = vmatprep.subr.mxu0 0.0
  %1776 = vmatpush1.msra.mxu0 %v1769
  %1777 = vmatprep.subr.mxu0 0.0
  %1778 = vmatpush1.msra.mxu0 %v1770
  %1779 = vmatprep.subr.mxu0 0.0
  %1780 = vmatpush1.msra.mxu0 0.0
  %1781 = vmatprep.subr.mxu0 0.0
  %1782 = vmatpush1.msra.mxu0 0.0
  %1783 = vmatprep.subr.mxu0 0.0
  %1784 = vmatpush1.msra.mxu0 0.0
  %1785 = vmatprep.subr.mxu0 0.0
  %1786 = vmatpush1.msra.mxu0 0.0
  %1787 = vmatprep.subr.mxu0 0.0
  %1788 = vmatpush1.msra.mxu0 0.0
  %1789 = vmatprep.subr.mxu0 0.0
  %1790 = vmatpush1.msra.mxu0 0.0
  %1791 = vmatprep.subr.mxu0 0.0
  %1792 = vmatpush1.msra.mxu0 0.0
  %1793 = vmatprep.subr.mxu0 0.0
  %1794 = vmatpush1.msra.mxu0 0.0
  %1795 = vmatprep.subr.mxu0 0.0
  %1796 = vmatpush1.msra.mxu0 0.0
  %1797 = vmatprep.subr.mxu0 0.0
  %1798 = vmatpush1.msra.mxu0 0.0
  %1799 = vmatprep.subr.mxu0 0.0
  %1800 = vmatpush1.msra.mxu0 0.0
  %1801 = vmatprep.subr.mxu0 0.0
  %1802 = vmatpush1.msra.mxu0 0.0
  %1803 = vmatprep.subr.mxu0 0.0
  %1804 = vmatpush1.msra.mxu0 0.0
  %1805 = vmatprep.subr.mxu0 0.0
  %1806 = vmatpush1.msra.mxu0 0.0
  %1807 = vmatprep.subr.mxu0 0.0
  %1808 = vmatpush1.msra.mxu0 0.0
  %1809 = vmatprep.subr.mxu0 0.0
  %1810 = vmatpush1.msra.mxu0 0.0
  %1811 = vmatprep.subr.mxu0 0.0
  %1812 = vmatpush1.msra.mxu0 0.0
  %1813 = vmatprep.subr.mxu0 0.0
  %1814 = vmatpush1.msra.mxu0 0.0
  %1815 = vmatprep.subr.mxu0 0.0
  %1816 = vmatpush1.msra.mxu0 0.0
  %1817 = vmatprep.subr.mxu0 0.0
  %1818 = vmatpush1.msra.mxu0 0.0
  %1819 = vmatprep.subr.mxu0 0.0
  %1820 = vmatpush1.msra.mxu0 0.0
  %1821 = vmatprep.subr.mxu0 0.0
  %1822 = vmatpush1.msra.mxu0 0.0
  %1823 = vmatprep.subr.mxu0 0.0
  %1824 = vmatpush1.msra.mxu0 0.0
  %1825 = vmatprep.subr.mxu0 0.0
  %1826 = vmatpush1.msra.mxu0 0.0
  %1827 = vmatprep.subr.mxu0 0.0
  %1828 = vmatpush1.msra.mxu0 0.0
  %1829 = vmatprep.subr.mxu0 0.0
  %1830 = vmatpush1.msra.mxu0 0.0
  %1831 = vmatprep.subr.mxu0 0.0
  %1832 = vmatpush1.msra.mxu0 0.0
  %1833 = vmatprep.subr.mxu0 0.0
  %1834 = vmatpush1.msra.mxu0 0.0
  %1835 = vmatprep.mubr.f32.mxu0 0.0
  %1836 = vmatmul.mubr.f32.gmra.mrb[0].mxu0 %v686
  %v1837 = vpop.f32.mrb[0].mxu0
  %v1838 = vadd.f32 0.0, %v1837
  %v1839 = vpop.f32.mrb[0].mxu0
  %1840 = vmatprep.mubr.f32.mxu0 0.0
  %1841 = vmatmul.mubr.f32.gmra.mrb[0].mxu0 %v688
  %v1842 = vpop.f32.mrb[0].mxu0
  %v1843 = vadd.f32 0.0, %v1842
  %v1844 = vpop.f32.mrb[0].mxu0
  %1845 = vmatprep.mubr.f32.mxu0 0.0
  %1846 = vmatmul.mubr.f32.gmra.mrb[0].mxu0 %v690
  %v1847 = vpop.f32.mrb[0].mxu0
  %v1848 = vadd.f32 0.0, %v1847
  %v1849 = vpop.f32.mrb[0].mxu0
  %1850 = vmatprep.mubr.f32.mxu0 0.0
  %1851 = vmatmul.mubr.f32.gmra.mrb[0].mxu0 %v692
  %v1852 = vpop.f32.mrb[0].mxu0
  %v1853 = vadd.f32 0.0, %v1852
  %v1854 = vpop.f32.mrb[0].mxu0
  %1855 = vdwg.mxu0
  %v1856 = vsel %vm305, %v1838, -inf
  %1857 = vmax.xlane.f32.xlu0 %v1856
  %v1858 = vpop.xlane.xlu0 %1857
  %v1859 = vsel %vm305, %v1843, -inf
  %1860 = vmax.xlane.f32.xlu0 %v1859
  %v1861 = vpop.xlane.xlu0 %1860
  %v1862 = vsel %vm305, %v1848, -inf
  %1863 = vmax.xlane.f32.xlu0 %v1862
  %v1864 = vpop.xlane.xlu0 %1863
  %v1865 = vsel %vm305, %v1853, -inf
  %1866 = vmax.xlane.f32.xlu0 %v1865
  %v1867 = vpop.xlane.xlu0 %1866
  %v1868 = vsub.f32 %v1838, %v1858
  %v1869 = vsub.f32 %v1843, %v1861
  %v1870 = vsub.f32 %v1848, %v1864
  %v1871 = vsub.f32 %v1853, %v1867
  %v1872 = vmul.f32 %v1868, 1.442695
  %v1873 = vpow.pop %v1872
  %v1874 = vmul.f32 %v1869, 1.442695
  %v1875 = vpow.pop %v1874
  %v1876 = vmul.f32 %v1870, 1.442695
  %v1877 = vpow.pop %v1876
  %v1878 = vmul.f32 %v1871, 1.442695
  %v1879 = vpow.pop %v1878
  %v1880 = vsel %vm305, %v1873, 0.0
  %1881 = vadd.xlane.f32.xlu0 %v1880
  %v1882 = vpop.xlane.xlu0 %1881
  %v1883 = vsel %vm305, %v1875, 0.0
  %1884 = vadd.xlane.f32.xlu0 %v1883
  %v1885 = vpop.xlane.xlu0 %1884
  %v1886 = vsel %vm305, %v1877, 0.0
  %1887 = vadd.xlane.f32.xlu0 %v1886
  %v1888 = vpop.xlane.xlu0 %1887
  %v1889 = vsel %vm305, %v1879, 0.0
  %1890 = vadd.xlane.f32.xlu0 %v1889
  %v1891 = vpop.xlane.xlu0 %1890
  %v1892 = vrcp.pop %v1882
  %v1893 = vrcp.pop %v1885
  %v1894 = vrcp.pop %v1888
  %v1895 = vrcp.pop %v1891
  %v1896 = vmul.f32 %v1873, %v1892
  %v1897 = vmul.f32 %v1875, %v1893
  %v1898 = vmul.f32 %v1877, %v1894
  %v1899 = vmul.f32 %v1879, %v1895
  %v1900 = vmul.f32 %v1896, %v1743
  %v1901 = vmul.f32 %v1897, %v1744
  %v1902 = vmul.f32 %v1898, %v1745
  %v1903 = vmul.f32 %v1899, %v1746
  %v1904 = vsel %vm305, %v1900, 0.0
  %1905 = vadd.xlane.f32.xlu0 %v1904
  %v1906 = vpop.xlane.xlu0 %1905
  %v1907 = vsel %vm305, %v1901, 0.0
  %1908 = vadd.xlane.f32.xlu0 %v1907
  %v1909 = vpop.xlane.xlu0 %1908
  %v1910 = vsel %vm305, %v1902, 0.0
  %1911 = vadd.xlane.f32.xlu0 %v1910
  %v1912 = vpop.xlane.xlu0 %1911
  %v1913 = vsel %vm305, %v1903, 0.0
  %1914 = vadd.xlane.f32.xlu0 %v1913
  %v1915 = vpop.xlane.xlu0 %1914
  %v1916 = vld [vmem:[%s472 + $0x40] sm:$0xff]
  %v1917 = vld [vmem:[%s472 + $0x48] sm:$0xff]
  %v1918 = vld [vmem:[%s472 + $0x50] sm:$0xff]
  %v1919 = vld [vmem:[%s472 + $0x58] sm:$0xff]
  %v1920 = vld [vmem:[%s472 + $0x60] sm:$0xff]
  %v1921 = vld [vmem:[%s472 + $0x68] sm:$0xff]
  %v1922 = vld [vmem:[%s472 + $0x70] sm:$0xff]
  %v1923 = vld [vmem:[%s472 + $0x78] sm:$0xff]
  %1924 = vset.pattern.permute.xlu0 1
  %1925 = vperm.xlu0 %1924, %v1721
  %v1926 = vpop.permute.xlu0 %1925
  %1928 = vset.pattern.permute.xlu0 1
  %1929 = vperm.xlu0 %1928, %v1726
  %v1930 = vpop.permute.xlu0 %1929
  %1932 = vset.pattern.permute.xlu0 1
  %1933 = vperm.xlu0 %1932, %v1731
  %v1934 = vpop.permute.xlu0 %1933
  %1936 = vset.pattern.permute.xlu0 1
  %1937 = vperm.xlu0 %1936, %v1736
  %v1938 = vpop.permute.xlu0 %1937
  %v1940 = vmul.f32 %v1916, %v1926
  %v1941 = vmul.f32 %v1917, %v1930
  %v1942 = vmul.f32 %v1918, %v1934
  %v1943 = vmul.f32 %v1919, %v1938
  %1944 = vmatprep.subr.mxu0 0.0
  %1945 = vmatpush1.msra.mxu0 %v1940
  %1946 = vmatprep.subr.mxu0 0.0
  %1947 = vmatpush1.msra.mxu0 %v1941
  %1948 = vmatprep.subr.mxu0 0.0
  %1949 = vmatpush1.msra.mxu0 %v1942
  %1950 = vmatprep.subr.mxu0 0.0
  %1951 = vmatpush1.msra.mxu0 %v1943
  %1952 = vmatprep.subr.mxu0 0.0
  %1953 = vmatpush1.msra.mxu0 0.0
  %1954 = vmatprep.subr.mxu0 0.0
  %1955 = vmatpush1.msra.mxu0 0.0
  %1956 = vmatprep.subr.mxu0 0.0
  %1957 = vmatpush1.msra.mxu0 0.0
  %1958 = vmatprep.subr.mxu0 0.0
  %1959 = vmatpush1.msra.mxu0 0.0
  %1960 = vmatprep.subr.mxu0 0.0
  %1961 = vmatpush1.msra.mxu0 0.0
  %1962 = vmatprep.subr.mxu0 0.0
  %1963 = vmatpush1.msra.mxu0 0.0
  %1964 = vmatprep.subr.mxu0 0.0
  %1965 = vmatpush1.msra.mxu0 0.0
  %1966 = vmatprep.subr.mxu0 0.0
  %1967 = vmatpush1.msra.mxu0 0.0
  %1968 = vmatprep.subr.mxu0 0.0
  %1969 = vmatpush1.msra.mxu0 0.0
  %1970 = vmatprep.subr.mxu0 0.0
  %1971 = vmatpush1.msra.mxu0 0.0
  %1972 = vmatprep.subr.mxu0 0.0
  %1973 = vmatpush1.msra.mxu0 0.0
  %1974 = vmatprep.subr.mxu0 0.0
  %1975 = vmatpush1.msra.mxu0 0.0
  %1976 = vmatprep.subr.mxu0 0.0
  %1977 = vmatpush1.msra.mxu0 0.0
  %1978 = vmatprep.subr.mxu0 0.0
  %1979 = vmatpush1.msra.mxu0 0.0
  %1980 = vmatprep.subr.mxu0 0.0
  %1981 = vmatpush1.msra.mxu0 0.0
  %1982 = vmatprep.subr.mxu0 0.0
  %1983 = vmatpush1.msra.mxu0 0.0
  %1984 = vmatprep.subr.mxu0 0.0
  %1985 = vmatpush1.msra.mxu0 0.0
  %1986 = vmatprep.subr.mxu0 0.0
  %1987 = vmatpush1.msra.mxu0 0.0
  %1988 = vmatprep.subr.mxu0 0.0
  %1989 = vmatpush1.msra.mxu0 0.0
  %1990 = vmatprep.subr.mxu0 0.0
  %1991 = vmatpush1.msra.mxu0 0.0
  %1992 = vmatprep.subr.mxu0 0.0
  %1993 = vmatpush1.msra.mxu0 0.0
  %1994 = vmatprep.subr.mxu0 0.0
  %1995 = vmatpush1.msra.mxu0 0.0
  %1996 = vmatprep.subr.mxu0 0.0
  %1997 = vmatpush1.msra.mxu0 0.0
  %1998 = vmatprep.subr.mxu0 0.0
  %1999 = vmatpush1.msra.mxu0 0.0
  %2000 = vmatprep.subr.mxu0 0.0
  %2001 = vmatpush1.msra.mxu0 0.0
  %2002 = vmatprep.subr.mxu0 0.0
  %2003 = vmatpush1.msra.mxu0 0.0
  %2004 = vmatprep.subr.mxu0 0.0
  %2005 = vmatpush1.msra.mxu0 0.0
  %2006 = vmatprep.subr.mxu0 0.0
  %2007 = vmatpush1.msra.mxu0 0.0
  %2008 = vmatprep.mubr.f32.mxu0 0.0
  %2009 = vmatmul.mubr.f32.gmra.mrb[0].mxu0 %v686
  %v2010 = vpop.f32.mrb[0].mxu0
  %v2011 = vadd.f32 0.0, %v2010
  %v2012 = vpop.f32.mrb[0].mxu0
  %2013 = vmatprep.mubr.f32.mxu0 0.0
  %2014 = vmatmul.mubr.f32.gmra.mrb[0].mxu0 %v688
  %v2015 = vpop.f32.mrb[0].mxu0
  %v2016 = vadd.f32 0.0, %v2015
  %v2017 = vpop.f32.mrb[0].mxu0
  %2018 = vmatprep.mubr.f32.mxu0 0.0
  %2019 = vmatmul.mubr.f32.gmra.mrb[0].mxu0 %v690
  %v2020 = vpop.f32.mrb[0].mxu0
  %v2021 = vadd.f32 0.0, %v2020
  %v2022 = vpop.f32.mrb[0].mxu0
  %2023 = vmatprep.mubr.f32.mxu0 0.0
  %2024 = vmatmul.mubr.f32.gmra.mrb[0].mxu0 %v692
  %v2025 = vpop.f32.mrb[0].mxu0
  %v2026 = vadd.f32 0.0, %v2025
  %v2027 = vpop.f32.mrb[0].mxu0
  %2028 = vdwg.mxu0
  %v2029 = vsel %vm305, %v2011, -inf
  %2030 = vmax.xlane.f32.xlu0 %v2029
  %v2031 = vpop.xlane.xlu0 %2030
  %v2032 = vsel %vm305, %v2016, -inf
  %2033 = vmax.xlane.f32.xlu0 %v2032
  %v2034 = vpop.xlane.xlu0 %2033
  %v2035 = vsel %vm305, %v2021, -inf
  %2036 = vmax.xlane.f32.xlu0 %v2035
  %v2037 = vpop.xlane.xlu0 %2036
  %v2038 = vsel %vm305, %v2026, -inf
  %2039 = vmax.xlane.f32.xlu0 %v2038
  %v2040 = vpop.xlane.xlu0 %2039
  %v2041 = vsub.f32 %v2011, %v2031
  %v2042 = vsub.f32 %v2016, %v2034
  %v2043 = vsub.f32 %v2021, %v2037
  %v2044 = vsub.f32 %v2026, %v2040
  %v2045 = vmul.f32 %v2041, 1.442695
  %v2046 = vpow.pop %v2045
  %v2047 = vmul.f32 %v2042, 1.442695
  %v2048 = vpow.pop %v2047
  %v2049 = vmul.f32 %v2043, 1.442695
  %v2050 = vpow.pop %v2049
  %v2051 = vmul.f32 %v2044, 1.442695
  %v2052 = vpow.pop %v2051
  %v2053 = vsel %vm305, %v2046, 0.0
  %2054 = vadd.xlane.f32.xlu0 %v2053
  %v2055 = vpop.xlane.xlu0 %2054
  %v2056 = vsel %vm305, %v2048, 0.0
  %2057 = vadd.xlane.f32.xlu0 %v2056
  %v2058 = vpop.xlane.xlu0 %2057
  %v2059 = vsel %vm305, %v2050, 0.0
  %2060 = vadd.xlane.f32.xlu0 %v2059
  %v2061 = vpop.xlane.xlu0 %2060
  %v2062 = vsel %vm305, %v2052, 0.0
  %2063 = vadd.xlane.f32.xlu0 %v2062
  %v2064 = vpop.xlane.xlu0 %2063
  %v2065 = vrcp.pop %v2055
  %v2066 = vrcp.pop %v2058
  %v2067 = vrcp.pop %v2061
  %v2068 = vrcp.pop %v2064
  %v2069 = vmul.f32 %v2046, %v2065
  %v2070 = vmul.f32 %v2048, %v2066
  %v2071 = vmul.f32 %v2050, %v2067
  %v2072 = vmul.f32 %v2052, %v2068
  %v2073 = vmul.f32 %v2069, %v1920
  %v2074 = vmul.f32 %v2070, %v1921
  %v2075 = vmul.f32 %v2071, %v1922
  %v2076 = vmul.f32 %v2072, %v1923
  %v2077 = vsel %vm305, %v2073, 0.0
  %2078 = vadd.xlane.f32.xlu0 %v2077
  %v2079 = vpop.xlane.xlu0 %2078
  %v2080 = vsel %vm305, %v2074, 0.0
  %2081 = vadd.xlane.f32.xlu0 %v2080
  %v2082 = vpop.xlane.xlu0 %2081
  %v2083 = vsel %vm305, %v2075, 0.0
  %2084 = vadd.xlane.f32.xlu0 %v2083
  %v2085 = vpop.xlane.xlu0 %2084
  %v2086 = vsel %vm305, %v2076, 0.0
  %2087 = vadd.xlane.f32.xlu0 %v2086
  %v2088 = vpop.xlane.xlu0 %2087
  %v2089 = vsel %vm1012, %v1906, %v2079
  %v2090 = vsel %vm1012, %v1909, %v2082
  %v2091 = vsel %vm1012, %v1912, %v2085
  %v2092 = vsel %vm1012, %v1915, %v2088
  %2093 = vset.pattern.permute.xlu0 1
  %2094 = vperm.xlu0 %2093, %v1614
  %v2095 = vpop.permute.xlu0 %2094
  %2097 = vset.pattern.permute.xlu0 1
  %2098 = vperm.xlu0 %2097, %v1615
  %v2099 = vpop.permute.xlu0 %2098
  %2101 = vset.pattern.permute.xlu0 1
  %2102 = vperm.xlu0 %2101, %v1616
  %v2103 = vpop.permute.xlu0 %2102
  %2105 = vset.pattern.permute.xlu0 1
  %2106 = vperm.xlu0 %2105, %v1617
  %v2107 = vpop.permute.xlu0 %2106
  %v2110 = vsel %vm127, %v1596, 0
  %v2113 = vsel %vm127, %v1597, 0
  %v2116 = vsel %vm127, %v1598, 0
  %v2119 = vsel %vm127, %v1599, 0
  %2121 = vmatprep.subr.mxu0 0.0
  %2122 = vmatpush1.msra.mxu0 %v2089
  %2123 = vmatprep.subr.mxu0 0.0
  %2124 = vmatpush1.msra.mxu0 %v2090
  %2125 = vmatprep.subr.mxu0 0.0
  %2126 = vmatpush1.msra.mxu0 %v2091
  %2127 = vmatprep.subr.mxu0 0.0
  %2128 = vmatpush1.msra.mxu0 %v2092
  %2129 = vmatprep.subr.mxu0 0.0
  %2130 = vmatpush1.msra.mxu0 0.0
  %2131 = vmatprep.subr.mxu0 0.0
  %2132 = vmatpush1.msra.mxu0 0.0
  %2133 = vmatprep.subr.mxu0 0.0
  %2134 = vmatpush1.msra.mxu0 0.0
  %2135 = vmatprep.subr.mxu0 0.0
  %2136 = vmatpush1.msra.mxu0 0.0
  %2137 = vmatprep.subr.mxu0 0.0
  %2138 = vmatpush1.msra.mxu0 0.0
  %2139 = vmatprep.subr.mxu0 0.0
  %2140 = vmatpush1.msra.mxu0 0.0
  %2141 = vmatprep.subr.mxu0 0.0
  %2142 = vmatpush1.msra.mxu0 0.0
  %2143 = vmatprep.subr.mxu0 0.0
  %2144 = vmatpush1.msra.mxu0 0.0
  %2145 = vmatprep.subr.mxu0 0.0
  %2146 = vmatpush1.msra.mxu0 0.0
  %2147 = vmatprep.subr.mxu0 0.0
  %2148 = vmatpush1.msra.mxu0 0.0
  %2149 = vmatprep.subr.mxu0 0.0
  %2150 = vmatpush1.msra.mxu0 0.0
  %2151 = vmatprep.subr.mxu0 0.0
  %2152 = vmatpush1.msra.mxu0 0.0
  %2153 = vmatprep.subr.mxu0 0.0
  %2154 = vmatpush1.msra.mxu0 0.0
  %2155 = vmatprep.subr.mxu0 0.0
  %2156 = vmatpush1.msra.mxu0 0.0
  %2157 = vmatprep.subr.mxu0 0.0
  %2158 = vmatpush1.msra.mxu0 0.0
  %2159 = vmatprep.subr.mxu0 0.0
  %2160 = vmatpush1.msra.mxu0 0.0
  %2161 = vmatprep.subr.mxu0 0.0
  %2162 = vmatpush1.msra.mxu0 0.0
  %2163 = vmatprep.subr.mxu0 0.0
  %2164 = vmatpush1.msra.mxu0 0.0
  %2165 = vmatprep.subr.mxu0 0.0
  %2166 = vmatpush1.msra.mxu0 0.0
  %2167 = vmatprep.subr.mxu0 0.0
  %2168 = vmatpush1.msra.mxu0 0.0
  %2169 = vmatprep.subr.mxu0 0.0
  %2170 = vmatpush1.msra.mxu0 0.0
  %2171 = vmatprep.subr.mxu0 0.0
  %2172 = vmatpush1.msra.mxu0 0.0
  %2173 = vmatprep.subr.mxu0 0.0
  %2174 = vmatpush1.msra.mxu0 0.0
  %2175 = vmatprep.subr.mxu0 0.0
  %2176 = vmatpush1.msra.mxu0 0.0
  %2177 = vmatprep.subr.mxu0 0.0
  %2178 = vmatpush1.msra.mxu0 0.0
  %2179 = vmatprep.subr.mxu0 0.0
  %2180 = vmatpush1.msra.mxu0 0.0
  %2181 = vmatprep.subr.mxu0 0.0
  %2182 = vmatpush1.msra.mxu0 0.0
  %2183 = vmatprep.subr.mxu0 0.0
  %2184 = vmatpush1.msra.mxu0 0.0
  %2185 = vmatprep.mubr.f32.mxu0 0.0
  %2186 = vmatmul.mubr.f32.gmra.mrb[0].mxu0 %v2110
  %v2187 = vpop.f32.mrb[0].mxu0
  %v2188 = vadd.f32 %v2095, %v2187
  %v2189 = vpop.f32.mrb[0].mxu0
  %2190 = vmatprep.mubr.f32.mxu0 0.0
  %2191 = vmatmul.mubr.f32.gmra.mrb[0].mxu0 %v2113
  %v2192 = vpop.f32.mrb[0].mxu0
  %v2193 = vadd.f32 %v2099, %v2192
  %v2194 = vpop.f32.mrb[0].mxu0
  %2195 = vmatprep.mubr.f32.mxu0 0.0
  %2196 = vmatmul.mubr.f32.gmra.mrb[0].mxu0 %v2116
  %v2197 = vpop.f32.mrb[0].mxu0
  %v2198 = vadd.f32 %v2103, %v2197
  %v2199 = vpop.f32.mrb[0].mxu0
  %2200 = vmatprep.mubr.f32.mxu0 0.0
  %2201 = vmatmul.mubr.f32.gmra.mrb[0].mxu0 %v2119
  %v2202 = vpop.f32.mrb[0].mxu0
  %v2203 = vadd.f32 %v2107, %v2202
  %v2204 = vpop.f32.mrb[0].mxu0
  %2205 = vdwg.mxu0
  %v2206 = vadd.f32 %v1587, %v2188
  %v2207 = vadd.f32 %v1588, %v2193
  %v2208 = vadd.f32 %v1589, %v2198
  %v2209 = vadd.f32 %v1590, %v2203
  %v2210 = vsel %vm1134, %v2206, 0.0
  %v2211 = vsel %vm1134, %v2207, 0.0
  %v2212 = vadd.f32 %v2210, %v2211
  %v2213 = vsel %vm1134, %v2208, 0.0
  %v2214 = vadd.f32 %v2212, %v2213
  %v2215 = vsel %vm1134, %v2209, 0.0
  %v2216 = vadd.f32 %v2214, %v2215
  %v2217 = vrot.slane %v2216, 4
  %v2218 = vadd.f32 %v2216, %v2217
  %v2219 = vrot.slane %v2218, 2
  %v2220 = vadd.f32 %v2218, %v2219
  %v2221 = vrot.slane %v2220, 1
  %v2222 = vadd.f32 %v2220, %v2221
  %v2223 = vmul.f32 %v2222, %v1148
  %v2224 = vsub.f32 %v2206, %v2223
  %v2225 = vsub.f32 %v2207, %v2223
  %v2226 = vsub.f32 %v2208, %v2223
  %v2227 = vsub.f32 %v2209, %v2223
  %v2228 = vmul.f32 %v2224, %v2224
  %v2229 = vmul.f32 %v2225, %v2225
  %v2230 = vmul.f32 %v2226, %v2226
  %v2231 = vmul.f32 %v2227, %v2227
  %v2232 = vsel %vm1134, %v2228, 0.0
  %v2233 = vsel %vm1134, %v2229, 0.0
  %v2234 = vadd.f32 %v2232, %v2233
  %v2235 = vsel %vm1134, %v2230, 0.0
  %v2236 = vadd.f32 %v2234, %v2235
  %v2237 = vsel %vm1134, %v2231, 0.0
  %v2238 = vadd.f32 %v2236, %v2237
  %v2239 = vrot.slane %v2238, 4
  %v2240 = vadd.f32 %v2238, %v2239
  %v2241 = vrot.slane %v2240, 2
  %v2242 = vadd.f32 %v2240, %v2241
  %v2243 = vrot.slane %v2242, 1
  %v2244 = vadd.f32 %v2242, %v2243
  %v2245 = vmul.f32 %v2244, %v1148
  %v2246 = vadd.f32 %v2245, 1e-05
  %v2247 = vrsqrt.pop %v2246
  %v2248 = vmul.f32 %v2224, %v2247
  %v2249 = vmul.f32 %v2225, %v2247
  %v2250 = vmul.f32 %v2226, %v2247
  %v2251 = vmul.f32 %v2227, %v2247
  %2252 = vset.pattern.permute.xlu0 2
  %2253 = vperm.xlu0 %2252, %v1614
  %v2254 = vpop.permute.xlu0 %2253
  %2256 = vset.pattern.permute.xlu0 2
  %2257 = vperm.xlu0 %2256, %v1615
  %v2258 = vpop.permute.xlu0 %2257
  %2260 = vset.pattern.permute.xlu0 2
  %2261 = vperm.xlu0 %2260, %v1616
  %v2262 = vpop.permute.xlu0 %2261
  %2264 = vset.pattern.permute.xlu0 2
  %2265 = vperm.xlu0 %2264, %v1617
  %v2266 = vpop.permute.xlu0 %2265
  %v2268 = vmul.f32 %v2248, %v2254
  %v2269 = vmul.f32 %v2249, %v2258
  %v2270 = vmul.f32 %v2250, %v2262
  %v2271 = vmul.f32 %v2251, %v2266
  %2272 = vset.pattern.permute.xlu0 3
  %2273 = vperm.xlu0 %2272, %v1614
  %v2274 = vpop.permute.xlu0 %2273
  %2276 = vset.pattern.permute.xlu0 3
  %2277 = vperm.xlu0 %2276, %v1615
  %v2278 = vpop.permute.xlu0 %2277
  %2280 = vset.pattern.permute.xlu0 3
  %2281 = vperm.xlu0 %2280, %v1616
  %v2282 = vpop.permute.xlu0 %2281
  %2284 = vset.pattern.permute.xlu0 3
  %2285 = vperm.xlu0 %2284, %v1617
  %v2286 = vpop.permute.xlu0 %2285
  %v2288 = vadd.f32 %v2268, %v2274
  %v2289 = vadd.f32 %v2269, %v2278
  %v2290 = vadd.f32 %v2270, %v2282
  %v2291 = vadd.f32 %v2271, %v2286
  %2292 = vset.pattern.permute.xlu0 7
  %2293 = vperm.xlu0 %2292, %v1614
  %v2294 = vpop.permute.xlu0 %2293
  %2296 = vset.pattern.permute.xlu0 7
  %2297 = vperm.xlu0 %2296, %v1615
  %v2298 = vpop.permute.xlu0 %2297
  %2300 = vset.pattern.permute.xlu0 7
  %2301 = vperm.xlu0 %2300, %v1616
  %v2302 = vpop.permute.xlu0 %2301
  %2304 = vset.pattern.permute.xlu0 7
  %2305 = vperm.xlu0 %2304, %v1617
  %v2306 = vpop.permute.xlu0 %2305
  %2309 = vset.pattern.permute.xlu0 7
  %2310 = vperm.xlu0 %2309, %v1618
  %v2311 = vpop.permute.xlu0 %2310
  %2314 = vset.pattern.permute.xlu0 7
  %2315 = vperm.xlu0 %2314, %v1619
  %v2316 = vpop.permute.xlu0 %2315
  %2319 = vset.pattern.permute.xlu0 7
  %2320 = vperm.xlu0 %2319, %v1620
  %v2321 = vpop.permute.xlu0 %2320
  %2324 = vset.pattern.permute.xlu0 7
  %2325 = vperm.xlu0 %2324, %v1621
  %v2326 = vpop.permute.xlu0 %2325
  %v2329 = vsel %vm127, %v1600, 0
  %v2332 = vsel %vm127, %v1601, 0
  %v2335 = vsel %vm127, %v1602, 0
  %v2338 = vsel %vm127, %v1603, 0
  %v2341 = vsel %vm127, %v1604, 0
  %v2344 = vsel %vm127, %v1605, 0
  %v2347 = vsel %vm127, %v1606, 0
  %v2350 = vsel %vm127, %v1607, 0
  %2352 = vmatprep.subr.mxu0 0.0
  %2353 = vmatpush1.msra.mxu0 %v2288
  %2354 = vmatprep.subr.mxu0 0.0
  %2355 = vmatpush1.msra.mxu0 %v2289
  %2356 = vmatprep.subr.mxu0 0.0
  %2357 = vmatpush1.msra.mxu0 %v2290
  %2358 = vmatprep.subr.mxu0 0.0
  %2359 = vmatpush1.msra.mxu0 %v2291
  %2360 = vmatprep.subr.mxu0 0.0
  %2361 = vmatpush1.msra.mxu0 0.0
  %2362 = vmatprep.subr.mxu0 0.0
  %2363 = vmatpush1.msra.mxu0 0.0
  %2364 = vmatprep.subr.mxu0 0.0
  %2365 = vmatpush1.msra.mxu0 0.0
  %2366 = vmatprep.subr.mxu0 0.0
  %2367 = vmatpush1.msra.mxu0 0.0
  %2368 = vmatprep.subr.mxu0 0.0
  %2369 = vmatpush1.msra.mxu0 0.0
  %2370 = vmatprep.subr.mxu0 0.0
  %2371 = vmatpush1.msra.mxu0 0.0
  %2372 = vmatprep.subr.mxu0 0.0
  %2373 = vmatpush1.msra.mxu0 0.0
  %2374 = vmatprep.subr.mxu0 0.0
  %2375 = vmatpush1.msra.mxu0 0.0
  %2376 = vmatprep.subr.mxu0 0.0
  %2377 = vmatpush1.msra.mxu0 0.0
  %2378 = vmatprep.subr.mxu0 0.0
  %2379 = vmatpush1.msra.mxu0 0.0
  %2380 = vmatprep.subr.mxu0 0.0
  %2381 = vmatpush1.msra.mxu0 0.0
  %2382 = vmatprep.subr.mxu0 0.0
  %2383 = vmatpush1.msra.mxu0 0.0
  %2384 = vmatprep.subr.mxu0 0.0
  %2385 = vmatpush1.msra.mxu0 0.0
  %2386 = vmatprep.subr.mxu0 0.0
  %2387 = vmatpush1.msra.mxu0 0.0
  %2388 = vmatprep.subr.mxu0 0.0
  %2389 = vmatpush1.msra.mxu0 0.0
  %2390 = vmatprep.subr.mxu0 0.0
  %2391 = vmatpush1.msra.mxu0 0.0
  %2392 = vmatprep.subr.mxu0 0.0
  %2393 = vmatpush1.msra.mxu0 0.0
  %2394 = vmatprep.subr.mxu0 0.0
  %2395 = vmatpush1.msra.mxu0 0.0
  %2396 = vmatprep.subr.mxu0 0.0
  %2397 = vmatpush1.msra.mxu0 0.0
  %2398 = vmatprep.subr.mxu0 0.0
  %2399 = vmatpush1.msra.mxu0 0.0
  %2400 = vmatprep.subr.mxu0 0.0
  %2401 = vmatpush1.msra.mxu0 0.0
  %2402 = vmatprep.subr.mxu0 0.0
  %2403 = vmatpush1.msra.mxu0 0.0
  %2404 = vmatprep.subr.mxu0 0.0
  %2405 = vmatpush1.msra.mxu0 0.0
  %2406 = vmatprep.subr.mxu0 0.0
  %2407 = vmatpush1.msra.mxu0 0.0
  %2408 = vmatprep.subr.mxu0 0.0
  %2409 = vmatpush1.msra.mxu0 0.0
  %2410 = vmatprep.subr.mxu0 0.0
  %2411 = vmatpush1.msra.mxu0 0.0
  %2412 = vmatprep.subr.mxu0 0.0
  %2413 = vmatpush1.msra.mxu0 0.0
  %2414 = vmatprep.subr.mxu0 0.0
  %2415 = vmatpush1.msra.mxu0 0.0
  %2416 = vmatprep.mubr.f32.mxu0 0.0
  %2417 = vmatmul.mubr.f32.gmra.mrb[0].mxu0 %v2329
  %v2418 = vpop.f32.mrb[0].mxu0
  %v2419 = vadd.f32 %v2294, %v2418
  %v2420 = vpop.f32.mrb[0].mxu0
  %2421 = vmatprep.mubr.f32.mxu0 0.0
  %2422 = vmatmul.mubr.f32.gmra.mrb[0].mxu0 %v2332
  %v2423 = vpop.f32.mrb[0].mxu0
  %v2424 = vadd.f32 %v2298, %v2423
  %v2425 = vpop.f32.mrb[0].mxu0
  %2426 = vmatprep.mubr.f32.mxu0 0.0
  %2427 = vmatmul.mubr.f32.gmra.mrb[0].mxu0 %v2335
  %v2428 = vpop.f32.mrb[0].mxu0
  %v2429 = vadd.f32 %v2302, %v2428
  %v2430 = vpop.f32.mrb[0].mxu0
  %2431 = vmatprep.mubr.f32.mxu0 0.0
  %2432 = vmatmul.mubr.f32.gmra.mrb[0].mxu0 %v2338
  %v2433 = vpop.f32.mrb[0].mxu0
  %v2434 = vadd.f32 %v2306, %v2433
  %v2435 = vpop.f32.mrb[0].mxu0
  %2436 = vmatprep.mubr.f32.mxu0 0.0
  %2437 = vmatmul.mubr.f32.gmra.mrb[0].mxu0 %v2341
  %v2438 = vpop.f32.mrb[0].mxu0
  %v2439 = vadd.f32 %v2311, %v2438
  %v2440 = vpop.f32.mrb[0].mxu0
  %2441 = vmatprep.mubr.f32.mxu0 0.0
  %2442 = vmatmul.mubr.f32.gmra.mrb[0].mxu0 %v2344
  %v2443 = vpop.f32.mrb[0].mxu0
  %v2444 = vadd.f32 %v2316, %v2443
  %v2445 = vpop.f32.mrb[0].mxu0
  %2446 = vmatprep.mubr.f32.mxu0 0.0
  %2447 = vmatmul.mubr.f32.gmra.mrb[0].mxu0 %v2347
  %v2448 = vpop.f32.mrb[0].mxu0
  %v2449 = vadd.f32 %v2321, %v2448
  %v2450 = vpop.f32.mrb[0].mxu0
  %2451 = vmatprep.mubr.f32.mxu0 0.0
  %2452 = vmatmul.mubr.f32.gmra.mrb[0].mxu0 %v2350
  %v2453 = vpop.f32.mrb[0].mxu0
  %v2454 = vadd.f32 %v2326, %v2453
  %v2455 = vpop.f32.mrb[0].mxu0
  %2456 = vdwg.mxu0
  %v2457 = vmax.f32 %v2419, 0.0
  %v2458 = vmax.f32 %v2424, 0.0
  %v2459 = vmax.f32 %v2429, 0.0
  %v2460 = vmax.f32 %v2434, 0.0
  %v2461 = vmax.f32 %v2439, 0.0
  %v2462 = vmax.f32 %v2444, 0.0
  %v2463 = vmax.f32 %v2449, 0.0
  %v2464 = vmax.f32 %v2454, 0.0
  %2465 = vset.pattern.permute.xlu0 4
  %2466 = vperm.xlu0 %2465, %v1614
  %v2467 = vpop.permute.xlu0 %2466
  %2469 = vset.pattern.permute.xlu0 4
  %2470 = vperm.xlu0 %2469, %v1615
  %v2471 = vpop.permute.xlu0 %2470
  %2473 = vset.pattern.permute.xlu0 4
  %2474 = vperm.xlu0 %2473, %v1616
  %v2475 = vpop.permute.xlu0 %2474
  %2477 = vset.pattern.permute.xlu0 4
  %2478 = vperm.xlu0 %2477, %v1617
  %v2479 = vpop.permute.xlu0 %2478
  %v2482 = vsel %vm1407, %v1609, 0
  %v2485 = vsel %vm1407, %v1610, 0
  %v2488 = vsel %vm1407, %v1611, 0
  %v2491 = vsel %vm1407, %v1612, 0
  %2493 = vmatprep.subr.mxu0 0.0
  %2494 = vmatpush1.msra.mxu0 %v2457
  %2495 = vmatprep.subr.mxu0 0.0
  %2496 = vmatpush1.msra.mxu0 %v2458
  %2497 = vmatprep.subr.mxu0 0.0
  %2498 = vmatpush1.msra.mxu0 %v2459
  %2499 = vmatprep.subr.mxu0 0.0
  %2500 = vmatpush1.msra.mxu0 %v2460
  %2501 = vmatprep.subr.mxu0 0.0
  %2502 = vmatpush1.msra.mxu0 %v2461
  %2503 = vmatprep.subr.mxu0 0.0
  %2504 = vmatpush1.msra.mxu0 %v2462
  %2505 = vmatprep.subr.mxu0 0.0
  %2506 = vmatpush1.msra.mxu0 %v2463
  %2507 = vmatprep.subr.mxu0 0.0
  %2508 = vmatpush1.msra.mxu0 %v2464
  %2509 = vmatprep.subr.mxu0 0.0
  %2510 = vmatpush1.msra.mxu0 0.0
  %2511 = vmatprep.subr.mxu0 0.0
  %2512 = vmatpush1.msra.mxu0 0.0
  %2513 = vmatprep.subr.mxu0 0.0
  %2514 = vmatpush1.msra.mxu0 0.0
  %2515 = vmatprep.subr.mxu0 0.0
  %2516 = vmatpush1.msra.mxu0 0.0
  %2517 = vmatprep.subr.mxu0 0.0
  %2518 = vmatpush1.msra.mxu0 0.0
  %2519 = vmatprep.subr.mxu0 0.0
  %2520 = vmatpush1.msra.mxu0 0.0
  %2521 = vmatprep.subr.mxu0 0.0
  %2522 = vmatpush1.msra.mxu0 0.0
  %2523 = vmatprep.subr.mxu0 0.0
  %2524 = vmatpush1.msra.mxu0 0.0
  %2525 = vmatprep.subr.mxu0 0.0
  %2526 = vmatpush1.msra.mxu0 0.0
  %2527 = vmatprep.subr.mxu0 0.0
  %2528 = vmatpush1.msra.mxu0 0.0
  %2529 = vmatprep.subr.mxu0 0.0
  %2530 = vmatpush1.msra.mxu0 0.0
  %2531 = vmatprep.subr.mxu0 0.0
  %2532 = vmatpush1.msra.mxu0 0.0
  %2533 = vmatprep.subr.mxu0 0.0
  %2534 = vmatpush1.msra.mxu0 0.0
  %2535 = vmatprep.subr.mxu0 0.0
  %2536 = vmatpush1.msra.mxu0 0.0
  %2537 = vmatprep.subr.mxu0 0.0
  %2538 = vmatpush1.msra.mxu0 0.0
  %2539 = vmatprep.subr.mxu0 0.0
  %2540 = vmatpush1.msra.mxu0 0.0
  %2541 = vmatprep.subr.mxu0 0.0
  %2542 = vmatpush1.msra.mxu0 0.0
  %2543 = vmatprep.subr.mxu0 0.0
  %2544 = vmatpush1.msra.mxu0 0.0
  %2545 = vmatprep.subr.mxu0 0.0
  %2546 = vmatpush1.msra.mxu0 0.0
  %2547 = vmatprep.subr.mxu0 0.0
  %2548 = vmatpush1.msra.mxu0 0.0
  %2549 = vmatprep.subr.mxu0 0.0
  %2550 = vmatpush1.msra.mxu0 0.0
  %2551 = vmatprep.subr.mxu0 0.0
  %2552 = vmatpush1.msra.mxu0 0.0
  %2553 = vmatprep.subr.mxu0 0.0
  %2554 = vmatpush1.msra.mxu0 0.0
  %2555 = vmatprep.subr.mxu0 0.0
  %2556 = vmatpush1.msra.mxu0 0.0
  %2557 = vmatprep.mubr.f32.mxu0 0.0
  %2558 = vmatmul.mubr.f32.gmra.mrb[0].mxu0 %v2482
  %v2559 = vpop.f32.mrb[0].mxu0
  %v2560 = vadd.f32 %v2467, %v2559
  %v2561 = vpop.f32.mrb[0].mxu0
  %2562 = vmatprep.mubr.f32.mxu0 0.0
  %2563 = vmatmul.mubr.f32.gmra.mrb[0].mxu0 %v2485
  %v2564 = vpop.f32.mrb[0].mxu0
  %v2565 = vadd.f32 %v2471, %v2564
  %v2566 = vpop.f32.mrb[0].mxu0
  %2567 = vmatprep.mubr.f32.mxu0 0.0
  %2568 = vmatmul.mubr.f32.gmra.mrb[0].mxu0 %v2488
  %v2569 = vpop.f32.mrb[0].mxu0
  %v2570 = vadd.f32 %v2475, %v2569
  %v2571 = vpop.f32.mrb[0].mxu0
  %2572 = vmatprep.mubr.f32.mxu0 0.0
  %2573 = vmatmul.mubr.f32.gmra.mrb[0].mxu0 %v2491
  %v2574 = vpop.f32.mrb[0].mxu0
  %v2575 = vadd.f32 %v2479, %v2574
  %v2576 = vpop.f32.mrb[0].mxu0
  %2577 = vdwg.mxu0
  %v2578 = vadd.f32 %v2288, %v2560
  %v2579 = vadd.f32 %v2289, %v2565
  %v2580 = vadd.f32 %v2290, %v2570
  %v2581 = vadd.f32 %v2291, %v2575
  %v2582 = vsel %vm1134, %v2578, 0.0
  %v2583 = vsel %vm1134, %v2579, 0.0
  %v2584 = vadd.f32 %v2582, %v2583
  %v2585 = vsel %vm1134, %v2580, 0.0
  %v2586 = vadd.f32 %v2584, %v2585
  %v2587 = vsel %vm1134, %v2581, 0.0
  %v2588 = vadd.f32 %v2586, %v2587
  %v2589 = vrot.slane %v2588, 4
  %v2590 = vadd.f32 %v2588, %v2589
  %v2591 = vrot.slane %v2590, 2
  %v2592 = vadd.f32 %v2590, %v2591
  %v2593 = vrot.slane %v2592, 1
  %v2594 = vadd.f32 %v2592, %v2593
  %v2595 = vmul.f32 %v2594, %v1148
  %v2596 = vsub.f32 %v2578, %v2595
  %v2597 = vsub.f32 %v2579, %v2595
  %v2598 = vsub.f32 %v2580, %v2595
  %v2599 = vsub.f32 %v2581, %v2595
  %v2600 = vmul.f32 %v2596, %v2596
  %v2601 = vmul.f32 %v2597, %v2597
  %v2602 = vmul.f32 %v2598, %v2598
  %v2603 = vmul.f32 %v2599, %v2599
  %v2604 = vsel %vm1134, %v2600, 0.0
  %v2605 = vsel %vm1134, %v2601, 0.0
  %v2606 = vadd.f32 %v2604, %v2605
  %v2607 = vsel %vm1134, %v2602, 0.0
  %v2608 = vadd.f32 %v2606, %v2607
  %v2609 = vsel %vm1134, %v2603, 0.0
  %v2610 = vadd.f32 %v2608, %v2609
  %v2611 = vrot.slane %v2610, 4
  %v2612 = vadd.f32 %v2610, %v2611
  %v2613 = vrot.slane %v2612, 2
  %v2614 = vadd.f32 %v2612, %v2613
  %v2615 = vrot.slane %v2614, 1
  %v2616 = vadd.f32 %v2614, %v2615
  %v2617 = vmul.f32 %v2616, %v1148
  %v2618 = vadd.f32 %v2617, 1e-05
  %v2619 = vrsqrt.pop %v2618
  %v2620 = vmul.f32 %v2596, %v2619
  %v2621 = vmul.f32 %v2597, %v2619
  %v2622 = vmul.f32 %v2598, %v2619
  %v2623 = vmul.f32 %v2599, %v2619
  %2624 = vset.pattern.permute.xlu0 5
  %2625 = vperm.xlu0 %2624, %v1614
  %v2626 = vpop.permute.xlu0 %2625
  %2628 = vset.pattern.permute.xlu0 5
  %2629 = vperm.xlu0 %2628, %v1615
  %v2630 = vpop.permute.xlu0 %2629
  %2632 = vset.pattern.permute.xlu0 5
  %2633 = vperm.xlu0 %2632, %v1616
  %v2634 = vpop.permute.xlu0 %2633
  %2636 = vset.pattern.permute.xlu0 5
  %2637 = vperm.xlu0 %2636, %v1617
  %v2638 = vpop.permute.xlu0 %2637
  %v2640 = vmul.f32 %v2620, %v2626
  %v2641 = vmul.f32 %v2621, %v2630
  %v2642 = vmul.f32 %v2622, %v2634
  %v2643 = vmul.f32 %v2623, %v2638
  %2644 = vset.pattern.permute.xlu0 6
  %2645 = vperm.xlu0 %2644, %v1614
  %v2646 = vpop.permute.xlu0 %2645
  %2648 = vset.pattern.permute.xlu0 6
  %2649 = vperm.xlu0 %2648, %v1615
  %v2650 = vpop.permute.xlu0 %2649
  %2652 = vset.pattern.permute.xlu0 6
  %2653 = vperm.xlu0 %2652, %v1616
  %v2654 = vpop.permute.xlu0 %2653
  %2656 = vset.pattern.permute.xlu0 6
  %2657 = vperm.xlu0 %2656, %v1617
  %v2658 = vpop.permute.xlu0 %2657
  %v2660 = vadd.f32 %v2640, %v2646
  %v2661 = vadd.f32 %v2641, %v2650
  %v2662 = vadd.f32 %v2642, %v2654
  %v2663 = vadd.f32 %v2643, %v2658
  %v2664 = vlaneseq
  %v2665 = vshrl.u32 %v2664, 7
  %v2666 = vlaneseq
  %v2667 = vand.u32 %v2666, 127
  %vm2668 = vcmp.eq.s32.totalorder %v2665, %v2667
  %v2669 = vsel %vm2668, 1.0, 0.0
  %v2671 = vsel %vm1134, %v2669, 0
  %v2674 = vsel %vm1134, %v2660, 0
  %v2677 = vsel %vm1134, %v2661, 0
  %v2680 = vsel %vm1134, %v2662, 0
  %v2683 = vsel %vm1134, %v2663, 0
  %2685 = vmatprep.subr.mxu0 0.0
  %2686 = vmatpush1.xpose.msra.mxu0 %v2674
  %2687 = vmatprep.subr.mxu0 0.0
  %2688 = vmatpush1.xpose.msra.mxu0 %v2677
  %2689 = vmatprep.subr.mxu0 0.0
  %2690 = vmatpush1.xpose.msra.mxu0 %v2680
  %2691 = vmatprep.subr.mxu0 0.0
  %2692 = vmatpush1.xpose.msra.mxu0 %v2683
  %2693 = vmatprep.subr.mxu0 0.0
  %2694 = vmatpush1.xpose.msra.mxu0 0.0
  %2695 = vmatprep.subr.mxu0 0.0
  %2696 = vmatpush1.xpose.msra.mxu0 0.0
  %2697 = vmatprep.subr.mxu0 0.0
  %2698 = vmatpush1.xpose.msra.mxu0 0.0
  %2699 = vmatprep.subr.mxu0 0.0
  %2700 = vmatpush1.xpose.msra.mxu0 0.0
  %2701 = vmatprep.subr.mxu0 0.0
  %2702 = vmatpush1.xpose.msra.mxu0 0.0
  %2703 = vmatprep.subr.mxu0 0.0
  %2704 = vmatpush1.xpose.msra.mxu0 0.0
  %2705 = vmatprep.subr.mxu0 0.0
  %2706 = vmatpush1.xpose.msra.mxu0 0.0
  %2707 = vmatprep.subr.mxu0 0.0
  %2708 = vmatpush1.xpose.msra.mxu0 0.0
  %2709 = vmatprep.subr.mxu0 0.0
  %2710 = vmatpush1.xpose.msra.mxu0 0.0
  %2711 = vmatprep.subr.mxu0 0.0
  %2712 = vmatpush1.xpose.msra.mxu0 0.0
  %2713 = vmatprep.subr.mxu0 0.0
  %2714 = vmatpush1.xpose.msra.mxu0 0.0
  %2715 = vmatprep.subr.mxu0 0.0
  %2716 = vmatpush1.xpose.msra.mxu0 0.0
  %2717 = vmatprep.subr.mxu0 0.0
  %2718 = vmatpush1.xpose.msra.mxu0 0.0
  %2719 = vmatprep.subr.mxu0 0.0
  %2720 = vmatpush1.xpose.msra.mxu0 0.0
  %2721 = vmatprep.subr.mxu0 0.0
  %2722 = vmatpush1.xpose.msra.mxu0 0.0
  %2723 = vmatprep.subr.mxu0 0.0
  %2724 = vmatpush1.xpose.msra.mxu0 0.0
  %2725 = vmatprep.subr.mxu0 0.0
  %2726 = vmatpush1.xpose.msra.mxu0 0.0
  %2727 = vmatprep.subr.mxu0 0.0
  %2728 = vmatpush1.xpose.msra.mxu0 0.0
  %2729 = vmatprep.subr.mxu0 0.0
  %2730 = vmatpush1.xpose.msra.mxu0 0.0
  %2731 = vmatprep.subr.mxu0 0.0
  %2732 = vmatpush1.xpose.msra.mxu0 0.0
  %2733 = vmatprep.subr.mxu0 0.0
  %2734 = vmatpush1.xpose.msra.mxu0 0.0
  %2735 = vmatprep.subr.mxu0 0.0
  %2736 = vmatpush1.xpose.msra.mxu0 0.0
  %2737 = vmatprep.subr.mxu0 0.0
  %2738 = vmatpush1.xpose.msra.mxu0 0.0
  %2739 = vmatprep.subr.mxu0 0.0
  %2740 = vmatpush1.xpose.msra.mxu0 0.0
  %2741 = vmatprep.subr.mxu0 0.0
  %2742 = vmatpush1.xpose.msra.mxu0 0.0
  %2743 = vmatprep.subr.mxu0 0.0
  %2744 = vmatpush1.xpose.msra.mxu0 0.0
  %2745 = vmatprep.subr.mxu0 0.0
  %2746 = vmatpush1.xpose.msra.mxu0 0.0
  %2747 = vmatprep.subr.mxu0 0.0
  %2748 = vmatpush1.xpose.msra.mxu0 0.0
  %2749 = vmatprep.mubr.f32.mxu0 0.0
  %2750 = vmatmul.mubr.f32.gmra.mrb[0].mxu0 %v2671
  %v2751 = vpop.f32.mrb[0].mxu0
  %v2752 = vadd.f32 0.0, %v2751
  %v2753 = vpop.f32.mrb[0].mxu0
  %2754 = vdwg.mxu0
  %v2755 = vlaneseq
  %v2756 = vshrl.u32 %v2755, 7
  %v2757 = vsub.s32 0, %v2756
  %v2758 = vrot.slane %v23, %v2757
  %2759 = vrot.lane.b32.xlu0 %v23, 95
  %v2760 = vpop.permute.xlu0 %2759
  %2761 = vrot.lane.b32.xlu0 %v24, 95
  %v2762 = vpop.permute.xlu0 %2761
  %2763 = vrot.lane.b32.xlu0 %v25, 95
  %v2764 = vpop.permute.xlu0 %2763
  %2765 = vrot.lane.b32.xlu0 %v26, 95
  %v2766 = vpop.permute.xlu0 %2765
  %2772 = vrot.lane.b32.xlu0 %v2758, 94
  %v2773 = vpop.permute.xlu0 %2772
  %v2776 = vsel %vm127, %v2752, 0
  %2778 = vmatprep.subr.mxu0 0.0
  %2779 = vmatpush1.msra.mxu0 %v2760
  %2780 = vmatprep.subr.mxu0 0.0
  %2781 = vmatpush1.msra.mxu0 %v2762
  %2782 = vmatprep.subr.mxu0 0.0
  %2783 = vmatpush1.msra.mxu0 %v2764
  %2784 = vmatprep.subr.mxu0 0.0
  %2785 = vmatpush1.msra.mxu0 %v2766
  %2786 = vmatprep.subr.mxu0 0.0
  %2787 = vmatpush1.msra.mxu0 0.0
  %2788 = vmatprep.subr.mxu0 0.0
  %2789 = vmatpush1.msra.mxu0 0.0
  %2790 = vmatprep.subr.mxu0 0.0
  %2791 = vmatpush1.msra.mxu0 0.0
  %2792 = vmatprep.subr.mxu0 0.0
  %2793 = vmatpush1.msra.mxu0 0.0
  %2794 = vmatprep.subr.mxu0 0.0
  %2795 = vmatpush1.msra.mxu0 0.0
  %2796 = vmatprep.subr.mxu0 0.0
  %2797 = vmatpush1.msra.mxu0 0.0
  %2798 = vmatprep.subr.mxu0 0.0
  %2799 = vmatpush1.msra.mxu0 0.0
  %2800 = vmatprep.subr.mxu0 0.0
  %2801 = vmatpush1.msra.mxu0 0.0
  %2802 = vmatprep.subr.mxu0 0.0
  %2803 = vmatpush1.msra.mxu0 0.0
  %2804 = vmatprep.subr.mxu0 0.0
  %2805 = vmatpush1.msra.mxu0 0.0
  %2806 = vmatprep.subr.mxu0 0.0
  %2807 = vmatpush1.msra.mxu0 0.0
  %2808 = vmatprep.subr.mxu0 0.0
  %2809 = vmatpush1.msra.mxu0 0.0
  %2810 = vmatprep.subr.mxu0 0.0
  %2811 = vmatpush1.msra.mxu0 0.0
  %2812 = vmatprep.subr.mxu0 0.0
  %2813 = vmatpush1.msra.mxu0 0.0
  %2814 = vmatprep.subr.mxu0 0.0
  %2815 = vmatpush1.msra.mxu0 0.0
  %2816 = vmatprep.subr.mxu0 0.0
  %2817 = vmatpush1.msra.mxu0 0.0
  %2818 = vmatprep.subr.mxu0 0.0
  %2819 = vmatpush1.msra.mxu0 0.0
  %2820 = vmatprep.subr.mxu0 0.0
  %2821 = vmatpush1.msra.mxu0 0.0
  %2822 = vmatprep.subr.mxu0 0.0
  %2823 = vmatpush1.msra.mxu0 0.0
  %2824 = vmatprep.subr.mxu0 0.0
  %2825 = vmatpush1.msra.mxu0 0.0
  %2826 = vmatprep.subr.mxu0 0.0
  %2827 = vmatpush1.msra.mxu0 0.0
  %2828 = vmatprep.subr.mxu0 0.0
  %2829 = vmatpush1.msra.mxu0 0.0
  %2830 = vmatprep.subr.mxu0 0.0
  %2831 = vmatpush1.msra.mxu0 0.0
  %2832 = vmatprep.subr.mxu0 0.0
  %2833 = vmatpush1.msra.mxu0 0.0
  %2834 = vmatprep.subr.mxu0 0.0
  %2835 = vmatpush1.msra.mxu0 0.0
  %2836 = vmatprep.subr.mxu0 0.0
  %2837 = vmatpush1.msra.mxu0 0.0
  %2838 = vmatprep.subr.mxu0 0.0
  %2839 = vmatpush1.msra.mxu0 0.0
  %2840 = vmatprep.subr.mxu0 0.0
  %2841 = vmatpush1.msra.mxu0 0.0
  %2842 = vmatprep.mubr.f32.mxu0 0.0
  %2843 = vmatmul.mubr.f32.gmra.mrb[0].mxu0 %v2776
  %v2844 = vpop.f32.mrb[0].mxu0
  %v2845 = vadd.f32 %v2773, %v2844
  %v2846 = vpop.f32.mrb[0].mxu0
  %2847 = vdwg.mxu0
  %vm2848 = vcmask 1024
  %2849 = vst.msk [vmem:[%s6] sm:$0x3] %vm2848, %v2845
  // Predicated region
  $region26: #{tpu_custom_call.1} parent=0 // pred_check
    _
  $region27: #{tpu_custom_call.1} parent=0 // pred_check_branch
    %2851 = sbr.rel (0) target = $region29
  $region28: #{tpu_custom_call.1} parent=0 // pred_region
    _
  $region29: #{tpu_custom_call.1} parent=0 // pred_fallthru
    _
  // Predicated region
  $region30: #{tpu_custom_call.1} parent=0 // pred_check
    _
  $region31: #{tpu_custom_call.1} parent=0 // pred_check_branch
    %2853 = sbr.rel (0) target = $region33
  $region32: #{tpu_custom_call.1} parent=0 // pred_region
    _
  $region33: #{tpu_custom_call.1} parent=0 // pred_fallthru
    _

</llo_original>
